<compile_context>
chip_gen: v7x
topology: tpu7x:2x2x1
jax: 0.10.0
libtpu: 0.0.40
codegen_flags: <defaults>
</compile_context>

<pallas_src>
import functools

import jax
import jax.numpy as jnp
from jax.experimental import pallas as pl
from jax.experimental.pallas import tpu as pltpu

K = 15          # branch conv kernel size (PyTorch kernel_size=15)
PAD = K // 2    # 'same' padding -> 7 zeros each side
EPS = 1e-5      # nn.BatchNorm1d default eps


def _multires_kernel(tl, tc, use_mxu, xpad_ref, w_ref, p_ref, out_ref):
    """One (batch, L-tile) step: all branches + shortcut + BN/ReLU fused."""
    j = pl.program_id(1)
    base = pl.multiple_of(j * tl, tl)          # aligned element offset into xpad

    # Tiny resident parameters (read once per step).
    w = w_ref[...]                             # (ctot, K), branch-BN scale folded in
    p = p_ref[...]                             # (ctot, 8) packed affine table
    b_main = p[:, 0:1]
    sc_scale = p[:, 1:2]
    sc_shift = p[:, 2:3]
    bn_scale = p[:, 3:4]
    bn_shift = p[:, 4:5]

    # Static loop over lane chunks: the big grid tile amortizes per-step
    # overhead, the small chunk keeps the f32 accumulator vreg-friendly.
    for c in range(tl // tc):
        start = base + c * tc
        # Per-chunk halo window (1, tc + K - 1): one aligned-ish load, then
        # static lane slices for the taps (just-in-time, <=2 taps live).
        xwc = xpad_ref[0, :, pl.ds(start, tc + K - 1)]

        if use_mxu:
            # im2col slab -> single matmul on the MXU slot (free vs. VALU).
            slab = jnp.concatenate([xwc[:, k:k + tc] for k in range(K)], axis=0)
            acc = jnp.dot(w, slab, preferred_element_type=jnp.float32)
        else:
            # VPU tap loop, JIT-sliced taps.
            acc = w[:, 0:1] * xwc[:, 0:tc]
            for k in range(1, K):
                acc = acc + w[:, k:k + 1] * xwc[:, k:k + tc]

        # conv bias + branch BN shift + ReLU (all three branches fused over ctot)
        branches = jnp.maximum(acc + b_main, 0.0)
        # 1x1 shortcut conv + BN + ReLU folded to a per-channel affine of x
        shortcut = jnp.maximum(xwc[:, PAD:PAD + tc] * sc_scale + sc_shift, 0.0)
        # NOTE: bn -> add shortcut -> relu -> bn applies the SAME BN parameters
        # twice; this mirrors the PyTorch forward (self.bn used twice) and is
        # intentional, not a bug.
        z = branches * bn_scale + bn_shift
        z = jnp.maximum(z + shortcut, 0.0)
        z = z * bn_scale + bn_shift
        out_ref[0, :, c * tc:(c + 1) * tc] = z.astype(out_ref.dtype)


def _largest_divisor_at_most(n, cap):
    d = max(1, min(int(cap), int(n)))
    while n % d != 0:
        d -= 1
    return d


def multires_block(x, folded, *, tl=4096, tc=512, out_dtype=jnp.float32,
                   use_mxu=None, vmem_budget=24 << 20):
    """x: (B, 1, L) float32 -> (B, 7*n_filters, L) out_dtype."""
    B, cin, L = x.shape
    assert cin == 1
    ctot = folded["w_eff"].shape[0]
    if use_mxu is None:
        use_mxu = ctot >= 64
    out_bytes = jnp.dtype(out_dtype).itemsize

    # Lane-pad L only up to the next multiple of 128 (<=127 wasted columns)
    # and choose a tile that divides it exactly -> no huge right-pad slab.
    lp = pl.cdiv(L, 128) * 128
    units = lp // 128
    lpad = pl.cdiv(lp + K - 1, 128) * 128       # padded-row length (lane-dense)

    # Grid tile: multiple of 128 dividing lp, as large as requested, shrunk if
    # the double-buffered output block + resident row would blow scoped VMEM
    # (v5e default 16 MiB, v7x physical 64 MiB).
    def vmem_estimate(tlu):
        return (2 * ctot * (tlu * 128) * out_bytes      # output double-buffer
                + 2 * lpad * 4                          # resident padded input row
                + 2 * ctot * (K + 8) * 4 + (1 << 16))   # params + slack

    tl_units = _largest_divisor_at_most(units, max(tl // 128, 1))
    while tl_units > 1 and vmem_estimate(tl_units) > vmem_budget:
        tl_units = _largest_divisor_at_most(units, tl_units - 1)
    tl_eff = tl_units * 128

    # Inner chunk: divides the tile, sized so ceil(ctot/8)*(tc/128) <~ 32 vregs.
    acc_rows = pl.cdiv(ctot, 8)
    tc_cap = max(1, min(max(tc // 128, 1), max(32 // acc_rows, 1), tl_units))
    tc_eff = _largest_divisor_at_most(tl_units, tc_cap) * 128

    n_l = lp // tl_eff

    # 'same' padding plus lane padding.  Single-channel input -> negligible copy.
    xpad = jnp.pad(x.astype(jnp.float32),
                   ((0, 0), (0, 0), (PAD, lpad - L - PAD)))

    # One packed per-channel affine table:
    # columns = [b_main, sc_scale, sc_shift, bn_scale, bn_shift, 0, 0, 0]
    zeros = jnp.zeros((ctot,), jnp.float32)
    packed = jnp.stack(
        [folded["b_main"], folded["sc_scale"], folded["sc_shift"],
         folded["bn_scale"], folded["bn_shift"], zeros, zeros, zeros],
        axis=1).astype(jnp.float32)                              # (ctot, 8)

    vmem_limit = int(min(max(32 << 20, int(vmem_estimate(tl_units) * 1.5)),
                         48 << 20))

    out = pl.pallas_call(
        functools.partial(_multires_kernel, tl_eff, tc_eff, use_mxu),
        out_shape=jax.ShapeDtypeStruct((B, ctot, lp), out_dtype),
        grid_spec=pltpu.PrefetchScalarGridSpec(
            num_scalar_prefetch=0,
            grid=(B, n_l),
            in_specs=[
                # whole padded input row, resident across the L-tile axis
                pl.BlockSpec((1, 1, lpad), lambda b, j: (b, 0, 0)),
                # fused conv weights (branch BN scale folded in)
                pl.BlockSpec((ctot, K), lambda b, j: (0, 0)),
                # packed per-channel affine table
                pl.BlockSpec((ctot, 8), lambda b, j: (0, 0)),
            ],
            out_specs=pl.BlockSpec((1, ctot, tl_eff), lambda b, j: (b, 0, j)),
        ),
        compiler_params=pltpu.CompilerParams(
            dimension_semantics=("parallel", "parallel"),
            vmem_limit_bytes=vmem_limit),
    )(xpad, folded["w_eff"].astype(jnp.float32), packed)

    # TODO(synk): when L % 128 != 0 this slice re-materializes the output in
    # HBM; callers that can consume the lane-padded output should skip it.
    return out if lp == L else out[:, :, :L]


# ----------------------------------------------------------------------------
# Deterministic synthetic parameters (shapes from MultiResBlock.__init__)
# ----------------------------------------------------------------------------
def init_raw_params(key, n_filters):
    ctot = 7 * n_filters
    ks = iter(jax.random.split(key, 40))
    nrm = lambda shape, s=0.1: s * jax.random.normal(next(ks), shape, jnp.float32)

    def bn_params(c):
        return dict(gamma=1.0 + nrm((c,)), beta=nrm((c,)),
                    mean=nrm((c,)), var=0.5 + jnp.abs(nrm((c,))))

    return dict(
        w3=nrm((n_filters, 1, K)), b3=nrm((n_filters,)), bn3=bn_params(n_filters),
        w5=nrm((2 * n_filters, 1, K)), b5=nrm((2 * n_filters,)), bn5=bn_params(2 * n_filters),
        w7=nrm((4 * n_filters, 1, K)), b7=nrm((4 * n_filters,)), bn7=bn_params(4 * n_filters),
        w_sc=nrm((ctot, 1, 1)), b_sc=nrm((ctot,)), bn_sc=bn_params(ctot),
        bn=bn_params(ctot),
    )


def fold_params(raw):
    """Fold conv bias + inference-mode BN into weights / per-channel affines."""
    def aff(bn):
        s = bn["gamma"] / jnp.sqrt(bn["var"] + EPS)
        return s, bn["beta"] - bn["mean"] * s

    s3, t3 = aff(raw["bn3"])
    s5, t5 = aff(raw["bn5"])
    s7, t7 = aff(raw["bn7"])
    w_cat = jnp.concatenate(
        [raw["w3"][:, 0, :], raw["w5"][:, 0, :], raw["w7"][:, 0, :]], axis=0)
    s_main = jnp.concatenate([s3, s5, s7])
    b_main = jnp.concatenate(
        [raw["b3"] * s3 + t3, raw["b5"] * s5 + t5, raw["b7"] * s7 + t7])
    # Fold the per-channel BN scale into the conv weights (conv is linear).
    w_eff = w_cat * s_main[:, None]

    ssc, tsc = aff(raw["bn_sc"])
    sc_scale = raw["w_sc"][:, 0, 0] * ssc
    sc_shift = raw["b_sc"] * ssc + tsc

    bn_scale, bn_shift = aff(raw["bn"])
    return dict(w_eff=w_eff, b_main=b_main,
                sc_scale=sc_scale, sc_shift=sc_shift,
                bn_scale=bn_scale, bn_shift=bn_shift)


# ----------------------------------------------------------------------------
# Pure-JAX reference mirroring the PyTorch forward (for correctness check)
# ----------------------------------------------------------------------------
def torch_reference(x, raw):
    def conv1d(t, w, b):
        pad = (w.shape[-1] - 1) // 2
        y = jax.lax.conv_general_dilated(
            t, w, window_strides=(1,), padding=[(pad, pad)],
            dimension_numbers=("NCH", "OIH", "NCH"),
            precision=jax.lax.Precision.HIGHEST)
        return y + b[None, :, None]

    def bn(t, p):
        return ((t - p["mean"][None, :, None]) /
                jnp.sqrt(p["var"][None, :, None] + EPS) *
                p["gamma"][None, :, None] + p["beta"][None, :, None])

    relu = lambda t: jnp.maximum(t, 0.0)
    shortcut = relu(bn(conv1d(x, raw["w_sc"], raw["b_sc"]), raw["bn_sc"]))
    x3 = relu(bn(conv1d(x, raw["w3"], raw["b3"]), raw["bn3"]))
    x5 = relu(bn(conv1d(x, raw["w5"], raw["b5"]), raw["bn5"]))
    x7 = relu(bn(conv1d(x, raw["w7"], raw["b7"]), raw["bn7"]))
    cat = jnp.concatenate([x3, x5, x7], axis=1)
    z = bn(cat, raw["bn"])
    z = relu(z + shortcut)
    z = bn(z, raw["bn"])
    return z


if __name__ == "__main__":
    n_filters = 4          # C_tot = 28
    B, L = 2, 1000         # L not a multiple of 128 -> exercises lane padding
    key = jax.random.PRNGKey(0)
    kx, kp = jax.random.split(key)

    x = jax.random.normal(kx, (B, 1, L), jnp.float32)   # PyTorch NCL input
    raw = init_raw_params(kp, n_filters)
    folded = fold_params(raw)
    ref = torch_reference(x, raw)

    # VPU tap-loop path (default for small channel counts), f32 output.
    out = multires_block(x, folded, tl=4096, tc=512, use_mxu=False)
    out = jax.block_until_ready(out)
    assert out.shape == (B, 7 * n_filters, L), out.shape
    err = float(jnp.max(jnp.abs(out - ref)))
    assert jnp.allclose(out, ref, atol=1e-4, rtol=1e-4), err

    # MXU im2col path (used automatically for large ctot); MXU f32 matmul may
    # use reduced-precision passes, so check with a looser tolerance.
    out_mxu = multires_block(x, folded, tl=4096, tc=512, use_mxu=True)
    out_mxu = jax.block_until_ready(out_mxu)
    err_mxu = float(jnp.max(jnp.abs(out_mxu - ref)))
    assert jnp.allclose(out_mxu, ref, atol=2e-2, rtol=2e-2), err_mxu

    print("KERNEL_OK")
</pallas_src>

<mosaic_0001>
module attributes {stable_mosaic.version = 11 : i64} {
  func.func @_multires_kernel(%arg0: i32, %arg1: i32, %arg2: memref<1x1x1152xf32, #tpu.memory_space<vmem>>, %arg3: memref<28x15xf32, #tpu.memory_space<vmem>>, %arg4: memref<28x8xf32, #tpu.memory_space<vmem>>, %arg5: memref<1x28x1024xf32, #tpu.memory_space<vmem>>) attributes {dimension_semantics = [#tpu.dimension_semantics<parallel>, #tpu.dimension_semantics<parallel>], iteration_bounds = array<i64: 2, 1>, scalar_prefetch = 0 : i64, scratch_operands = 0 : i64, tpu.core_type = #tpu.core_type<tc>, window_params = [{transform_indices = @transform_0, window_bounds = array<i64: 1, 1, 1152>}, {pipeline_mode = #tpu.pipeline_mode<synchronous>, transform_indices = @transform_1, window_bounds = array<i64: 28, 15>}, {pipeline_mode = #tpu.pipeline_mode<synchronous>, transform_indices = @transform_2, window_bounds = array<i64: 28, 8>}, {transform_indices = @transform_3, window_bounds = array<i64: 1, 28, 1024>}]} {
    %c1024_i32 = arith.constant 1024 : i32
    %0 = arith.muli %arg1, %c1024_i32 : i32
    %1 = tpu.assume_multiple %0, 1024 : i32
    %c0 = arith.constant 0 : index
    %c0_0 = arith.constant 0 : index
    %2 = vector.load %arg3[%c0, %c0_0] : memref<28x15xf32, #tpu.memory_space<vmem>>, vector<28x15xf32>
    %c0_1 = arith.constant 0 : index
    %c0_2 = arith.constant 0 : index
    %3 = vector.load %arg4[%c0_1, %c0_2] : memref<28x8xf32, #tpu.memory_space<vmem>>, vector<28x8xf32>
    %4 = vector.extract_strided_slice %3 {offsets = [0, 0], sizes = [28, 1], strides = [1, 1]} : vector<28x8xf32> to vector<28x1xf32>
    %5 = vector.extract_strided_slice %3 {offsets = [0, 1], sizes = [28, 1], strides = [1, 1]} : vector<28x8xf32> to vector<28x1xf32>
    %6 = vector.extract_strided_slice %3 {offsets = [0, 2], sizes = [28, 1], strides = [1, 1]} : vector<28x8xf32> to vector<28x1xf32>
    %7 = vector.extract_strided_slice %3 {offsets = [0, 3], sizes = [28, 1], strides = [1, 1]} : vector<28x8xf32> to vector<28x1xf32>
    %8 = vector.extract_strided_slice %3 {offsets = [0, 4], sizes = [28, 1], strides = [1, 1]} : vector<28x8xf32> to vector<28x1xf32>
    %c0_i32 = arith.constant 0 : i32
    %9 = arith.addi %1, %c0_i32 : i32
    %c0_3 = arith.constant 0 : index
    %c0_4 = arith.constant 0 : index
    %10 = arith.index_cast %9 : i32 to index
    %11 = vector.load %arg2[%c0_3, %c0_4, %10] : memref<1x1x1152xf32, #tpu.memory_space<vmem>>, vector<1x1x526xf32>
    %12 = vector.shape_cast %11 : vector<1x1x526xf32> to vector<1x526xf32>
    %13 = vector.extract_strided_slice %2 {offsets = [0, 0], sizes = [28, 1], strides = [1, 1]} : vector<28x15xf32> to vector<28x1xf32>
    %14 = vector.extract_strided_slice %12 {offsets = [0, 0], sizes = [1, 512], strides = [1, 1]} : vector<1x526xf32> to vector<1x512xf32>
    %15 = vector.broadcast %13 : vector<28x1xf32> to vector<28x512xf32>
    %16 = vector.broadcast %14 : vector<1x512xf32> to vector<28x512xf32>
    %17 = arith.mulf %15, %16 : vector<28x512xf32>
    %18 = vector.extract_strided_slice %2 {offsets = [0, 1], sizes = [28, 1], strides = [1, 1]} : vector<28x15xf32> to vector<28x1xf32>
    %19 = vector.extract_strided_slice %12 {offsets = [0, 1], sizes = [1, 512], strides = [1, 1]} : vector<1x526xf32> to vector<1x512xf32>
    %20 = vector.broadcast %18 : vector<28x1xf32> to vector<28x512xf32>
    %21 = vector.broadcast %19 : vector<1x512xf32> to vector<28x512xf32>
    %22 = arith.mulf %20, %21 : vector<28x512xf32>
    %23 = arith.addf %17, %22 : vector<28x512xf32>
    %24 = vector.extract_strided_slice %2 {offsets = [0, 2], sizes = [28, 1], strides = [1, 1]} : vector<28x15xf32> to vector<28x1xf32>
    %25 = vector.extract_strided_slice %12 {offsets = [0, 2], sizes = [1, 512], strides = [1, 1]} : vector<1x526xf32> to vector<1x512xf32>
    %26 = vector.broadcast %24 : vector<28x1xf32> to vector<28x512xf32>
    %27 = vector.broadcast %25 : vector<1x512xf32> to vector<28x512xf32>
    %28 = arith.mulf %26, %27 : vector<28x512xf32>
    %29 = arith.addf %23, %28 : vector<28x512xf32>
    %30 = vector.extract_strided_slice %2 {offsets = [0, 3], sizes = [28, 1], strides = [1, 1]} : vector<28x15xf32> to vector<28x1xf32>
    %31 = vector.extract_strided_slice %12 {offsets = [0, 3], sizes = [1, 512], strides = [1, 1]} : vector<1x526xf32> to vector<1x512xf32>
    %32 = vector.broadcast %30 : vector<28x1xf32> to vector<28x512xf32>
    %33 = vector.broadcast %31 : vector<1x512xf32> to vector<28x512xf32>
    %34 = arith.mulf %32, %33 : vector<28x512xf32>
    %35 = arith.addf %29, %34 : vector<28x512xf32>
    %36 = vector.extract_strided_slice %2 {offsets = [0, 4], sizes = [28, 1], strides = [1, 1]} : vector<28x15xf32> to vector<28x1xf32>
    %37 = vector.extract_strided_slice %12 {offsets = [0, 4], sizes = [1, 512], strides = [1, 1]} : vector<1x526xf32> to vector<1x512xf32>
    %38 = vector.broadcast %36 : vector<28x1xf32> to vector<28x512xf32>
    %39 = vector.broadcast %37 : vector<1x512xf32> to vector<28x512xf32>
    %40 = arith.mulf %38, %39 : vector<28x512xf32>
    %41 = arith.addf %35, %40 : vector<28x512xf32>
    %42 = vector.extract_strided_slice %2 {offsets = [0, 5], sizes = [28, 1], strides = [1, 1]} : vector<28x15xf32> to vector<28x1xf32>
    %43 = vector.extract_strided_slice %12 {offsets = [0, 5], sizes = [1, 512], strides = [1, 1]} : vector<1x526xf32> to vector<1x512xf32>
    %44 = vector.broadcast %42 : vector<28x1xf32> to vector<28x512xf32>
    %45 = vector.broadcast %43 : vector<1x512xf32> to vector<28x512xf32>
    %46 = arith.mulf %44, %45 : vector<28x512xf32>
    %47 = arith.addf %41, %46 : vector<28x512xf32>
    %48 = vector.extract_strided_slice %2 {offsets = [0, 6], sizes = [28, 1], strides = [1, 1]} : vector<28x15xf32> to vector<28x1xf32>
    %49 = vector.extract_strided_slice %12 {offsets = [0, 6], sizes = [1, 512], strides = [1, 1]} : vector<1x526xf32> to vector<1x512xf32>
    %50 = vector.broadcast %48 : vector<28x1xf32> to vector<28x512xf32>
    %51 = vector.broadcast %49 : vector<1x512xf32> to vector<28x512xf32>
    %52 = arith.mulf %50, %51 : vector<28x512xf32>
    %53 = arith.addf %47, %52 : vector<28x512xf32>
    %54 = vector.extract_strided_slice %2 {offsets = [0, 7], sizes = [28, 1], strides = [1, 1]} : vector<28x15xf32> to vector<28x1xf32>
    %55 = vector.extract_strided_slice %12 {offsets = [0, 7], sizes = [1, 512], strides = [1, 1]} : vector<1x526xf32> to vector<1x512xf32>
    %56 = vector.broadcast %54 : vector<28x1xf32> to vector<28x512xf32>
    %57 = vector.broadcast %55 : vector<1x512xf32> to vector<28x512xf32>
    %58 = arith.mulf %56, %57 : vector<28x512xf32>
    %59 = arith.addf %53, %58 : vector<28x512xf32>
    %60 = vector.extract_strided_slice %2 {offsets = [0, 8], sizes = [28, 1], strides = [1, 1]} : vector<28x15xf32> to vector<28x1xf32>
    %61 = vector.extract_strided_slice %12 {offsets = [0, 8], sizes = [1, 512], strides = [1, 1]} : vector<1x526xf32> to vector<1x512xf32>
    %62 = vector.broadcast %60 : vector<28x1xf32> to vector<28x512xf32>
    %63 = vector.broadcast %61 : vector<1x512xf32> to vector<28x512xf32>
    %64 = arith.mulf %62, %63 : vector<28x512xf32>
    %65 = arith.addf %59, %64 : vector<28x512xf32>
    %66 = vector.extract_strided_slice %2 {offsets = [0, 9], sizes = [28, 1], strides = [1, 1]} : vector<28x15xf32> to vector<28x1xf32>
    %67 = vector.extract_strided_slice %12 {offsets = [0, 9], sizes = [1, 512], strides = [1, 1]} : vector<1x526xf32> to vector<1x512xf32>
    %68 = vector.broadcast %66 : vector<28x1xf32> to vector<28x512xf32>
    %69 = vector.broadcast %67 : vector<1x512xf32> to vector<28x512xf32>
    %70 = arith.mulf %68, %69 : vector<28x512xf32>
    %71 = arith.addf %65, %70 : vector<28x512xf32>
    %72 = vector.extract_strided_slice %2 {offsets = [0, 10], sizes = [28, 1], strides = [1, 1]} : vector<28x15xf32> to vector<28x1xf32>
    %73 = vector.extract_strided_slice %12 {offsets = [0, 10], sizes = [1, 512], strides = [1, 1]} : vector<1x526xf32> to vector<1x512xf32>
    %74 = vector.broadcast %72 : vector<28x1xf32> to vector<28x512xf32>
    %75 = vector.broadcast %73 : vector<1x512xf32> to vector<28x512xf32>
    %76 = arith.mulf %74, %75 : vector<28x512xf32>
    %77 = arith.addf %71, %76 : vector<28x512xf32>
    %78 = vector.extract_strided_slice %2 {offsets = [0, 11], sizes = [28, 1], strides = [1, 1]} : vector<28x15xf32> to vector<28x1xf32>
    %79 = vector.extract_strided_slice %12 {offsets = [0, 11], sizes = [1, 512], strides = [1, 1]} : vector<1x526xf32> to vector<1x512xf32>
    %80 = vector.broadcast %78 : vector<28x1xf32> to vector<28x512xf32>
    %81 = vector.broadcast %79 : vector<1x512xf32> to vector<28x512xf32>
    %82 = arith.mulf %80, %81 : vector<28x512xf32>
    %83 = arith.addf %77, %82 : vector<28x512xf32>
    %84 = vector.extract_strided_slice %2 {offsets = [0, 12], sizes = [28, 1], strides = [1, 1]} : vector<28x15xf32> to vector<28x1xf32>
    %85 = vector.extract_strided_slice %12 {offsets = [0, 12], sizes = [1, 512], strides = [1, 1]} : vector<1x526xf32> to vector<1x512xf32>
    %86 = vector.broadcast %84 : vector<28x1xf32> to vector<28x512xf32>
    %87 = vector.broadcast %85 : vector<1x512xf32> to vector<28x512xf32>
    %88 = arith.mulf %86, %87 : vector<28x512xf32>
    %89 = arith.addf %83, %88 : vector<28x512xf32>
    %90 = vector.extract_strided_slice %2 {offsets = [0, 13], sizes = [28, 1], strides = [1, 1]} : vector<28x15xf32> to vector<28x1xf32>
    %91 = vector.extract_strided_slice %12 {offsets = [0, 13], sizes = [1, 512], strides = [1, 1]} : vector<1x526xf32> to vector<1x512xf32>
    %92 = vector.broadcast %90 : vector<28x1xf32> to vector<28x512xf32>
    %93 = vector.broadcast %91 : vector<1x512xf32> to vector<28x512xf32>
    %94 = arith.mulf %92, %93 : vector<28x512xf32>
    %95 = arith.addf %89, %94 : vector<28x512xf32>
    %96 = vector.extract_strided_slice %2 {offsets = [0, 14], sizes = [28, 1], strides = [1, 1]} : vector<28x15xf32> to vector<28x1xf32>
    %97 = vector.extract_strided_slice %12 {offsets = [0, 14], sizes = [1, 512], strides = [1, 1]} : vector<1x526xf32> to vector<1x512xf32>
    %98 = vector.broadcast %96 : vector<28x1xf32> to vector<28x512xf32>
    %99 = vector.broadcast %97 : vector<1x512xf32> to vector<28x512xf32>
    %100 = arith.mulf %98, %99 : vector<28x512xf32>
    %101 = arith.addf %95, %100 : vector<28x512xf32>
    %102 = vector.broadcast %4 : vector<28x1xf32> to vector<28x512xf32>
    %103 = arith.addf %101, %102 : vector<28x512xf32>
    %cst = arith.constant 0.000000e+00 : f32
    %104 = vector.broadcast %cst : f32 to vector<28x512xf32>
    %105 = arith.maximumf %103, %104 : vector<28x512xf32>
    %106 = vector.extract_strided_slice %12 {offsets = [0, 7], sizes = [1, 512], strides = [1, 1]} : vector<1x526xf32> to vector<1x512xf32>
    %107 = vector.broadcast %106 : vector<1x512xf32> to vector<28x512xf32>
    %108 = vector.broadcast %5 : vector<28x1xf32> to vector<28x512xf32>
    %109 = arith.mulf %107, %108 : vector<28x512xf32>
    %110 = vector.broadcast %6 : vector<28x1xf32> to vector<28x512xf32>
    %111 = arith.addf %109, %110 : vector<28x512xf32>
    %cst_5 = arith.constant 0.000000e+00 : f32
    %112 = vector.broadcast %cst_5 : f32 to vector<28x512xf32>
    %113 = arith.maximumf %111, %112 : vector<28x512xf32>
    %114 = vector.broadcast %7 : vector<28x1xf32> to vector<28x512xf32>
    %115 = arith.mulf %105, %114 : vector<28x512xf32>
    %116 = vector.broadcast %8 : vector<28x1xf32> to vector<28x512xf32>
    %117 = arith.addf %115, %116 : vector<28x512xf32>
    %118 = arith.addf %117, %113 : vector<28x512xf32>
    %cst_6 = arith.constant 0.000000e+00 : f32
    %119 = vector.broadcast %cst_6 : f32 to vector<28x512xf32>
    %120 = arith.maximumf %118, %119 : vector<28x512xf32>
    %121 = vector.broadcast %7 : vector<28x1xf32> to vector<28x512xf32>
    %122 = arith.mulf %120, %121 : vector<28x512xf32>
    %123 = vector.broadcast %8 : vector<28x1xf32> to vector<28x512xf32>
    %124 = arith.addf %122, %123 : vector<28x512xf32>
    %c0_7 = arith.constant 0 : index
    %c0_8 = arith.constant 0 : index
    %c0_9 = arith.constant 0 : index
    %125 = vector.load %arg5[%c0_7, %c0_8, %c0_9] : memref<1x28x1024xf32, #tpu.memory_space<vmem>>, vector<1x28x512xf32>
    %126 = vector.shape_cast %125 : vector<1x28x512xf32> to vector<28x512xf32>
    %127 = vector.shape_cast %124 : vector<28x512xf32> to vector<1x28x512xf32>
    tpu.vector_store %arg5[%c0_7, %c0_8, %c0_9], %127 {strides = array<i32>} : memref<1x28x1024xf32, #tpu.memory_space<vmem>>, vector<1x28x512xf32>,
    %c512_i32 = arith.constant 512 : i32
    %128 = arith.addi %1, %c512_i32 : i32
    %c0_10 = arith.constant 0 : index
    %c0_11 = arith.constant 0 : index
    %129 = arith.index_cast %128 : i32 to index
    %130 = vector.load %arg2[%c0_10, %c0_11, %129] : memref<1x1x1152xf32, #tpu.memory_space<vmem>>, vector<1x1x526xf32>
    %131 = vector.shape_cast %130 : vector<1x1x526xf32> to vector<1x526xf32>
    %132 = vector.extract_strided_slice %2 {offsets = [0, 0], sizes = [28, 1], strides = [1, 1]} : vector<28x15xf32> to vector<28x1xf32>
    %133 = vector.extract_strided_slice %131 {offsets = [0, 0], sizes = [1, 512], strides = [1, 1]} : vector<1x526xf32> to vector<1x512xf32>
    %134 = vector.broadcast %132 : vector<28x1xf32> to vector<28x512xf32>
    %135 = vector.broadcast %133 : vector<1x512xf32> to vector<28x512xf32>
    %136 = arith.mulf %134, %135 : vector<28x512xf32>
    %137 = vector.extract_strided_slice %2 {offsets = [0, 1], sizes = [28, 1], strides = [1, 1]} : vector<28x15xf32> to vector<28x1xf32>
    %138 = vector.extract_strided_slice %131 {offsets = [0, 1], sizes = [1, 512], strides = [1, 1]} : vector<1x526xf32> to vector<1x512xf32>
    %139 = vector.broadcast %137 : vector<28x1xf32> to vector<28x512xf32>
    %140 = vector.broadcast %138 : vector<1x512xf32> to vector<28x512xf32>
    %141 = arith.mulf %139, %140 : vector<28x512xf32>
    %142 = arith.addf %136, %141 : vector<28x512xf32>
    %143 = vector.extract_strided_slice %2 {offsets = [0, 2], sizes = [28, 1], strides = [1, 1]} : vector<28x15xf32> to vector<28x1xf32>
    %144 = vector.extract_strided_slice %131 {offsets = [0, 2], sizes = [1, 512], strides = [1, 1]} : vector<1x526xf32> to vector<1x512xf32>
    %145 = vector.broadcast %143 : vector<28x1xf32> to vector<28x512xf32>
    %146 = vector.broadcast %144 : vector<1x512xf32> to vector<28x512xf32>
    %147 = arith.mulf %145, %146 : vector<28x512xf32>
    %148 = arith.addf %142, %147 : vector<28x512xf32>
    %149 = vector.extract_strided_slice %2 {offsets = [0, 3], sizes = [28, 1], strides = [1, 1]} : vector<28x15xf32> to vector<28x1xf32>
    %150 = vector.extract_strided_slice %131 {offsets = [0, 3], sizes = [1, 512], strides = [1, 1]} : vector<1x526xf32> to vector<1x512xf32>
    %151 = vector.broadcast %149 : vector<28x1xf32> to vector<28x512xf32>
    %152 = vector.broadcast %150 : vector<1x512xf32> to vector<28x512xf32>
    %153 = arith.mulf %151, %152 : vector<28x512xf32>
    %154 = arith.addf %148, %153 : vector<28x512xf32>
    %155 = vector.extract_strided_slice %2 {offsets = [0, 4], sizes = [28, 1], strides = [1, 1]} : vector<28x15xf32> to vector<28x1xf32>
    %156 = vector.extract_strided_slice %131 {offsets = [0, 4], sizes = [1, 512], strides = [1, 1]} : vector<1x526xf32> to vector<1x512xf32>
    %157 = vector.broadcast %155 : vector<28x1xf32> to vector<28x512xf32>
    %158 = vector.broadcast %156 : vector<1x512xf32> to vector<28x512xf32>
    %159 = arith.mulf %157, %158 : vector<28x512xf32>
    %160 = arith.addf %154, %159 : vector<28x512xf32>
    %161 = vector.extract_strided_slice %2 {offsets = [0, 5], sizes = [28, 1], strides = [1, 1]} : vector<28x15xf32> to vector<28x1xf32>
    %162 = vector.extract_strided_slice %131 {offsets = [0, 5], sizes = [1, 512], strides = [1, 1]} : vector<1x526xf32> to vector<1x512xf32>
    %163 = vector.broadcast %161 : vector<28x1xf32> to vector<28x512xf32>
    %164 = vector.broadcast %162 : vector<1x512xf32> to vector<28x512xf32>
    %165 = arith.mulf %163, %164 : vector<28x512xf32>
    %166 = arith.addf %160, %165 : vector<28x512xf32>
    %167 = vector.extract_strided_slice %2 {offsets = [0, 6], sizes = [28, 1], strides = [1, 1]} : vector<28x15xf32> to vector<28x1xf32>
    %168 = vector.extract_strided_slice %131 {offsets = [0, 6], sizes = [1, 512], strides = [1, 1]} : vector<1x526xf32> to vector<1x512xf32>
    %169 = vector.broadcast %167 : vector<28x1xf32> to vector<28x512xf32>
    %170 = vector.broadcast %168 : vector<1x512xf32> to vector<28x512xf32>
    %171 = arith.mulf %169, %170 : vector<28x512xf32>
    %172 = arith.addf %166, %171 : vector<28x512xf32>
    %173 = vector.extract_strided_slice %2 {offsets = [0, 7], sizes = [28, 1], strides = [1, 1]} : vector<28x15xf32> to vector<28x1xf32>
    %174 = vector.extract_strided_slice %131 {offsets = [0, 7], sizes = [1, 512], strides = [1, 1]} : vector<1x526xf32> to vector<1x512xf32>
    %175 = vector.broadcast %173 : vector<28x1xf32> to vector<28x512xf32>
    %176 = vector.broadcast %174 : vector<1x512xf32> to vector<28x512xf32>
    %177 = arith.mulf %175, %176 : vector<28x512xf32>
    %178 = arith.addf %172, %177 : vector<28x512xf32>
    %179 = vector.extract_strided_slice %2 {offsets = [0, 8], sizes = [28, 1], strides = [1, 1]} : vector<28x15xf32> to vector<28x1xf32>
    %180 = vector.extract_strided_slice %131 {offsets = [0, 8], sizes = [1, 512], strides = [1, 1]} : vector<1x526xf32> to vector<1x512xf32>
    %181 = vector.broadcast %179 : vector<28x1xf32> to vector<28x512xf32>
    %182 = vector.broadcast %180 : vector<1x512xf32> to vector<28x512xf32>
    %183 = arith.mulf %181, %182 : vector<28x512xf32>
    %184 = arith.addf %178, %183 : vector<28x512xf32>
    %185 = vector.extract_strided_slice %2 {offsets = [0, 9], sizes = [28, 1], strides = [1, 1]} : vector<28x15xf32> to vector<28x1xf32>
    %186 = vector.extract_strided_slice %131 {offsets = [0, 9], sizes = [1, 512], strides = [1, 1]} : vector<1x526xf32> to vector<1x512xf32>
    %187 = vector.broadcast %185 : vector<28x1xf32> to vector<28x512xf32>
    %188 = vector.broadcast %186 : vector<1x512xf32> to vector<28x512xf32>
    %189 = arith.mulf %187, %188 : vector<28x512xf32>
    %190 = arith.addf %184, %189 : vector<28x512xf32>
    %191 = vector.extract_strided_slice %2 {offsets = [0, 10], sizes = [28, 1], strides = [1, 1]} : vector<28x15xf32> to vector<28x1xf32>
    %192 = vector.extract_strided_slice %131 {offsets = [0, 10], sizes = [1, 512], strides = [1, 1]} : vector<1x526xf32> to vector<1x512xf32>
    %193 = vector.broadcast %191 : vector<28x1xf32> to vector<28x512xf32>
    %194 = vector.broadcast %192 : vector<1x512xf32> to vector<28x512xf32>
    %195 = arith.mulf %193, %194 : vector<28x512xf32>
    %196 = arith.addf %190, %195 : vector<28x512xf32>
    %197 = vector.extract_strided_slice %2 {offsets = [0, 11], sizes = [28, 1], strides = [1, 1]} : vector<28x15xf32> to vector<28x1xf32>
    %198 = vector.extract_strided_slice %131 {offsets = [0, 11], sizes = [1, 512], strides = [1, 1]} : vector<1x526xf32> to vector<1x512xf32>
    %199 = vector.broadcast %197 : vector<28x1xf32> to vector<28x512xf32>
    %200 = vector.broadcast %198 : vector<1x512xf32> to vector<28x512xf32>
    %201 = arith.mulf %199, %200 : vector<28x512xf32>
    %202 = arith.addf %196, %201 : vector<28x512xf32>
    %203 = vector.extract_strided_slice %2 {offsets = [0, 12], sizes = [28, 1], strides = [1, 1]} : vector<28x15xf32> to vector<28x1xf32>
    %204 = vector.extract_strided_slice %131 {offsets = [0, 12], sizes = [1, 512], strides = [1, 1]} : vector<1x526xf32> to vector<1x512xf32>
    %205 = vector.broadcast %203 : vector<28x1xf32> to vector<28x512xf32>
    %206 = vector.broadcast %204 : vector<1x512xf32> to vector<28x512xf32>
    %207 = arith.mulf %205, %206 : vector<28x512xf32>
    %208 = arith.addf %202, %207 : vector<28x512xf32>
    %209 = vector.extract_strided_slice %2 {offsets = [0, 13], sizes = [28, 1], strides = [1, 1]} : vector<28x15xf32> to vector<28x1xf32>
    %210 = vector.extract_strided_slice %131 {offsets = [0, 13], sizes = [1, 512], strides = [1, 1]} : vector<1x526xf32> to vector<1x512xf32>
    %211 = vector.broadcast %209 : vector<28x1xf32> to vector<28x512xf32>
    %212 = vector.broadcast %210 : vector<1x512xf32> to vector<28x512xf32>
    %213 = arith.mulf %211, %212 : vector<28x512xf32>
    %214 = arith.addf %208, %213 : vector<28x512xf32>
    %215 = vector.extract_strided_slice %2 {offsets = [0, 14], sizes = [28, 1], strides = [1, 1]} : vector<28x15xf32> to vector<28x1xf32>
    %216 = vector.extract_strided_slice %131 {offsets = [0, 14], sizes = [1, 512], strides = [1, 1]} : vector<1x526xf32> to vector<1x512xf32>
    %217 = vector.broadcast %215 : vector<28x1xf32> to vector<28x512xf32>
    %218 = vector.broadcast %216 : vector<1x512xf32> to vector<28x512xf32>
    %219 = arith.mulf %217, %218 : vector<28x512xf32>
    %220 = arith.addf %214, %219 : vector<28x512xf32>
    %221 = vector.broadcast %4 : vector<28x1xf32> to vector<28x512xf32>
    %222 = arith.addf %220, %221 : vector<28x512xf32>
    %cst_12 = arith.constant 0.000000e+00 : f32
    %223 = vector.broadcast %cst_12 : f32 to vector<28x512xf32>
    %224 = arith.maximumf %222, %223 : vector<28x512xf32>
    %225 = vector.extract_strided_slice %131 {offsets = [0, 7], sizes = [1, 512], strides = [1, 1]} : vector<1x526xf32> to vector<1x512xf32>
    %226 = vector.broadcast %225 : vector<1x512xf32> to vector<28x512xf32>
    %227 = vector.broadcast %5 : vector<28x1xf32> to vector<28x512xf32>
    %228 = arith.mulf %226, %227 : vector<28x512xf32>
    %229 = vector.broadcast %6 : vector<28x1xf32> to vector<28x512xf32>
    %230 = arith.addf %228, %229 : vector<28x512xf32>
    %cst_13 = arith.constant 0.000000e+00 : f32
    %231 = vector.broadcast %cst_13 : f32 to vector<28x512xf32>
    %232 = arith.maximumf %230, %231 : vector<28x512xf32>
    %233 = vector.broadcast %7 : vector<28x1xf32> to vector<28x512xf32>
    %234 = arith.mulf %224, %233 : vector<28x512xf32>
    %235 = vector.broadcast %8 : vector<28x1xf32> to vector<28x512xf32>
    %236 = arith.addf %234, %235 : vector<28x512xf32>
    %237 = arith.addf %236, %232 : vector<28x512xf32>
    %cst_14 = arith.constant 0.000000e+00 : f32
    %238 = vector.broadcast %cst_14 : f32 to vector<28x512xf32>
    %239 = arith.maximumf %237, %238 : vector<28x512xf32>
    %240 = vector.broadcast %7 : vector<28x1xf32> to vector<28x512xf32>
    %241 = arith.mulf %239, %240 : vector<28x512xf32>
    %242 = vector.broadcast %8 : vector<28x1xf32> to vector<28x512xf32>
    %243 = arith.addf %241, %242 : vector<28x512xf32>
    %c0_15 = arith.constant 0 : index
    %c0_16 = arith.constant 0 : index
    %c512 = arith.constant 512 : index
    %244 = vector.load %arg5[%c0_15, %c0_16, %c512] : memref<1x28x1024xf32, #tpu.memory_space<vmem>>, vector<1x28x512xf32>
    %245 = vector.shape_cast %244 : vector<1x28x512xf32> to vector<28x512xf32>
    %246 = vector.shape_cast %243 : vector<28x512xf32> to vector<1x28x512xf32>
    tpu.vector_store %arg5[%c0_15, %c0_16, %c512], %246 {strides = array<i32>} : memref<1x28x1024xf32, #tpu.memory_space<vmem>>, vector<1x28x512xf32>,
    return
  }
  func.func @transform_0(%arg0: i32, %arg1: i32) -> (i32, i32, i32) {
    %c0_i32 = arith.constant 0 : i32
    %c0_i32_0 = arith.constant 0 : i32
    %c0_i32_1 = arith.constant 0 : i32
    return %arg0, %c0_i32, %c0_i32_0 : i32, i32, i32
  }
  func.func @transform_1(%arg0: i32, %arg1: i32) -> (i32, i32) {
    %c0_i32 = arith.constant 0 : i32
    %c0_i32_0 = arith.constant 0 : i32
    %c0_i32_1 = arith.constant 0 : i32
    return %c0_i32, %c0_i32_0 : i32, i32
  }
  func.func @transform_2(%arg0: i32, %arg1: i32) -> (i32, i32) {
    %c0_i32 = arith.constant 0 : i32
    %c0_i32_0 = arith.constant 0 : i32
    %c0_i32_1 = arith.constant 0 : i32
    return %c0_i32, %c0_i32_0 : i32, i32
  }
  func.func @transform_3(%arg0: i32, %arg1: i32) -> (i32, i32, i32) {
    %c0_i32 = arith.constant 0 : i32
    %c0_i32_0 = arith.constant 0 : i32
    return %arg0, %c0_i32, %arg1 : i32, i32, i32
  }
}

</mosaic_0001>

<llo_original>
// kernel: tpu_custom_call.1
$region0: #{tpu_custom_call.1}
  #allocation0 [shape = 'u32[]', space=smem, size = 0x4, offset = 0x4, fixed_abs, tag = 'smem constant byte address 0x4 - core index']
  #allocation1 [shape = 'u32[144,128]{1,0:T(1,128)}', space=vmem, size = 0x12000, scoped, tag = 'internal scratch']
  %s0 = inlined_call_operand.vmem [shape: f32[2,1,1152], index: 0, kind: input, shape index: {}]
  %s1 = inlined_call_operand.vmem [shape: f32[28,15], index: 1, kind: input, shape index: {}]
  %s2 = inlined_call_operand.vmem [shape: f32[28,8], index: 2, kind: input, shape index: {}]
  %s3 = inlined_call_operand.vmem [shape: f32[2,28,1024], index: 3, kind: output, shape index: {}]
  %s4 = sld [smem:[#allocation0]]
  $region45: #{tpu_custom_call.1} parent=0
    _
  %s6 = ssub.s32 1, %s4
  %s7 = scalar_select 0, %s6, %s4
  loop: start=0, step=1, limit=4
  $region2: #{tpu_custom_call.1} parent=0 // loop_pre_header
    _
  $region3: #{tpu_custom_call.1} parent=0 // loop_header
    %s9 = sphi 0, %s13
    %p10 = scmp.ge.s32.totalorder %s9, 4
    %s16 = sphi 0, %s28
    %s17 = sphi 0, %s24
    %s18 = sphi 0, %s16
    %s19 = sphi 0, %s17
    %s20 = sphi 0, %s18
    %s21 = sphi 0, %s19
    %s31 = sphi 0, %s33
    %s34 = sphi 0, %s31
    %s35 = sphi 0, %s34
    %s51 = sphi 0, %s35
    %s55 = sphi 0, %s55
    %s57 = sphi 0, %s55
    %s58 = sphi 0, %s57
    %s72 = sphi 0, %s58
    %s76 = sphi 0, %s76
    %s78 = sphi 0, %s76
    %s79 = sphi 0, %s78
    %s93 = sphi 0, %s79
    %s101 = sphi 0, %s103
    %s104 = sphi 0, %s101
    %s105 = sphi 0, %s104
    %s121 = sphi 0, %s105
  $region4: #{tpu_custom_call.1} parent=0 // loop_header_branch
    %12 = sbr.rel (%p10) target = $region8
  $region5: #{tpu_custom_call.1} parent=0 // loop_body
    %s14 = ssub.s32 %s9, 1
    %s15 = ssub.s32 %s9, 2
    %s22 = sadd.s32 1, %s17
    %p23 = scmp.ge.s32.totalorder %s22, 1
    %s24 = scalar_select %p23, 0, %s22
    %s25 = sadd.s32 1, %s16
    %s26 = scalar_select %p23, %s25, %s16
    %p27 = scmp.ge.s32.totalorder %s26, 2
    %s28 = scalar_select %p27, 0, %s26
    %s29 = ssub.s32 %s16, %s28
    %p30 = scmp.eq.s32.totalorder %s29, 0
    %s32 = sadd.s32 %s31, 1
    %s33 = scalar_select %p30, %s31, %s32
    %p36 = pneg %p30
    %p37 = scmp.eq.s32.totalorder %s9, 1
    %p38 = por %p36, %p37
    %p39 = scmp.ne.s32.totalorder %s31, %s34
    %p40 = scmp.eq.s32.totalorder %s9, 0
    %p41 = por %p39, %p40
    %p42 = scmp.ne.s32.totalorder %s31, %s34
    %p43 = scmp.eq.s32.totalorder %s14, 1
    %p44 = por %p42, %p43
    %p45 = scmp.ne.s32.totalorder %s34, %s35
    %p46 = scmp.eq.s32.totalorder %s14, 0
    %p47 = por %p45, %p46
    %p48 = scmp.ne.s32.totalorder %s34, %s35
    %p49 = scmp.eq.s32.totalorder %s15, 1
    %p50 = por %p48, %p49
    %p52 = scmp.ne.s32.totalorder %s35, %s51
    %p53 = scmp.eq.s32.totalorder %s15, 0
    %p54 = por %p52, %p53
    %s56 = sadd.s32 %s55, 1
    %p59 = scmp.eq.s32.totalorder %s9, 1
    %p60 = scmp.ne.s32.totalorder %s55, %s57
    %p61 = scmp.eq.s32.totalorder %s9, 0
    %p62 = por %p60, %p61
    %p63 = scmp.ne.s32.totalorder %s55, %s57
    %p64 = scmp.eq.s32.totalorder %s14, 1
    %p65 = por %p63, %p64
    %p66 = scmp.ne.s32.totalorder %s57, %s58
    %p67 = scmp.eq.s32.totalorder %s14, 0
    %p68 = por %p66, %p67
    %p69 = scmp.ne.s32.totalorder %s57, %s58
    %p70 = scmp.eq.s32.totalorder %s15, 1
    %p71 = por %p69, %p70
    %p73 = scmp.ne.s32.totalorder %s58, %s72
    %p74 = scmp.eq.s32.totalorder %s15, 0
    %p75 = por %p73, %p74
    %s77 = sadd.s32 %s76, 1
    %p80 = scmp.eq.s32.totalorder %s9, 1
    %p81 = scmp.ne.s32.totalorder %s76, %s78
    %p82 = scmp.eq.s32.totalorder %s9, 0
    %p83 = por %p81, %p82
    %p84 = scmp.ne.s32.totalorder %s76, %s78
    %p85 = scmp.eq.s32.totalorder %s14, 1
    %p86 = por %p84, %p85
    %p87 = scmp.ne.s32.totalorder %s78, %s79
    %p88 = scmp.eq.s32.totalorder %s14, 0
    %p89 = por %p87, %p88
    %p90 = scmp.ne.s32.totalorder %s78, %s79
    %p91 = scmp.eq.s32.totalorder %s15, 1
    %p92 = por %p90, %p91
    %p94 = scmp.ne.s32.totalorder %s79, %s93
    %p95 = scmp.eq.s32.totalorder %s15, 0
    %p96 = por %p94, %p95
    %s97 = ssub.s32 %s16, %s28
    %s98 = ssub.s32 %s17, %s24
    %s99 = sor.u32 %s97, %s98
    %p100 = scmp.eq.s32.totalorder %s99, 0
    %s102 = sadd.s32 %s101, 1
    %s103 = scalar_select %p100, %s101, %s102
    %p106 = pneg %p100
    %p107 = scmp.eq.s32.totalorder %s9, 1
    %p108 = por %p106, %p107
    %p109 = scmp.ne.s32.totalorder %s101, %s104
    %p110 = scmp.eq.s32.totalorder %s9, 0
    %p111 = por %p109, %p110
    %p112 = scmp.ne.s32.totalorder %s101, %s104
    %p113 = scmp.eq.s32.totalorder %s14, 1
    %p114 = por %p112, %p113
    %p115 = scmp.ne.s32.totalorder %s104, %s105
    %p116 = scmp.eq.s32.totalorder %s14, 0
    %p117 = por %p115, %p116
    %p118 = scmp.ne.s32.totalorder %s104, %s105
    %p119 = scmp.eq.s32.totalorder %s15, 1
    %p120 = por %p118, %p119
    %p122 = scmp.ne.s32.totalorder %s105, %s121
    %p123 = scmp.eq.s32.totalorder %s15, 0
    %p124 = por %p122, %p123
    %p125 = scmp.le.s32.totalorder 1, %s9
    %p126 = scmp.lt.s32.totalorder %s9, 3
    %p127 = pnand %p125, %p126
    %p128 = pneg %p127
    // Predicated region
    $region9: #{tpu_custom_call.1} parent=5 // pred_check
      _
    $region10: #{tpu_custom_call.1} parent=5 // pred_check_branch
      %130 = sbr.rel (%p127) target = $region12
    $region11: #{tpu_custom_call.1} parent=5 // pred_region
      %s131 = ssub.s32 %s9, 1
      // Predicated region
      $region13: #{tpu_custom_call.1} parent=11 // pred_check
        %p132 = pneg %p68
      $region14: #{tpu_custom_call.1} parent=11 // pred_check_branch
        %134 = sbr.rel (%p132) target = $region16
      $region15: #{tpu_custom_call.1} parent=11 // pred_region
        _
      $region16: #{tpu_custom_call.1} parent=11 // pred_fallthru
        _
      // Predicated region
      $region17: #{tpu_custom_call.1} parent=11 // pred_check
        %p135 = pneg %p89
      $region18: #{tpu_custom_call.1} parent=11 // pred_check_branch
        %137 = sbr.rel (%p135) target = $region20
      $region19: #{tpu_custom_call.1} parent=11 // pred_region
        _
      $region20: #{tpu_custom_call.1} parent=11 // pred_fallthru
        _
    $region12: #{tpu_custom_call.1} parent=5 // pred_fallthru
      _
    %p138 = scmp.lt.s32.totalorder %s9, 2
    // Predicated region
    $region21: #{tpu_custom_call.1} parent=5 // pred_check
      %p139 = pneg %p138
    $region22: #{tpu_custom_call.1} parent=5 // pred_check_branch
      %141 = sbr.rel (%p139) target = $region24
    $region23: #{tpu_custom_call.1} parent=5 // pred_region
      // Predicated region
      $region25: #{tpu_custom_call.1} parent=23 // pred_check
        %p142 = pneg %p41
      $region26: #{tpu_custom_call.1} parent=23 // pred_check_branch
        %144 = sbr.rel (%p142) target = $region28
      $region27: #{tpu_custom_call.1} parent=23 // pred_region
        %p145 = scmp.lt.s32.totalorder %s16, 1
        %s146 = scalar_select %p145, %s16, 1
        %s147 = smul.addr %s146, 9
        %s148 = scalar_lea.vmem %s0, %s147
      $region28: #{tpu_custom_call.1} parent=23 // pred_fallthru
        _
    $region24: #{tpu_custom_call.1} parent=5 // pred_fallthru
      _
    %p149 = scmp.le.s32.totalorder 1, %s9
    %p150 = scmp.lt.s32.totalorder %s9, 3
    %p151 = pnand %p149, %p150
    %p152 = pneg %p151
    // Predicated region
    $region29: #{tpu_custom_call.1} parent=5 // pred_check
      _
    $region30: #{tpu_custom_call.1} parent=5 // pred_check_branch
      %154 = sbr.rel (%p151) target = $region32
    $region31: #{tpu_custom_call.1} parent=5 // pred_region
      %s155 = ssub.s32 %s9, 1
      %p156 = scmp.lt.s32.totalorder %s18, 1
      %s157 = scalar_select %p156, %s18, 1
      %s158 = smul.addr %s157, 9
      %s159 = scalar_lea.vmem %s0, %s158
      %p160 = pneg %p47
      %p161 = pneg %p44
      %p162 = pneg %p68
      %p163 = pneg %p65
      %p164 = pneg %p89
      %p165 = pneg %p86
      %p166 = pneg %p117
      %p167 = pneg %p114
      %s168 = smul.u32 8, %s19
      %p169 = scmp.lt.s32.totalorder %s18, 1
      %s170 = scalar_select %p169, %s18, 1
      %p171 = scmp.lt.s32.totalorder %s168, 7
      %s172 = scalar_select %p171, %s168, 7
      %s173 = smul.addr %s170, 32
      %s174 = sadd.s32 %s172, %s173
      %s175 = smul.addr %s174, 8
      %s176 = scalar_lea.vmem %s3, %s175
      %p177 = scmp.lt.s32.totalorder %s18, 1
      %s178 = scalar_select %p177, %s18, 1
      %s179 = smul.addr %s178, 9
      %s180 = scalar_lea.vmem %s0, %s179
      %s181 = smul.u32 8, %s19
      %p182 = scmp.lt.s32.totalorder %s18, 1
      %s183 = scalar_select %p182, %s18, 1
      %p184 = scmp.lt.s32.totalorder %s181, 7
      %s185 = scalar_select %p184, %s181, 7
      %s186 = smul.addr %s183, 32
      %s187 = sadd.s32 %s185, %s186
      %s188 = smul.addr %s187, 8
      %s189 = scalar_lea.vmem %s3, %s188
      %s190 = smul.u32 8, %s19
      %s191 = smul.u32 %s19, 1024
      %v192 = vld [vmem:[%s1] sm:$0xff]
      %v193 = vld [vmem:[%s1 + $0x8] sm:$0xff]
      %v194 = vld [vmem:[%s1 + $0x10] sm:$0xff]
      %v195 = vld [vmem:[%s1 + $0x18] sm:$0xf]
      %v196 = vld [vmem:[%s2] sm:$0xff]
      %v197 = vld [vmem:[%s2 + $0x8] sm:$0xff]
      %v198 = vld [vmem:[%s2 + $0x10] sm:$0xff]
      %v199 = vld [vmem:[%s2 + $0x18] sm:$0xf]
      %s200 = sshra.s32 %s191, 7
      %s201 = sand.u32 %s191, 127
      %s202 = scalar_lea.vmem %s180, %s200
      %v203 = vld [vmem:[%s202] sm:$0x1f]
      %205 = vset.pattern.permute.xlu0 0
      %206 = vperm.xlu0 %205, %v192
      %v207 = vpop.permute.xlu0 %206
      %210 = vset.pattern.permute.xlu0 0
      %211 = vperm.xlu0 %210, %v193
      %v212 = vpop.permute.xlu0 %211
      %215 = vset.pattern.permute.xlu0 0
      %216 = vperm.xlu0 %215, %v194
      %v217 = vpop.permute.xlu0 %216
      %220 = vset.pattern.permute.xlu0 0
      %221 = vperm.xlu0 %220, %v195
      %v222 = vpop.permute.xlu0 %221
      %v225 = vlaneseq
      %v226 = vshrl.u32 %v225, 7
      %v227 = vsub.s32 0, %v226
      %v228 = vrot.slane %v203, %v227
      %v229 = vlaneseq
      %v230 = vshrl.u32 %v229, 7
      %v231 = vsub.s32 1, %v230
      %v232 = vrot.slane %v203, %v231
      %v233 = vlaneseq
      %v234 = vshrl.u32 %v233, 7
      %v235 = vsub.s32 2, %v234
      %v236 = vrot.slane %v203, %v235
      %v237 = vlaneseq
      %v238 = vshrl.u32 %v237, 7
      %v239 = vsub.s32 3, %v238
      %v240 = vrot.slane %v203, %v239
      %v245 = vmul.f32 %v207, %v228
      %v246 = vmul.f32 %v207, %v232
      %v247 = vmul.f32 %v207, %v236
      %v248 = vmul.f32 %v207, %v240
      %v249 = vmul.f32 %v212, %v228
      %v250 = vmul.f32 %v212, %v232
      %v251 = vmul.f32 %v212, %v236
      %v252 = vmul.f32 %v212, %v240
      %v253 = vmul.f32 %v217, %v228
      %v254 = vmul.f32 %v217, %v232
      %v255 = vmul.f32 %v217, %v236
      %v256 = vmul.f32 %v217, %v240
      %v257 = vmul.f32 %v222, %v228
      %v258 = vmul.f32 %v222, %v232
      %v259 = vmul.f32 %v222, %v236
      %v260 = vmul.f32 %v222, %v240
      %261 = vset.pattern.permute.xlu0 1
      %262 = vperm.xlu0 %261, %v192
      %v263 = vpop.permute.xlu0 %262
      %265 = vset.pattern.permute.xlu0 1
      %266 = vperm.xlu0 %265, %v193
      %v267 = vpop.permute.xlu0 %266
      %269 = vset.pattern.permute.xlu0 1
      %270 = vperm.xlu0 %269, %v194
      %v271 = vpop.permute.xlu0 %270
      %273 = vset.pattern.permute.xlu0 1
      %274 = vperm.xlu0 %273, %v195
      %v275 = vpop.permute.xlu0 %274
      %v277 = vlaneseq
      %v278 = vshrl.u32 %v277, 7
      %v279 = vsub.s32 4, %v278
      %v280 = vrot.slane %v203, %v279
      %v282 = vmul.f32 %v263, %v228
      %v283 = vmul.f32 %v263, %v232
      %v284 = vmul.f32 %v263, %v236
      %v285 = vmul.f32 %v263, %v240
      %v286 = vmul.f32 %v263, %v280
      %v287 = vmul.f32 %v267, %v228
      %v288 = vmul.f32 %v267, %v232
      %v289 = vmul.f32 %v267, %v236
      %v290 = vmul.f32 %v267, %v240
      %v291 = vmul.f32 %v267, %v280
      %v292 = vmul.f32 %v271, %v228
      %v293 = vmul.f32 %v271, %v232
      %v294 = vmul.f32 %v271, %v236
      %v295 = vmul.f32 %v271, %v240
      %v296 = vmul.f32 %v271, %v280
      %v297 = vmul.f32 %v275, %v228
      %v298 = vmul.f32 %v275, %v232
      %v299 = vmul.f32 %v275, %v236
      %v300 = vmul.f32 %v275, %v240
      %v301 = vmul.f32 %v275, %v280
      %322 = vrot.lane.b32.xlu0 %v282, 127
      %v323 = vpop.permute.xlu0 %322
      %324 = vrot.lane.b32.xlu0 %v283, 127
      %v325 = vpop.permute.xlu0 %324
      %326 = vrot.lane.b32.xlu0 %v284, 127
      %v327 = vpop.permute.xlu0 %326
      %328 = vrot.lane.b32.xlu0 %v285, 127
      %v329 = vpop.permute.xlu0 %328
      %330 = vrot.lane.b32.xlu0 %v286, 127
      %v331 = vpop.permute.xlu0 %330
      %332 = vrot.lane.b32.xlu0 %v287, 127
      %v333 = vpop.permute.xlu0 %332
      %334 = vrot.lane.b32.xlu0 %v288, 127
      %v335 = vpop.permute.xlu0 %334
      %336 = vrot.lane.b32.xlu0 %v289, 127
      %v337 = vpop.permute.xlu0 %336
      %338 = vrot.lane.b32.xlu0 %v290, 127
      %v339 = vpop.permute.xlu0 %338
      %340 = vrot.lane.b32.xlu0 %v291, 127
      %v341 = vpop.permute.xlu0 %340
      %342 = vrot.lane.b32.xlu0 %v292, 127
      %v343 = vpop.permute.xlu0 %342
      %344 = vrot.lane.b32.xlu0 %v293, 127
      %v345 = vpop.permute.xlu0 %344
      %346 = vrot.lane.b32.xlu0 %v294, 127
      %v347 = vpop.permute.xlu0 %346
      %348 = vrot.lane.b32.xlu0 %v295, 127
      %v349 = vpop.permute.xlu0 %348
      %350 = vrot.lane.b32.xlu0 %v296, 127
      %v351 = vpop.permute.xlu0 %350
      %352 = vrot.lane.b32.xlu0 %v297, 127
      %v353 = vpop.permute.xlu0 %352
      %354 = vrot.lane.b32.xlu0 %v298, 127
      %v355 = vpop.permute.xlu0 %354
      %356 = vrot.lane.b32.xlu0 %v299, 127
      %v357 = vpop.permute.xlu0 %356
      %358 = vrot.lane.b32.xlu0 %v300, 127
      %v359 = vpop.permute.xlu0 %358
      %360 = vrot.lane.b32.xlu0 %v301, 127
      %v361 = vpop.permute.xlu0 %360
      %vm362 = vcmask 1039360
      %v363 = vsel %vm362, %v323, %v325
      %v364 = vsel %vm362, %v325, %v327
      %v365 = vsel %vm362, %v327, %v329
      %v366 = vsel %vm362, %v329, %v331
      %v367 = vsel %vm362, %v333, %v335
      %v368 = vsel %vm362, %v335, %v337
      %v369 = vsel %vm362, %v337, %v339
      %v370 = vsel %vm362, %v339, %v341
      %v371 = vsel %vm362, %v343, %v345
      %v372 = vsel %vm362, %v345, %v347
      %v373 = vsel %vm362, %v347, %v349
      %v374 = vsel %vm362, %v349, %v351
      %v375 = vsel %vm362, %v353, %v355
      %v376 = vsel %vm362, %v355, %v357
      %v377 = vsel %vm362, %v357, %v359
      %v378 = vsel %vm362, %v359, %v361
      %v395 = vadd.f32 %v245, %v363
      %v396 = vadd.f32 %v246, %v364
      %v397 = vadd.f32 %v247, %v365
      %v398 = vadd.f32 %v248, %v366
      %v399 = vadd.f32 %v249, %v367
      %v400 = vadd.f32 %v250, %v368
      %v401 = vadd.f32 %v251, %v369
      %v402 = vadd.f32 %v252, %v370
      %v403 = vadd.f32 %v253, %v371
      %v404 = vadd.f32 %v254, %v372
      %v405 = vadd.f32 %v255, %v373
      %v406 = vadd.f32 %v256, %v374
      %v407 = vadd.f32 %v257, %v375
      %v408 = vadd.f32 %v258, %v376
      %v409 = vadd.f32 %v259, %v377
      %v410 = vadd.f32 %v260, %v378
      %411 = vset.pattern.permute.xlu0 2
      %412 = vperm.xlu0 %411, %v192
      %v413 = vpop.permute.xlu0 %412
      %415 = vset.pattern.permute.xlu0 2
      %416 = vperm.xlu0 %415, %v193
      %v417 = vpop.permute.xlu0 %416
      %419 = vset.pattern.permute.xlu0 2
      %420 = vperm.xlu0 %419, %v194
      %v421 = vpop.permute.xlu0 %420
      %423 = vset.pattern.permute.xlu0 2
      %424 = vperm.xlu0 %423, %v195
      %v425 = vpop.permute.xlu0 %424
      %v427 = vmul.f32 %v413, %v228
      %v428 = vmul.f32 %v413, %v232
      %v429 = vmul.f32 %v413, %v236
      %v430 = vmul.f32 %v413, %v240
      %v431 = vmul.f32 %v413, %v280
      %v432 = vmul.f32 %v417, %v228
      %v433 = vmul.f32 %v417, %v232
      %v434 = vmul.f32 %v417, %v236
      %v435 = vmul.f32 %v417, %v240
      %v436 = vmul.f32 %v417, %v280
      %v437 = vmul.f32 %v421, %v228
      %v438 = vmul.f32 %v421, %v232
      %v439 = vmul.f32 %v421, %v236
      %v440 = vmul.f32 %v421, %v240
      %v441 = vmul.f32 %v421, %v280
      %v442 = vmul.f32 %v425, %v228
      %v443 = vmul.f32 %v425, %v232
      %v444 = vmul.f32 %v425, %v236
      %v445 = vmul.f32 %v425, %v240
      %v446 = vmul.f32 %v425, %v280
      %467 = vrot.lane.b32.xlu0 %v427, 126
      %v468 = vpop.permute.xlu0 %467
      %469 = vrot.lane.b32.xlu0 %v428, 126
      %v470 = vpop.permute.xlu0 %469
      %471 = vrot.lane.b32.xlu0 %v429, 126
      %v472 = vpop.permute.xlu0 %471
      %473 = vrot.lane.b32.xlu0 %v430, 126
      %v474 = vpop.permute.xlu0 %473
      %475 = vrot.lane.b32.xlu0 %v431, 126
      %v476 = vpop.permute.xlu0 %475
      %477 = vrot.lane.b32.xlu0 %v432, 126
      %v478 = vpop.permute.xlu0 %477
      %479 = vrot.lane.b32.xlu0 %v433, 126
      %v480 = vpop.permute.xlu0 %479
      %481 = vrot.lane.b32.xlu0 %v434, 126
      %v482 = vpop.permute.xlu0 %481
      %483 = vrot.lane.b32.xlu0 %v435, 126
      %v484 = vpop.permute.xlu0 %483
      %485 = vrot.lane.b32.xlu0 %v436, 126
      %v486 = vpop.permute.xlu0 %485
      %487 = vrot.lane.b32.xlu0 %v437, 126
      %v488 = vpop.permute.xlu0 %487
      %489 = vrot.lane.b32.xlu0 %v438, 126
      %v490 = vpop.permute.xlu0 %489
      %491 = vrot.lane.b32.xlu0 %v439, 126
      %v492 = vpop.permute.xlu0 %491
      %493 = vrot.lane.b32.xlu0 %v440, 126
      %v494 = vpop.permute.xlu0 %493
      %495 = vrot.lane.b32.xlu0 %v441, 126
      %v496 = vpop.permute.xlu0 %495
      %497 = vrot.lane.b32.xlu0 %v442, 126
      %v498 = vpop.permute.xlu0 %497
      %499 = vrot.lane.b32.xlu0 %v443, 126
      %v500 = vpop.permute.xlu0 %499
      %501 = vrot.lane.b32.xlu0 %v444, 126
      %v502 = vpop.permute.xlu0 %501
      %503 = vrot.lane.b32.xlu0 %v445, 126
      %v504 = vpop.permute.xlu0 %503
      %505 = vrot.lane.b32.xlu0 %v446, 126
      %v506 = vpop.permute.xlu0 %505
      %vm507 = vcmask 1031168
      %v508 = vsel %vm507, %v468, %v470
      %v509 = vsel %vm507, %v470, %v472
      %v510 = vsel %vm507, %v472, %v474
      %v511 = vsel %vm507, %v474, %v476
      %v512 = vsel %vm507, %v478, %v480
      %v513 = vsel %vm507, %v480, %v482
      %v514 = vsel %vm507, %v482, %v484
      %v515 = vsel %vm507, %v484, %v486
      %v516 = vsel %vm507, %v488, %v490
      %v517 = vsel %vm507, %v490, %v492
      %v518 = vsel %vm507, %v492, %v494
      %v519 = vsel %vm507, %v494, %v496
      %v520 = vsel %vm507, %v498, %v500
      %v521 = vsel %vm507, %v500, %v502
      %v522 = vsel %vm507, %v502, %v504
      %v523 = vsel %vm507, %v504, %v506
      %v540 = vadd.f32 %v395, %v508
      %v541 = vadd.f32 %v396, %v509
      %v542 = vadd.f32 %v397, %v510
      %v543 = vadd.f32 %v398, %v511
      %v544 = vadd.f32 %v399, %v512
      %v545 = vadd.f32 %v400, %v513
      %v546 = vadd.f32 %v401, %v514
      %v547 = vadd.f32 %v402, %v515
      %v548 = vadd.f32 %v403, %v516
      %v549 = vadd.f32 %v404, %v517
      %v550 = vadd.f32 %v405, %v518
      %v551 = vadd.f32 %v406, %v519
      %v552 = vadd.f32 %v407, %v520
      %v553 = vadd.f32 %v408, %v521
      %v554 = vadd.f32 %v409, %v522
      %v555 = vadd.f32 %v410, %v523
      %556 = vset.pattern.permute.xlu0 3
      %557 = vperm.xlu0 %556, %v192
      %v558 = vpop.permute.xlu0 %557
      %560 = vset.pattern.permute.xlu0 3
      %561 = vperm.xlu0 %560, %v193
      %v562 = vpop.permute.xlu0 %561
      %564 = vset.pattern.permute.xlu0 3
      %565 = vperm.xlu0 %564, %v194
      %v566 = vpop.permute.xlu0 %565
      %568 = vset.pattern.permute.xlu0 3
      %569 = vperm.xlu0 %568, %v195
      %v570 = vpop.permute.xlu0 %569
      %v572 = vmul.f32 %v558, %v228
      %v573 = vmul.f32 %v558, %v232
      %v574 = vmul.f32 %v558, %v236
      %v575 = vmul.f32 %v558, %v240
      %v576 = vmul.f32 %v558, %v280
      %v577 = vmul.f32 %v562, %v228
      %v578 = vmul.f32 %v562, %v232
      %v579 = vmul.f32 %v562, %v236
      %v580 = vmul.f32 %v562, %v240
      %v581 = vmul.f32 %v562, %v280
      %v582 = vmul.f32 %v566, %v228
      %v583 = vmul.f32 %v566, %v232
      %v584 = vmul.f32 %v566, %v236
      %v585 = vmul.f32 %v566, %v240
      %v586 = vmul.f32 %v566, %v280
      %v587 = vmul.f32 %v570, %v228
      %v588 = vmul.f32 %v570, %v232
      %v589 = vmul.f32 %v570, %v236
      %v590 = vmul.f32 %v570, %v240
      %v591 = vmul.f32 %v570, %v280
      %612 = vrot.lane.b32.xlu0 %v572, 125
      %v613 = vpop.permute.xlu0 %612
      %614 = vrot.lane.b32.xlu0 %v573, 125
      %v615 = vpop.permute.xlu0 %614
      %616 = vrot.lane.b32.xlu0 %v574, 125
      %v617 = vpop.permute.xlu0 %616
      %618 = vrot.lane.b32.xlu0 %v575, 125
      %v619 = vpop.permute.xlu0 %618
      %620 = vrot.lane.b32.xlu0 %v576, 125
      %v621 = vpop.permute.xlu0 %620
      %622 = vrot.lane.b32.xlu0 %v577, 125
      %v623 = vpop.permute.xlu0 %622
      %624 = vrot.lane.b32.xlu0 %v578, 125
      %v625 = vpop.permute.xlu0 %624
      %626 = vrot.lane.b32.xlu0 %v579, 125
      %v627 = vpop.permute.xlu0 %626
      %628 = vrot.lane.b32.xlu0 %v580, 125
      %v629 = vpop.permute.xlu0 %628
      %630 = vrot.lane.b32.xlu0 %v581, 125
      %v631 = vpop.permute.xlu0 %630
      %632 = vrot.lane.b32.xlu0 %v582, 125
      %v633 = vpop.permute.xlu0 %632
      %634 = vrot.lane.b32.xlu0 %v583, 125
      %v635 = vpop.permute.xlu0 %634
      %636 = vrot.lane.b32.xlu0 %v584, 125
      %v637 = vpop.permute.xlu0 %636
      %638 = vrot.lane.b32.xlu0 %v585, 125
      %v639 = vpop.permute.xlu0 %638
      %640 = vrot.lane.b32.xlu0 %v586, 125
      %v641 = vpop.permute.xlu0 %640
      %642 = vrot.lane.b32.xlu0 %v587, 125
      %v643 = vpop.permute.xlu0 %642
      %644 = vrot.lane.b32.xlu0 %v588, 125
      %v645 = vpop.permute.xlu0 %644
      %646 = vrot.lane.b32.xlu0 %v589, 125
      %v647 = vpop.permute.xlu0 %646
      %648 = vrot.lane.b32.xlu0 %v590, 125
      %v649 = vpop.permute.xlu0 %648
      %650 = vrot.lane.b32.xlu0 %v591, 125
      %v651 = vpop.permute.xlu0 %650
      %vm652 = vcmask 1022976
      %v653 = vsel %vm652, %v613, %v615
      %v654 = vsel %vm652, %v615, %v617
      %v655 = vsel %vm652, %v617, %v619
      %v656 = vsel %vm652, %v619, %v621
      %v657 = vsel %vm652, %v623, %v625
      %v658 = vsel %vm652, %v625, %v627
      %v659 = vsel %vm652, %v627, %v629
      %v660 = vsel %vm652, %v629, %v631
      %v661 = vsel %vm652, %v633, %v635
      %v662 = vsel %vm652, %v635, %v637
      %v663 = vsel %vm652, %v637, %v639
      %v664 = vsel %vm652, %v639, %v641
      %v665 = vsel %vm652, %v643, %v645
      %v666 = vsel %vm652, %v645, %v647
      %v667 = vsel %vm652, %v647, %v649
      %v668 = vsel %vm652, %v649, %v651
      %v685 = vadd.f32 %v540, %v653
      %v686 = vadd.f32 %v541, %v654
      %v687 = vadd.f32 %v542, %v655
      %v688 = vadd.f32 %v543, %v656
      %v689 = vadd.f32 %v544, %v657
      %v690 = vadd.f32 %v545, %v658
      %v691 = vadd.f32 %v546, %v659
      %v692 = vadd.f32 %v547, %v660
      %v693 = vadd.f32 %v548, %v661
      %v694 = vadd.f32 %v549, %v662
      %v695 = vadd.f32 %v550, %v663
      %v696 = vadd.f32 %v551, %v664
      %v697 = vadd.f32 %v552, %v665
      %v698 = vadd.f32 %v553, %v666
      %v699 = vadd.f32 %v554, %v667
      %v700 = vadd.f32 %v555, %v668
      %701 = vset.pattern.permute.xlu0 4
      %702 = vperm.xlu0 %701, %v192
      %v703 = vpop.permute.xlu0 %702
      %705 = vset.pattern.permute.xlu0 4
      %706 = vperm.xlu0 %705, %v193
      %v707 = vpop.permute.xlu0 %706
      %709 = vset.pattern.permute.xlu0 4
      %710 = vperm.xlu0 %709, %v194
      %v711 = vpop.permute.xlu0 %710
      %713 = vset.pattern.permute.xlu0 4
      %714 = vperm.xlu0 %713, %v195
      %v715 = vpop.permute.xlu0 %714
      %v717 = vmul.f32 %v703, %v228
      %v718 = vmul.f32 %v703, %v232
      %v719 = vmul.f32 %v703, %v236
      %v720 = vmul.f32 %v703, %v240
      %v721 = vmul.f32 %v703, %v280
      %v722 = vmul.f32 %v707, %v228
      %v723 = vmul.f32 %v707, %v232
      %v724 = vmul.f32 %v707, %v236
      %v725 = vmul.f32 %v707, %v240
      %v726 = vmul.f32 %v707, %v280
      %v727 = vmul.f32 %v711, %v228
      %v728 = vmul.f32 %v711, %v232
      %v729 = vmul.f32 %v711, %v236
      %v730 = vmul.f32 %v711, %v240
      %v731 = vmul.f32 %v711, %v280
      %v732 = vmul.f32 %v715, %v228
      %v733 = vmul.f32 %v715, %v232
      %v734 = vmul.f32 %v715, %v236
      %v735 = vmul.f32 %v715, %v240
      %v736 = vmul.f32 %v715, %v280
      %757 = vrot.lane.b32.xlu0 %v717, 124
      %v758 = vpop.permute.xlu0 %757
      %759 = vrot.lane.b32.xlu0 %v718, 124
      %v760 = vpop.permute.xlu0 %759
      %761 = vrot.lane.b32.xlu0 %v719, 124
      %v762 = vpop.permute.xlu0 %761
      %763 = vrot.lane.b32.xlu0 %v720, 124
      %v764 = vpop.permute.xlu0 %763
      %765 = vrot.lane.b32.xlu0 %v721, 124
      %v766 = vpop.permute.xlu0 %765
      %767 = vrot.lane.b32.xlu0 %v722, 124
      %v768 = vpop.permute.xlu0 %767
      %769 = vrot.lane.b32.xlu0 %v723, 124
      %v770 = vpop.permute.xlu0 %769
      %771 = vrot.lane.b32.xlu0 %v724, 124
      %v772 = vpop.permute.xlu0 %771
      %773 = vrot.lane.b32.xlu0 %v725, 124
      %v774 = vpop.permute.xlu0 %773
      %775 = vrot.lane.b32.xlu0 %v726, 124
      %v776 = vpop.permute.xlu0 %775
      %777 = vrot.lane.b32.xlu0 %v727, 124
      %v778 = vpop.permute.xlu0 %777
      %779 = vrot.lane.b32.xlu0 %v728, 124
      %v780 = vpop.permute.xlu0 %779
      %781 = vrot.lane.b32.xlu0 %v729, 124
      %v782 = vpop.permute.xlu0 %781
      %783 = vrot.lane.b32.xlu0 %v730, 124
      %v784 = vpop.permute.xlu0 %783
      %785 = vrot.lane.b32.xlu0 %v731, 124
      %v786 = vpop.permute.xlu0 %785
      %787 = vrot.lane.b32.xlu0 %v732, 124
      %v788 = vpop.permute.xlu0 %787
      %789 = vrot.lane.b32.xlu0 %v733, 124
      %v790 = vpop.permute.xlu0 %789
      %791 = vrot.lane.b32.xlu0 %v734, 124
      %v792 = vpop.permute.xlu0 %791
      %793 = vrot.lane.b32.xlu0 %v735, 124
      %v794 = vpop.permute.xlu0 %793
      %795 = vrot.lane.b32.xlu0 %v736, 124
      %v796 = vpop.permute.xlu0 %795
      %vm797 = vcmask 1014784
      %v798 = vsel %vm797, %v758, %v760
      %v799 = vsel %vm797, %v760, %v762
      %v800 = vsel %vm797, %v762, %v764
      %v801 = vsel %vm797, %v764, %v766
      %v802 = vsel %vm797, %v768, %v770
      %v803 = vsel %vm797, %v770, %v772
      %v804 = vsel %vm797, %v772, %v774
      %v805 = vsel %vm797, %v774, %v776
      %v806 = vsel %vm797, %v778, %v780
      %v807 = vsel %vm797, %v780, %v782
      %v808 = vsel %vm797, %v782, %v784
      %v809 = vsel %vm797, %v784, %v786
      %v810 = vsel %vm797, %v788, %v790
      %v811 = vsel %vm797, %v790, %v792
      %v812 = vsel %vm797, %v792, %v794
      %v813 = vsel %vm797, %v794, %v796
      %v830 = vadd.f32 %v685, %v798
      %v831 = vadd.f32 %v686, %v799
      %v832 = vadd.f32 %v687, %v800
      %v833 = vadd.f32 %v688, %v801
      %v834 = vadd.f32 %v689, %v802
      %v835 = vadd.f32 %v690, %v803
      %v836 = vadd.f32 %v691, %v804
      %v837 = vadd.f32 %v692, %v805
      %v838 = vadd.f32 %v693, %v806
      %v839 = vadd.f32 %v694, %v807
      %v840 = vadd.f32 %v695, %v808
      %v841 = vadd.f32 %v696, %v809
      %v842 = vadd.f32 %v697, %v810
      %v843 = vadd.f32 %v698, %v811
      %v844 = vadd.f32 %v699, %v812
      %v845 = vadd.f32 %v700, %v813
      %846 = vset.pattern.permute.xlu0 5
      %847 = vperm.xlu0 %846, %v192
      %v848 = vpop.permute.xlu0 %847
      %850 = vset.pattern.permute.xlu0 5
      %851 = vperm.xlu0 %850, %v193
      %v852 = vpop.permute.xlu0 %851
      %854 = vset.pattern.permute.xlu0 5
      %855 = vperm.xlu0 %854, %v194
      %v856 = vpop.permute.xlu0 %855
      %858 = vset.pattern.permute.xlu0 5
      %859 = vperm.xlu0 %858, %v195
      %v860 = vpop.permute.xlu0 %859
      %v862 = vmul.f32 %v848, %v228
      %v863 = vmul.f32 %v848, %v232
      %v864 = vmul.f32 %v848, %v236
      %v865 = vmul.f32 %v848, %v240
      %v866 = vmul.f32 %v848, %v280
      %v867 = vmul.f32 %v852, %v228
      %v868 = vmul.f32 %v852, %v232
      %v869 = vmul.f32 %v852, %v236
      %v870 = vmul.f32 %v852, %v240
      %v871 = vmul.f32 %v852, %v280
      %v872 = vmul.f32 %v856, %v228
      %v873 = vmul.f32 %v856, %v232
      %v874 = vmul.f32 %v856, %v236
      %v875 = vmul.f32 %v856, %v240
      %v876 = vmul.f32 %v856, %v280
      %v877 = vmul.f32 %v860, %v228
      %v878 = vmul.f32 %v860, %v232
      %v879 = vmul.f32 %v860, %v236
      %v880 = vmul.f32 %v860, %v240
      %v881 = vmul.f32 %v860, %v280
      %902 = vrot.lane.b32.xlu0 %v862, 123
      %v903 = vpop.permute.xlu0 %902
      %904 = vrot.lane.b32.xlu0 %v863, 123
      %v905 = vpop.permute.xlu0 %904
      %906 = vrot.lane.b32.xlu0 %v864, 123
      %v907 = vpop.permute.xlu0 %906
      %908 = vrot.lane.b32.xlu0 %v865, 123
      %v909 = vpop.permute.xlu0 %908
      %910 = vrot.lane.b32.xlu0 %v866, 123
      %v911 = vpop.permute.xlu0 %910
      %912 = vrot.lane.b32.xlu0 %v867, 123
      %v913 = vpop.permute.xlu0 %912
      %914 = vrot.lane.b32.xlu0 %v868, 123
      %v915 = vpop.permute.xlu0 %914
      %916 = vrot.lane.b32.xlu0 %v869, 123
      %v917 = vpop.permute.xlu0 %916
      %918 = vrot.lane.b32.xlu0 %v870, 123
      %v919 = vpop.permute.xlu0 %918
      %920 = vrot.lane.b32.xlu0 %v871, 123
      %v921 = vpop.permute.xlu0 %920
      %922 = vrot.lane.b32.xlu0 %v872, 123
      %v923 = vpop.permute.xlu0 %922
      %924 = vrot.lane.b32.xlu0 %v873, 123
      %v925 = vpop.permute.xlu0 %924
      %926 = vrot.lane.b32.xlu0 %v874, 123
      %v927 = vpop.permute.xlu0 %926
      %928 = vrot.lane.b32.xlu0 %v875, 123
      %v929 = vpop.permute.xlu0 %928
      %930 = vrot.lane.b32.xlu0 %v876, 123
      %v931 = vpop.permute.xlu0 %930
      %932 = vrot.lane.b32.xlu0 %v877, 123
      %v933 = vpop.permute.xlu0 %932
      %934 = vrot.lane.b32.xlu0 %v878, 123
      %v935 = vpop.permute.xlu0 %934
      %936 = vrot.lane.b32.xlu0 %v879, 123
      %v937 = vpop.permute.xlu0 %936
      %938 = vrot.lane.b32.xlu0 %v880, 123
      %v939 = vpop.permute.xlu0 %938
      %940 = vrot.lane.b32.xlu0 %v881, 123
      %v941 = vpop.permute.xlu0 %940
      %vm942 = vcmask 1006592
      %v943 = vsel %vm942, %v903, %v905
      %v944 = vsel %vm942, %v905, %v907
      %v945 = vsel %vm942, %v907, %v909
      %v946 = vsel %vm942, %v909, %v911
      %v947 = vsel %vm942, %v913, %v915
      %v948 = vsel %vm942, %v915, %v917
      %v949 = vsel %vm942, %v917, %v919
      %v950 = vsel %vm942, %v919, %v921
      %v951 = vsel %vm942, %v923, %v925
      %v952 = vsel %vm942, %v925, %v927
      %v953 = vsel %vm942, %v927, %v929
      %v954 = vsel %vm942, %v929, %v931
      %v955 = vsel %vm942, %v933, %v935
      %v956 = vsel %vm942, %v935, %v937
      %v957 = vsel %vm942, %v937, %v939
      %v958 = vsel %vm942, %v939, %v941
      %v975 = vadd.f32 %v830, %v943
      %v976 = vadd.f32 %v831, %v944
      %v977 = vadd.f32 %v832, %v945
      %v978 = vadd.f32 %v833, %v946
      %v979 = vadd.f32 %v834, %v947
      %v980 = vadd.f32 %v835, %v948
      %v981 = vadd.f32 %v836, %v949
      %v982 = vadd.f32 %v837, %v950
      %v983 = vadd.f32 %v838, %v951
      %v984 = vadd.f32 %v839, %v952
      %v985 = vadd.f32 %v840, %v953
      %v986 = vadd.f32 %v841, %v954
      %v987 = vadd.f32 %v842, %v955
      %v988 = vadd.f32 %v843, %v956
      %v989 = vadd.f32 %v844, %v957
      %v990 = vadd.f32 %v845, %v958
      %991 = vset.pattern.permute.xlu0 6
      %992 = vperm.xlu0 %991, %v192
      %v993 = vpop.permute.xlu0 %992
      %995 = vset.pattern.permute.xlu0 6
      %996 = vperm.xlu0 %995, %v193
      %v997 = vpop.permute.xlu0 %996
      %999 = vset.pattern.permute.xlu0 6
      %1000 = vperm.xlu0 %999, %v194
      %v1001 = vpop.permute.xlu0 %1000
      %1003 = vset.pattern.permute.xlu0 6
      %1004 = vperm.xlu0 %1003, %v195
      %v1005 = vpop.permute.xlu0 %1004
      %v1007 = vmul.f32 %v993, %v228
      %v1008 = vmul.f32 %v993, %v232
      %v1009 = vmul.f32 %v993, %v236
      %v1010 = vmul.f32 %v993, %v240
      %v1011 = vmul.f32 %v993, %v280
      %v1012 = vmul.f32 %v997, %v228
      %v1013 = vmul.f32 %v997, %v232
      %v1014 = vmul.f32 %v997, %v236
      %v1015 = vmul.f32 %v997, %v240
      %v1016 = vmul.f32 %v997, %v280
      %v1017 = vmul.f32 %v1001, %v228
      %v1018 = vmul.f32 %v1001, %v232
      %v1019 = vmul.f32 %v1001, %v236
      %v1020 = vmul.f32 %v1001, %v240
      %v1021 = vmul.f32 %v1001, %v280
      %v1022 = vmul.f32 %v1005, %v228
      %v1023 = vmul.f32 %v1005, %v232
      %v1024 = vmul.f32 %v1005, %v236
      %v1025 = vmul.f32 %v1005, %v240
      %v1026 = vmul.f32 %v1005, %v280
      %1047 = vrot.lane.b32.xlu0 %v1007, 122
      %v1048 = vpop.permute.xlu0 %1047
      %1049 = vrot.lane.b32.xlu0 %v1008, 122
      %v1050 = vpop.permute.xlu0 %1049
      %1051 = vrot.lane.b32.xlu0 %v1009, 122
      %v1052 = vpop.permute.xlu0 %1051
      %1053 = vrot.lane.b32.xlu0 %v1010, 122
      %v1054 = vpop.permute.xlu0 %1053
      %1055 = vrot.lane.b32.xlu0 %v1011, 122
      %v1056 = vpop.permute.xlu0 %1055
      %1057 = vrot.lane.b32.xlu0 %v1012, 122
      %v1058 = vpop.permute.xlu0 %1057
      %1059 = vrot.lane.b32.xlu0 %v1013, 122
      %v1060 = vpop.permute.xlu0 %1059
      %1061 = vrot.lane.b32.xlu0 %v1014, 122
      %v1062 = vpop.permute.xlu0 %1061
      %1063 = vrot.lane.b32.xlu0 %v1015, 122
      %v1064 = vpop.permute.xlu0 %1063
      %1065 = vrot.lane.b32.xlu0 %v1016, 122
      %v1066 = vpop.permute.xlu0 %1065
      %1067 = vrot.lane.b32.xlu0 %v1017, 122
      %v1068 = vpop.permute.xlu0 %1067
      %1069 = vrot.lane.b32.xlu0 %v1018, 122
      %v1070 = vpop.permute.xlu0 %1069
      %1071 = vrot.lane.b32.xlu0 %v1019, 122
      %v1072 = vpop.permute.xlu0 %1071
      %1073 = vrot.lane.b32.xlu0 %v1020, 122
      %v1074 = vpop.permute.xlu0 %1073
      %1075 = vrot.lane.b32.xlu0 %v1021, 122
      %v1076 = vpop.permute.xlu0 %1075
      %1077 = vrot.lane.b32.xlu0 %v1022, 122
      %v1078 = vpop.permute.xlu0 %1077
      %1079 = vrot.lane.b32.xlu0 %v1023, 122
      %v1080 = vpop.permute.xlu0 %1079
      %1081 = vrot.lane.b32.xlu0 %v1024, 122
      %v1082 = vpop.permute.xlu0 %1081
      %1083 = vrot.lane.b32.xlu0 %v1025, 122
      %v1084 = vpop.permute.xlu0 %1083
      %1085 = vrot.lane.b32.xlu0 %v1026, 122
      %v1086 = vpop.permute.xlu0 %1085
      %vm1087 = vcmask 998400
      %v1088 = vsel %vm1087, %v1048, %v1050
      %v1089 = vsel %vm1087, %v1050, %v1052
      %v1090 = vsel %vm1087, %v1052, %v1054
      %v1091 = vsel %vm1087, %v1054, %v1056
      %v1092 = vsel %vm1087, %v1058, %v1060
      %v1093 = vsel %vm1087, %v1060, %v1062
      %v1094 = vsel %vm1087, %v1062, %v1064
      %v1095 = vsel %vm1087, %v1064, %v1066
      %v1096 = vsel %vm1087, %v1068, %v1070
      %v1097 = vsel %vm1087, %v1070, %v1072
      %v1098 = vsel %vm1087, %v1072, %v1074
      %v1099 = vsel %vm1087, %v1074, %v1076
      %v1100 = vsel %vm1087, %v1078, %v1080
      %v1101 = vsel %vm1087, %v1080, %v1082
      %v1102 = vsel %vm1087, %v1082, %v1084
      %v1103 = vsel %vm1087, %v1084, %v1086
      %v1120 = vadd.f32 %v975, %v1088
      %v1121 = vadd.f32 %v976, %v1089
      %v1122 = vadd.f32 %v977, %v1090
      %v1123 = vadd.f32 %v978, %v1091
      %v1124 = vadd.f32 %v979, %v1092
      %v1125 = vadd.f32 %v980, %v1093
      %v1126 = vadd.f32 %v981, %v1094
      %v1127 = vadd.f32 %v982, %v1095
      %v1128 = vadd.f32 %v983, %v1096
      %v1129 = vadd.f32 %v984, %v1097
      %v1130 = vadd.f32 %v985, %v1098
      %v1131 = vadd.f32 %v986, %v1099
      %v1132 = vadd.f32 %v987, %v1100
      %v1133 = vadd.f32 %v988, %v1101
      %v1134 = vadd.f32 %v989, %v1102
      %v1135 = vadd.f32 %v990, %v1103
      %1136 = vset.pattern.permute.xlu0 7
      %1137 = vperm.xlu0 %1136, %v192
      %v1138 = vpop.permute.xlu0 %1137
      %1140 = vset.pattern.permute.xlu0 7
      %1141 = vperm.xlu0 %1140, %v193
      %v1142 = vpop.permute.xlu0 %1141
      %1144 = vset.pattern.permute.xlu0 7
      %1145 = vperm.xlu0 %1144, %v194
      %v1146 = vpop.permute.xlu0 %1145
      %1148 = vset.pattern.permute.xlu0 7
      %1149 = vperm.xlu0 %1148, %v195
      %v1150 = vpop.permute.xlu0 %1149
      %v1152 = vmul.f32 %v1138, %v228
      %v1153 = vmul.f32 %v1138, %v232
      %v1154 = vmul.f32 %v1138, %v236
      %v1155 = vmul.f32 %v1138, %v240
      %v1156 = vmul.f32 %v1138, %v280
      %v1157 = vmul.f32 %v1142, %v228
      %v1158 = vmul.f32 %v1142, %v232
      %v1159 = vmul.f32 %v1142, %v236
      %v1160 = vmul.f32 %v1142, %v240
      %v1161 = vmul.f32 %v1142, %v280
      %v1162 = vmul.f32 %v1146, %v228
      %v1163 = vmul.f32 %v1146, %v232
      %v1164 = vmul.f32 %v1146, %v236
      %v1165 = vmul.f32 %v1146, %v240
      %v1166 = vmul.f32 %v1146, %v280
      %v1167 = vmul.f32 %v1150, %v228
      %v1168 = vmul.f32 %v1150, %v232
      %v1169 = vmul.f32 %v1150, %v236
      %v1170 = vmul.f32 %v1150, %v240
      %v1171 = vmul.f32 %v1150, %v280
      %1192 = vrot.lane.b32.xlu0 %v1152, 121
      %v1193 = vpop.permute.xlu0 %1192
      %1194 = vrot.lane.b32.xlu0 %v1153, 121
      %v1195 = vpop.permute.xlu0 %1194
      %1196 = vrot.lane.b32.xlu0 %v1154, 121
      %v1197 = vpop.permute.xlu0 %1196
      %1198 = vrot.lane.b32.xlu0 %v1155, 121
      %v1199 = vpop.permute.xlu0 %1198
      %1200 = vrot.lane.b32.xlu0 %v1156, 121
      %v1201 = vpop.permute.xlu0 %1200
      %1202 = vrot.lane.b32.xlu0 %v1157, 121
      %v1203 = vpop.permute.xlu0 %1202
      %1204 = vrot.lane.b32.xlu0 %v1158, 121
      %v1205 = vpop.permute.xlu0 %1204
      %1206 = vrot.lane.b32.xlu0 %v1159, 121
      %v1207 = vpop.permute.xlu0 %1206
      %1208 = vrot.lane.b32.xlu0 %v1160, 121
      %v1209 = vpop.permute.xlu0 %1208
      %1210 = vrot.lane.b32.xlu0 %v1161, 121
      %v1211 = vpop.permute.xlu0 %1210
      %1212 = vrot.lane.b32.xlu0 %v1162, 121
      %v1213 = vpop.permute.xlu0 %1212
      %1214 = vrot.lane.b32.xlu0 %v1163, 121
      %v1215 = vpop.permute.xlu0 %1214
      %1216 = vrot.lane.b32.xlu0 %v1164, 121
      %v1217 = vpop.permute.xlu0 %1216
      %1218 = vrot.lane.b32.xlu0 %v1165, 121
      %v1219 = vpop.permute.xlu0 %1218
      %1220 = vrot.lane.b32.xlu0 %v1166, 121
      %v1221 = vpop.permute.xlu0 %1220
      %1222 = vrot.lane.b32.xlu0 %v1167, 121
      %v1223 = vpop.permute.xlu0 %1222
      %1224 = vrot.lane.b32.xlu0 %v1168, 121
      %v1225 = vpop.permute.xlu0 %1224
      %1226 = vrot.lane.b32.xlu0 %v1169, 121
      %v1227 = vpop.permute.xlu0 %1226
      %1228 = vrot.lane.b32.xlu0 %v1170, 121
      %v1229 = vpop.permute.xlu0 %1228
      %1230 = vrot.lane.b32.xlu0 %v1171, 121
      %v1231 = vpop.permute.xlu0 %1230
      %vm1232 = vcmask 990208
      %v1233 = vsel %vm1232, %v1193, %v1195
      %v1234 = vsel %vm1232, %v1195, %v1197
      %v1235 = vsel %vm1232, %v1197, %v1199
      %v1236 = vsel %vm1232, %v1199, %v1201
      %v1237 = vsel %vm1232, %v1203, %v1205
      %v1238 = vsel %vm1232, %v1205, %v1207
      %v1239 = vsel %vm1232, %v1207, %v1209
      %v1240 = vsel %vm1232, %v1209, %v1211
      %v1241 = vsel %vm1232, %v1213, %v1215
      %v1242 = vsel %vm1232, %v1215, %v1217
      %v1243 = vsel %vm1232, %v1217, %v1219
      %v1244 = vsel %vm1232, %v1219, %v1221
      %v1245 = vsel %vm1232, %v1223, %v1225
      %v1246 = vsel %vm1232, %v1225, %v1227
      %v1247 = vsel %vm1232, %v1227, %v1229
      %v1248 = vsel %vm1232, %v1229, %v1231
      %v1265 = vadd.f32 %v1120, %v1233
      %v1266 = vadd.f32 %v1121, %v1234
      %v1267 = vadd.f32 %v1122, %v1235
      %v1268 = vadd.f32 %v1123, %v1236
      %v1269 = vadd.f32 %v1124, %v1237
      %v1270 = vadd.f32 %v1125, %v1238
      %v1271 = vadd.f32 %v1126, %v1239
      %v1272 = vadd.f32 %v1127, %v1240
      %v1273 = vadd.f32 %v1128, %v1241
      %v1274 = vadd.f32 %v1129, %v1242
      %v1275 = vadd.f32 %v1130, %v1243
      %v1276 = vadd.f32 %v1131, %v1244
      %v1277 = vadd.f32 %v1132, %v1245
      %v1278 = vadd.f32 %v1133, %v1246
      %v1279 = vadd.f32 %v1134, %v1247
      %v1280 = vadd.f32 %v1135, %v1248
      %1281 = vset.pattern.permute.xlu0 8
      %1282 = vperm.xlu0 %1281, %v192
      %v1283 = vpop.permute.xlu0 %1282
      %1285 = vset.pattern.permute.xlu0 8
      %1286 = vperm.xlu0 %1285, %v193
      %v1287 = vpop.permute.xlu0 %1286
      %1289 = vset.pattern.permute.xlu0 8
      %1290 = vperm.xlu0 %1289, %v194
      %v1291 = vpop.permute.xlu0 %1290
      %1293 = vset.pattern.permute.xlu0 8
      %1294 = vperm.xlu0 %1293, %v195
      %v1295 = vpop.permute.xlu0 %1294
      %v1297 = vmul.f32 %v1283, %v228
      %v1298 = vmul.f32 %v1283, %v232
      %v1299 = vmul.f32 %v1283, %v236
      %v1300 = vmul.f32 %v1283, %v240
      %v1301 = vmul.f32 %v1283, %v280
      %v1302 = vmul.f32 %v1287, %v228
      %v1303 = vmul.f32 %v1287, %v232
      %v1304 = vmul.f32 %v1287, %v236
      %v1305 = vmul.f32 %v1287, %v240
      %v1306 = vmul.f32 %v1287, %v280
      %v1307 = vmul.f32 %v1291, %v228
      %v1308 = vmul.f32 %v1291, %v232
      %v1309 = vmul.f32 %v1291, %v236
      %v1310 = vmul.f32 %v1291, %v240
      %v1311 = vmul.f32 %v1291, %v280
      %v1312 = vmul.f32 %v1295, %v228
      %v1313 = vmul.f32 %v1295, %v232
      %v1314 = vmul.f32 %v1295, %v236
      %v1315 = vmul.f32 %v1295, %v240
      %v1316 = vmul.f32 %v1295, %v280
      %1337 = vrot.lane.b32.xlu0 %v1297, 120
      %v1338 = vpop.permute.xlu0 %1337
      %1339 = vrot.lane.b32.xlu0 %v1298, 120
      %v1340 = vpop.permute.xlu0 %1339
      %1341 = vrot.lane.b32.xlu0 %v1299, 120
      %v1342 = vpop.permute.xlu0 %1341
      %1343 = vrot.lane.b32.xlu0 %v1300, 120
      %v1344 = vpop.permute.xlu0 %1343
      %1345 = vrot.lane.b32.xlu0 %v1301, 120
      %v1346 = vpop.permute.xlu0 %1345
      %1347 = vrot.lane.b32.xlu0 %v1302, 120
      %v1348 = vpop.permute.xlu0 %1347
      %1349 = vrot.lane.b32.xlu0 %v1303, 120
      %v1350 = vpop.permute.xlu0 %1349
      %1351 = vrot.lane.b32.xlu0 %v1304, 120
      %v1352 = vpop.permute.xlu0 %1351
      %1353 = vrot.lane.b32.xlu0 %v1305, 120
      %v1354 = vpop.permute.xlu0 %1353
      %1355 = vrot.lane.b32.xlu0 %v1306, 120
      %v1356 = vpop.permute.xlu0 %1355
      %1357 = vrot.lane.b32.xlu0 %v1307, 120
      %v1358 = vpop.permute.xlu0 %1357
      %1359 = vrot.lane.b32.xlu0 %v1308, 120
      %v1360 = vpop.permute.xlu0 %1359
      %1361 = vrot.lane.b32.xlu0 %v1309, 120
      %v1362 = vpop.permute.xlu0 %1361
      %1363 = vrot.lane.b32.xlu0 %v1310, 120
      %v1364 = vpop.permute.xlu0 %1363
      %1365 = vrot.lane.b32.xlu0 %v1311, 120
      %v1366 = vpop.permute.xlu0 %1365
      %1367 = vrot.lane.b32.xlu0 %v1312, 120
      %v1368 = vpop.permute.xlu0 %1367
      %1369 = vrot.lane.b32.xlu0 %v1313, 120
      %v1370 = vpop.permute.xlu0 %1369
      %1371 = vrot.lane.b32.xlu0 %v1314, 120
      %v1372 = vpop.permute.xlu0 %1371
      %1373 = vrot.lane.b32.xlu0 %v1315, 120
      %v1374 = vpop.permute.xlu0 %1373
      %1375 = vrot.lane.b32.xlu0 %v1316, 120
      %v1376 = vpop.permute.xlu0 %1375
      %vm1377 = vcmask 982016
      %v1378 = vsel %vm1377, %v1338, %v1340
      %v1379 = vsel %vm1377, %v1340, %v1342
      %v1380 = vsel %vm1377, %v1342, %v1344
      %v1381 = vsel %vm1377, %v1344, %v1346
      %v1382 = vsel %vm1377, %v1348, %v1350
      %v1383 = vsel %vm1377, %v1350, %v1352
      %v1384 = vsel %vm1377, %v1352, %v1354
      %v1385 = vsel %vm1377, %v1354, %v1356
      %v1386 = vsel %vm1377, %v1358, %v1360
      %v1387 = vsel %vm1377, %v1360, %v1362
      %v1388 = vsel %vm1377, %v1362, %v1364
      %v1389 = vsel %vm1377, %v1364, %v1366
      %v1390 = vsel %vm1377, %v1368, %v1370
      %v1391 = vsel %vm1377, %v1370, %v1372
      %v1392 = vsel %vm1377, %v1372, %v1374
      %v1393 = vsel %vm1377, %v1374, %v1376
      %v1410 = vadd.f32 %v1265, %v1378
      %v1411 = vadd.f32 %v1266, %v1379
      %v1412 = vadd.f32 %v1267, %v1380
      %v1413 = vadd.f32 %v1268, %v1381
      %v1414 = vadd.f32 %v1269, %v1382
      %v1415 = vadd.f32 %v1270, %v1383
      %v1416 = vadd.f32 %v1271, %v1384
      %v1417 = vadd.f32 %v1272, %v1385
      %v1418 = vadd.f32 %v1273, %v1386
      %v1419 = vadd.f32 %v1274, %v1387
      %v1420 = vadd.f32 %v1275, %v1388
      %v1421 = vadd.f32 %v1276, %v1389
      %v1422 = vadd.f32 %v1277, %v1390
      %v1423 = vadd.f32 %v1278, %v1391
      %v1424 = vadd.f32 %v1279, %v1392
      %v1425 = vadd.f32 %v1280, %v1393
      %1426 = vset.pattern.permute.xlu0 9
      %1427 = vperm.xlu0 %1426, %v192
      %v1428 = vpop.permute.xlu0 %1427
      %1430 = vset.pattern.permute.xlu0 9
      %1431 = vperm.xlu0 %1430, %v193
      %v1432 = vpop.permute.xlu0 %1431
      %1434 = vset.pattern.permute.xlu0 9
      %1435 = vperm.xlu0 %1434, %v194
      %v1436 = vpop.permute.xlu0 %1435
      %1438 = vset.pattern.permute.xlu0 9
      %1439 = vperm.xlu0 %1438, %v195
      %v1440 = vpop.permute.xlu0 %1439
      %v1442 = vmul.f32 %v1428, %v228
      %v1443 = vmul.f32 %v1428, %v232
      %v1444 = vmul.f32 %v1428, %v236
      %v1445 = vmul.f32 %v1428, %v240
      %v1446 = vmul.f32 %v1428, %v280
      %v1447 = vmul.f32 %v1432, %v228
      %v1448 = vmul.f32 %v1432, %v232
      %v1449 = vmul.f32 %v1432, %v236
      %v1450 = vmul.f32 %v1432, %v240
      %v1451 = vmul.f32 %v1432, %v280
      %v1452 = vmul.f32 %v1436, %v228
      %v1453 = vmul.f32 %v1436, %v232
      %v1454 = vmul.f32 %v1436, %v236
      %v1455 = vmul.f32 %v1436, %v240
      %v1456 = vmul.f32 %v1436, %v280
      %v1457 = vmul.f32 %v1440, %v228
      %v1458 = vmul.f32 %v1440, %v232
      %v1459 = vmul.f32 %v1440, %v236
      %v1460 = vmul.f32 %v1440, %v240
      %v1461 = vmul.f32 %v1440, %v280
      %1482 = vrot.lane.b32.xlu0 %v1442, 119
      %v1483 = vpop.permute.xlu0 %1482
      %1484 = vrot.lane.b32.xlu0 %v1443, 119
      %v1485 = vpop.permute.xlu0 %1484
      %1486 = vrot.lane.b32.xlu0 %v1444, 119
      %v1487 = vpop.permute.xlu0 %1486
      %1488 = vrot.lane.b32.xlu0 %v1445, 119
      %v1489 = vpop.permute.xlu0 %1488
      %1490 = vrot.lane.b32.xlu0 %v1446, 119
      %v1491 = vpop.permute.xlu0 %1490
      %1492 = vrot.lane.b32.xlu0 %v1447, 119
      %v1493 = vpop.permute.xlu0 %1492
      %1494 = vrot.lane.b32.xlu0 %v1448, 119
      %v1495 = vpop.permute.xlu0 %1494
      %1496 = vrot.lane.b32.xlu0 %v1449, 119
      %v1497 = vpop.permute.xlu0 %1496
      %1498 = vrot.lane.b32.xlu0 %v1450, 119
      %v1499 = vpop.permute.xlu0 %1498
      %1500 = vrot.lane.b32.xlu0 %v1451, 119
      %v1501 = vpop.permute.xlu0 %1500
      %1502 = vrot.lane.b32.xlu0 %v1452, 119
      %v1503 = vpop.permute.xlu0 %1502
      %1504 = vrot.lane.b32.xlu0 %v1453, 119
      %v1505 = vpop.permute.xlu0 %1504
      %1506 = vrot.lane.b32.xlu0 %v1454, 119
      %v1507 = vpop.permute.xlu0 %1506
      %1508 = vrot.lane.b32.xlu0 %v1455, 119
      %v1509 = vpop.permute.xlu0 %1508
      %1510 = vrot.lane.b32.xlu0 %v1456, 119
      %v1511 = vpop.permute.xlu0 %1510
      %1512 = vrot.lane.b32.xlu0 %v1457, 119
      %v1513 = vpop.permute.xlu0 %1512
      %1514 = vrot.lane.b32.xlu0 %v1458, 119
      %v1515 = vpop.permute.xlu0 %1514
      %1516 = vrot.lane.b32.xlu0 %v1459, 119
      %v1517 = vpop.permute.xlu0 %1516
      %1518 = vrot.lane.b32.xlu0 %v1460, 119
      %v1519 = vpop.permute.xlu0 %1518
      %1520 = vrot.lane.b32.xlu0 %v1461, 119
      %v1521 = vpop.permute.xlu0 %1520
      %vm1522 = vcmask 973824
      %v1523 = vsel %vm1522, %v1483, %v1485
      %v1524 = vsel %vm1522, %v1485, %v1487
      %v1525 = vsel %vm1522, %v1487, %v1489
      %v1526 = vsel %vm1522, %v1489, %v1491
      %v1527 = vsel %vm1522, %v1493, %v1495
      %v1528 = vsel %vm1522, %v1495, %v1497
      %v1529 = vsel %vm1522, %v1497, %v1499
      %v1530 = vsel %vm1522, %v1499, %v1501
      %v1531 = vsel %vm1522, %v1503, %v1505
      %v1532 = vsel %vm1522, %v1505, %v1507
      %v1533 = vsel %vm1522, %v1507, %v1509
      %v1534 = vsel %vm1522, %v1509, %v1511
      %v1535 = vsel %vm1522, %v1513, %v1515
      %v1536 = vsel %vm1522, %v1515, %v1517
      %v1537 = vsel %vm1522, %v1517, %v1519
      %v1538 = vsel %vm1522, %v1519, %v1521
      %v1555 = vadd.f32 %v1410, %v1523
      %v1556 = vadd.f32 %v1411, %v1524
      %v1557 = vadd.f32 %v1412, %v1525
      %v1558 = vadd.f32 %v1413, %v1526
      %v1559 = vadd.f32 %v1414, %v1527
      %v1560 = vadd.f32 %v1415, %v1528
      %v1561 = vadd.f32 %v1416, %v1529
      %v1562 = vadd.f32 %v1417, %v1530
      %v1563 = vadd.f32 %v1418, %v1531
      %v1564 = vadd.f32 %v1419, %v1532
      %v1565 = vadd.f32 %v1420, %v1533
      %v1566 = vadd.f32 %v1421, %v1534
      %v1567 = vadd.f32 %v1422, %v1535
      %v1568 = vadd.f32 %v1423, %v1536
      %v1569 = vadd.f32 %v1424, %v1537
      %v1570 = vadd.f32 %v1425, %v1538
      %1571 = vset.pattern.permute.xlu0 10
      %1572 = vperm.xlu0 %1571, %v192
      %v1573 = vpop.permute.xlu0 %1572
      %1575 = vset.pattern.permute.xlu0 10
      %1576 = vperm.xlu0 %1575, %v193
      %v1577 = vpop.permute.xlu0 %1576
      %1579 = vset.pattern.permute.xlu0 10
      %1580 = vperm.xlu0 %1579, %v194
      %v1581 = vpop.permute.xlu0 %1580
      %1583 = vset.pattern.permute.xlu0 10
      %1584 = vperm.xlu0 %1583, %v195
      %v1585 = vpop.permute.xlu0 %1584
      %v1587 = vmul.f32 %v1573, %v228
      %v1588 = vmul.f32 %v1573, %v232
      %v1589 = vmul.f32 %v1573, %v236
      %v1590 = vmul.f32 %v1573, %v240
      %v1591 = vmul.f32 %v1573, %v280
      %v1592 = vmul.f32 %v1577, %v228
      %v1593 = vmul.f32 %v1577, %v232
      %v1594 = vmul.f32 %v1577, %v236
      %v1595 = vmul.f32 %v1577, %v240
      %v1596 = vmul.f32 %v1577, %v280
      %v1597 = vmul.f32 %v1581, %v228
      %v1598 = vmul.f32 %v1581, %v232
      %v1599 = vmul.f32 %v1581, %v236
      %v1600 = vmul.f32 %v1581, %v240
      %v1601 = vmul.f32 %v1581, %v280
      %v1602 = vmul.f32 %v1585, %v228
      %v1603 = vmul.f32 %v1585, %v232
      %v1604 = vmul.f32 %v1585, %v236
      %v1605 = vmul.f32 %v1585, %v240
      %v1606 = vmul.f32 %v1585, %v280
      %1627 = vrot.lane.b32.xlu0 %v1587, 118
      %v1628 = vpop.permute.xlu0 %1627
      %1629 = vrot.lane.b32.xlu0 %v1588, 118
      %v1630 = vpop.permute.xlu0 %1629
      %1631 = vrot.lane.b32.xlu0 %v1589, 118
      %v1632 = vpop.permute.xlu0 %1631
      %1633 = vrot.lane.b32.xlu0 %v1590, 118
      %v1634 = vpop.permute.xlu0 %1633
      %1635 = vrot.lane.b32.xlu0 %v1591, 118
      %v1636 = vpop.permute.xlu0 %1635
      %1637 = vrot.lane.b32.xlu0 %v1592, 118
      %v1638 = vpop.permute.xlu0 %1637
      %1639 = vrot.lane.b32.xlu0 %v1593, 118
      %v1640 = vpop.permute.xlu0 %1639
      %1641 = vrot.lane.b32.xlu0 %v1594, 118
      %v1642 = vpop.permute.xlu0 %1641
      %1643 = vrot.lane.b32.xlu0 %v1595, 118
      %v1644 = vpop.permute.xlu0 %1643
      %1645 = vrot.lane.b32.xlu0 %v1596, 118
      %v1646 = vpop.permute.xlu0 %1645
      %1647 = vrot.lane.b32.xlu0 %v1597, 118
      %v1648 = vpop.permute.xlu0 %1647
      %1649 = vrot.lane.b32.xlu0 %v1598, 118
      %v1650 = vpop.permute.xlu0 %1649
      %1651 = vrot.lane.b32.xlu0 %v1599, 118
      %v1652 = vpop.permute.xlu0 %1651
      %1653 = vrot.lane.b32.xlu0 %v1600, 118
      %v1654 = vpop.permute.xlu0 %1653
      %1655 = vrot.lane.b32.xlu0 %v1601, 118
      %v1656 = vpop.permute.xlu0 %1655
      %1657 = vrot.lane.b32.xlu0 %v1602, 118
      %v1658 = vpop.permute.xlu0 %1657
      %1659 = vrot.lane.b32.xlu0 %v1603, 118
      %v1660 = vpop.permute.xlu0 %1659
      %1661 = vrot.lane.b32.xlu0 %v1604, 118
      %v1662 = vpop.permute.xlu0 %1661
      %1663 = vrot.lane.b32.xlu0 %v1605, 118
      %v1664 = vpop.permute.xlu0 %1663
      %1665 = vrot.lane.b32.xlu0 %v1606, 118
      %v1666 = vpop.permute.xlu0 %1665
      %vm1667 = vcmask 965632
      %v1668 = vsel %vm1667, %v1628, %v1630
      %v1669 = vsel %vm1667, %v1630, %v1632
      %v1670 = vsel %vm1667, %v1632, %v1634
      %v1671 = vsel %vm1667, %v1634, %v1636
      %v1672 = vsel %vm1667, %v1638, %v1640
      %v1673 = vsel %vm1667, %v1640, %v1642
      %v1674 = vsel %vm1667, %v1642, %v1644
      %v1675 = vsel %vm1667, %v1644, %v1646
      %v1676 = vsel %vm1667, %v1648, %v1650
      %v1677 = vsel %vm1667, %v1650, %v1652
      %v1678 = vsel %vm1667, %v1652, %v1654
      %v1679 = vsel %vm1667, %v1654, %v1656
      %v1680 = vsel %vm1667, %v1658, %v1660
      %v1681 = vsel %vm1667, %v1660, %v1662
      %v1682 = vsel %vm1667, %v1662, %v1664
      %v1683 = vsel %vm1667, %v1664, %v1666
      %v1700 = vadd.f32 %v1555, %v1668
      %v1701 = vadd.f32 %v1556, %v1669
      %v1702 = vadd.f32 %v1557, %v1670
      %v1703 = vadd.f32 %v1558, %v1671
      %v1704 = vadd.f32 %v1559, %v1672
      %v1705 = vadd.f32 %v1560, %v1673
      %v1706 = vadd.f32 %v1561, %v1674
      %v1707 = vadd.f32 %v1562, %v1675
      %v1708 = vadd.f32 %v1563, %v1676
      %v1709 = vadd.f32 %v1564, %v1677
      %v1710 = vadd.f32 %v1565, %v1678
      %v1711 = vadd.f32 %v1566, %v1679
      %v1712 = vadd.f32 %v1567, %v1680
      %v1713 = vadd.f32 %v1568, %v1681
      %v1714 = vadd.f32 %v1569, %v1682
      %v1715 = vadd.f32 %v1570, %v1683
      %1716 = vset.pattern.permute.xlu0 11
      %1717 = vperm.xlu0 %1716, %v192
      %v1718 = vpop.permute.xlu0 %1717
      %1720 = vset.pattern.permute.xlu0 11
      %1721 = vperm.xlu0 %1720, %v193
      %v1722 = vpop.permute.xlu0 %1721
      %1724 = vset.pattern.permute.xlu0 11
      %1725 = vperm.xlu0 %1724, %v194
      %v1726 = vpop.permute.xlu0 %1725
      %1728 = vset.pattern.permute.xlu0 11
      %1729 = vperm.xlu0 %1728, %v195
      %v1730 = vpop.permute.xlu0 %1729
      %v1732 = vmul.f32 %v1718, %v228
      %v1733 = vmul.f32 %v1718, %v232
      %v1734 = vmul.f32 %v1718, %v236
      %v1735 = vmul.f32 %v1718, %v240
      %v1736 = vmul.f32 %v1718, %v280
      %v1737 = vmul.f32 %v1722, %v228
      %v1738 = vmul.f32 %v1722, %v232
      %v1739 = vmul.f32 %v1722, %v236
      %v1740 = vmul.f32 %v1722, %v240
      %v1741 = vmul.f32 %v1722, %v280
      %v1742 = vmul.f32 %v1726, %v228
      %v1743 = vmul.f32 %v1726, %v232
      %v1744 = vmul.f32 %v1726, %v236
      %v1745 = vmul.f32 %v1726, %v240
      %v1746 = vmul.f32 %v1726, %v280
      %v1747 = vmul.f32 %v1730, %v228
      %v1748 = vmul.f32 %v1730, %v232
      %v1749 = vmul.f32 %v1730, %v236
      %v1750 = vmul.f32 %v1730, %v240
      %v1751 = vmul.f32 %v1730, %v280
      %1772 = vrot.lane.b32.xlu0 %v1732, 117
      %v1773 = vpop.permute.xlu0 %1772
      %1774 = vrot.lane.b32.xlu0 %v1733, 117
      %v1775 = vpop.permute.xlu0 %1774
      %1776 = vrot.lane.b32.xlu0 %v1734, 117
      %v1777 = vpop.permute.xlu0 %1776
      %1778 = vrot.lane.b32.xlu0 %v1735, 117
      %v1779 = vpop.permute.xlu0 %1778
      %1780 = vrot.lane.b32.xlu0 %v1736, 117
      %v1781 = vpop.permute.xlu0 %1780
      %1782 = vrot.lane.b32.xlu0 %v1737, 117
      %v1783 = vpop.permute.xlu0 %1782
      %1784 = vrot.lane.b32.xlu0 %v1738, 117
      %v1785 = vpop.permute.xlu0 %1784
      %1786 = vrot.lane.b32.xlu0 %v1739, 117
      %v1787 = vpop.permute.xlu0 %1786
      %1788 = vrot.lane.b32.xlu0 %v1740, 117
      %v1789 = vpop.permute.xlu0 %1788
      %1790 = vrot.lane.b32.xlu0 %v1741, 117
      %v1791 = vpop.permute.xlu0 %1790
      %1792 = vrot.lane.b32.xlu0 %v1742, 117
      %v1793 = vpop.permute.xlu0 %1792
      %1794 = vrot.lane.b32.xlu0 %v1743, 117
      %v1795 = vpop.permute.xlu0 %1794
      %1796 = vrot.lane.b32.xlu0 %v1744, 117
      %v1797 = vpop.permute.xlu0 %1796
      %1798 = vrot.lane.b32.xlu0 %v1745, 117
      %v1799 = vpop.permute.xlu0 %1798
      %1800 = vrot.lane.b32.xlu0 %v1746, 117
      %v1801 = vpop.permute.xlu0 %1800
      %1802 = vrot.lane.b32.xlu0 %v1747, 117
      %v1803 = vpop.permute.xlu0 %1802
      %1804 = vrot.lane.b32.xlu0 %v1748, 117
      %v1805 = vpop.permute.xlu0 %1804
      %1806 = vrot.lane.b32.xlu0 %v1749, 117
      %v1807 = vpop.permute.xlu0 %1806
      %1808 = vrot.lane.b32.xlu0 %v1750, 117
      %v1809 = vpop.permute.xlu0 %1808
      %1810 = vrot.lane.b32.xlu0 %v1751, 117
      %v1811 = vpop.permute.xlu0 %1810
      %vm1812 = vcmask 957440
      %v1813 = vsel %vm1812, %v1773, %v1775
      %v1814 = vsel %vm1812, %v1775, %v1777
      %v1815 = vsel %vm1812, %v1777, %v1779
      %v1816 = vsel %vm1812, %v1779, %v1781
      %v1817 = vsel %vm1812, %v1783, %v1785
      %v1818 = vsel %vm1812, %v1785, %v1787
      %v1819 = vsel %vm1812, %v1787, %v1789
      %v1820 = vsel %vm1812, %v1789, %v1791
      %v1821 = vsel %vm1812, %v1793, %v1795
      %v1822 = vsel %vm1812, %v1795, %v1797
      %v1823 = vsel %vm1812, %v1797, %v1799
      %v1824 = vsel %vm1812, %v1799, %v1801
      %v1825 = vsel %vm1812, %v1803, %v1805
      %v1826 = vsel %vm1812, %v1805, %v1807
      %v1827 = vsel %vm1812, %v1807, %v1809
      %v1828 = vsel %vm1812, %v1809, %v1811
      %v1845 = vadd.f32 %v1700, %v1813
      %v1846 = vadd.f32 %v1701, %v1814
      %v1847 = vadd.f32 %v1702, %v1815
      %v1848 = vadd.f32 %v1703, %v1816
      %v1849 = vadd.f32 %v1704, %v1817
      %v1850 = vadd.f32 %v1705, %v1818
      %v1851 = vadd.f32 %v1706, %v1819
      %v1852 = vadd.f32 %v1707, %v1820
      %v1853 = vadd.f32 %v1708, %v1821
      %v1854 = vadd.f32 %v1709, %v1822
      %v1855 = vadd.f32 %v1710, %v1823
      %v1856 = vadd.f32 %v1711, %v1824
      %v1857 = vadd.f32 %v1712, %v1825
      %v1858 = vadd.f32 %v1713, %v1826
      %v1859 = vadd.f32 %v1714, %v1827
      %v1860 = vadd.f32 %v1715, %v1828
      %1861 = vset.pattern.permute.xlu0 12
      %1862 = vperm.xlu0 %1861, %v192
      %v1863 = vpop.permute.xlu0 %1862
      %1865 = vset.pattern.permute.xlu0 12
      %1866 = vperm.xlu0 %1865, %v193
      %v1867 = vpop.permute.xlu0 %1866
      %1869 = vset.pattern.permute.xlu0 12
      %1870 = vperm.xlu0 %1869, %v194
      %v1871 = vpop.permute.xlu0 %1870
      %1873 = vset.pattern.permute.xlu0 12
      %1874 = vperm.xlu0 %1873, %v195
      %v1875 = vpop.permute.xlu0 %1874
      %v1877 = vmul.f32 %v1863, %v228
      %v1878 = vmul.f32 %v1863, %v232
      %v1879 = vmul.f32 %v1863, %v236
      %v1880 = vmul.f32 %v1863, %v240
      %v1881 = vmul.f32 %v1863, %v280
      %v1882 = vmul.f32 %v1867, %v228
      %v1883 = vmul.f32 %v1867, %v232
      %v1884 = vmul.f32 %v1867, %v236
      %v1885 = vmul.f32 %v1867, %v240
      %v1886 = vmul.f32 %v1867, %v280
      %v1887 = vmul.f32 %v1871, %v228
      %v1888 = vmul.f32 %v1871, %v232
      %v1889 = vmul.f32 %v1871, %v236
      %v1890 = vmul.f32 %v1871, %v240
      %v1891 = vmul.f32 %v1871, %v280
      %v1892 = vmul.f32 %v1875, %v228
      %v1893 = vmul.f32 %v1875, %v232
      %v1894 = vmul.f32 %v1875, %v236
      %v1895 = vmul.f32 %v1875, %v240
      %v1896 = vmul.f32 %v1875, %v280
      %1917 = vrot.lane.b32.xlu0 %v1877, 116
      %v1918 = vpop.permute.xlu0 %1917
      %1919 = vrot.lane.b32.xlu0 %v1878, 116
      %v1920 = vpop.permute.xlu0 %1919
      %1921 = vrot.lane.b32.xlu0 %v1879, 116
      %v1922 = vpop.permute.xlu0 %1921
      %1923 = vrot.lane.b32.xlu0 %v1880, 116
      %v1924 = vpop.permute.xlu0 %1923
      %1925 = vrot.lane.b32.xlu0 %v1881, 116
      %v1926 = vpop.permute.xlu0 %1925
      %1927 = vrot.lane.b32.xlu0 %v1882, 116
      %v1928 = vpop.permute.xlu0 %1927
      %1929 = vrot.lane.b32.xlu0 %v1883, 116
      %v1930 = vpop.permute.xlu0 %1929
      %1931 = vrot.lane.b32.xlu0 %v1884, 116
      %v1932 = vpop.permute.xlu0 %1931
      %1933 = vrot.lane.b32.xlu0 %v1885, 116
      %v1934 = vpop.permute.xlu0 %1933
      %1935 = vrot.lane.b32.xlu0 %v1886, 116
      %v1936 = vpop.permute.xlu0 %1935
      %1937 = vrot.lane.b32.xlu0 %v1887, 116
      %v1938 = vpop.permute.xlu0 %1937
      %1939 = vrot.lane.b32.xlu0 %v1888, 116
      %v1940 = vpop.permute.xlu0 %1939
      %1941 = vrot.lane.b32.xlu0 %v1889, 116
      %v1942 = vpop.permute.xlu0 %1941
      %1943 = vrot.lane.b32.xlu0 %v1890, 116
      %v1944 = vpop.permute.xlu0 %1943
      %1945 = vrot.lane.b32.xlu0 %v1891, 116
      %v1946 = vpop.permute.xlu0 %1945
      %1947 = vrot.lane.b32.xlu0 %v1892, 116
      %v1948 = vpop.permute.xlu0 %1947
      %1949 = vrot.lane.b32.xlu0 %v1893, 116
      %v1950 = vpop.permute.xlu0 %1949
      %1951 = vrot.lane.b32.xlu0 %v1894, 116
      %v1952 = vpop.permute.xlu0 %1951
      %1953 = vrot.lane.b32.xlu0 %v1895, 116
      %v1954 = vpop.permute.xlu0 %1953
      %1955 = vrot.lane.b32.xlu0 %v1896, 116
      %v1956 = vpop.permute.xlu0 %1955
      %vm1957 = vcmask 949248
      %v1958 = vsel %vm1957, %v1918, %v1920
      %v1959 = vsel %vm1957, %v1920, %v1922
      %v1960 = vsel %vm1957, %v1922, %v1924
      %v1961 = vsel %vm1957, %v1924, %v1926
      %v1962 = vsel %vm1957, %v1928, %v1930
      %v1963 = vsel %vm1957, %v1930, %v1932
      %v1964 = vsel %vm1957, %v1932, %v1934
      %v1965 = vsel %vm1957, %v1934, %v1936
      %v1966 = vsel %vm1957, %v1938, %v1940
      %v1967 = vsel %vm1957, %v1940, %v1942
      %v1968 = vsel %vm1957, %v1942, %v1944
      %v1969 = vsel %vm1957, %v1944, %v1946
      %v1970 = vsel %vm1957, %v1948, %v1950
      %v1971 = vsel %vm1957, %v1950, %v1952
      %v1972 = vsel %vm1957, %v1952, %v1954
      %v1973 = vsel %vm1957, %v1954, %v1956
      %v1990 = vadd.f32 %v1845, %v1958
      %v1991 = vadd.f32 %v1846, %v1959
      %v1992 = vadd.f32 %v1847, %v1960
      %v1993 = vadd.f32 %v1848, %v1961
      %v1994 = vadd.f32 %v1849, %v1962
      %v1995 = vadd.f32 %v1850, %v1963
      %v1996 = vadd.f32 %v1851, %v1964
      %v1997 = vadd.f32 %v1852, %v1965
      %v1998 = vadd.f32 %v1853, %v1966
      %v1999 = vadd.f32 %v1854, %v1967
      %v2000 = vadd.f32 %v1855, %v1968
      %v2001 = vadd.f32 %v1856, %v1969
      %v2002 = vadd.f32 %v1857, %v1970
      %v2003 = vadd.f32 %v1858, %v1971
      %v2004 = vadd.f32 %v1859, %v1972
      %v2005 = vadd.f32 %v1860, %v1973
      %2006 = vset.pattern.permute.xlu0 13
      %2007 = vperm.xlu0 %2006, %v192
      %v2008 = vpop.permute.xlu0 %2007
      %2010 = vset.pattern.permute.xlu0 13
      %2011 = vperm.xlu0 %2010, %v193
      %v2012 = vpop.permute.xlu0 %2011
      %2014 = vset.pattern.permute.xlu0 13
      %2015 = vperm.xlu0 %2014, %v194
      %v2016 = vpop.permute.xlu0 %2015
      %2018 = vset.pattern.permute.xlu0 13
      %2019 = vperm.xlu0 %2018, %v195
      %v2020 = vpop.permute.xlu0 %2019
      %v2022 = vmul.f32 %v2008, %v228
      %v2023 = vmul.f32 %v2008, %v232
      %v2024 = vmul.f32 %v2008, %v236
      %v2025 = vmul.f32 %v2008, %v240
      %v2026 = vmul.f32 %v2008, %v280
      %v2027 = vmul.f32 %v2012, %v228
      %v2028 = vmul.f32 %v2012, %v232
      %v2029 = vmul.f32 %v2012, %v236
      %v2030 = vmul.f32 %v2012, %v240
      %v2031 = vmul.f32 %v2012, %v280
      %v2032 = vmul.f32 %v2016, %v228
      %v2033 = vmul.f32 %v2016, %v232
      %v2034 = vmul.f32 %v2016, %v236
      %v2035 = vmul.f32 %v2016, %v240
      %v2036 = vmul.f32 %v2016, %v280
      %v2037 = vmul.f32 %v2020, %v228
      %v2038 = vmul.f32 %v2020, %v232
      %v2039 = vmul.f32 %v2020, %v236
      %v2040 = vmul.f32 %v2020, %v240
      %v2041 = vmul.f32 %v2020, %v280
      %2062 = vrot.lane.b32.xlu0 %v2022, 115
      %v2063 = vpop.permute.xlu0 %2062
      %2064 = vrot.lane.b32.xlu0 %v2023, 115
      %v2065 = vpop.permute.xlu0 %2064
      %2066 = vrot.lane.b32.xlu0 %v2024, 115
      %v2067 = vpop.permute.xlu0 %2066
      %2068 = vrot.lane.b32.xlu0 %v2025, 115
      %v2069 = vpop.permute.xlu0 %2068
      %2070 = vrot.lane.b32.xlu0 %v2026, 115
      %v2071 = vpop.permute.xlu0 %2070
      %2072 = vrot.lane.b32.xlu0 %v2027, 115
      %v2073 = vpop.permute.xlu0 %2072
      %2074 = vrot.lane.b32.xlu0 %v2028, 115
      %v2075 = vpop.permute.xlu0 %2074
      %2076 = vrot.lane.b32.xlu0 %v2029, 115
      %v2077 = vpop.permute.xlu0 %2076
      %2078 = vrot.lane.b32.xlu0 %v2030, 115
      %v2079 = vpop.permute.xlu0 %2078
      %2080 = vrot.lane.b32.xlu0 %v2031, 115
      %v2081 = vpop.permute.xlu0 %2080
      %2082 = vrot.lane.b32.xlu0 %v2032, 115
      %v2083 = vpop.permute.xlu0 %2082
      %2084 = vrot.lane.b32.xlu0 %v2033, 115
      %v2085 = vpop.permute.xlu0 %2084
      %2086 = vrot.lane.b32.xlu0 %v2034, 115
      %v2087 = vpop.permute.xlu0 %2086
      %2088 = vrot.lane.b32.xlu0 %v2035, 115
      %v2089 = vpop.permute.xlu0 %2088
      %2090 = vrot.lane.b32.xlu0 %v2036, 115
      %v2091 = vpop.permute.xlu0 %2090
      %2092 = vrot.lane.b32.xlu0 %v2037, 115
      %v2093 = vpop.permute.xlu0 %2092
      %2094 = vrot.lane.b32.xlu0 %v2038, 115
      %v2095 = vpop.permute.xlu0 %2094
      %2096 = vrot.lane.b32.xlu0 %v2039, 115
      %v2097 = vpop.permute.xlu0 %2096
      %2098 = vrot.lane.b32.xlu0 %v2040, 115
      %v2099 = vpop.permute.xlu0 %2098
      %2100 = vrot.lane.b32.xlu0 %v2041, 115
      %v2101 = vpop.permute.xlu0 %2100
      %vm2102 = vcmask 941056
      %v2103 = vsel %vm2102, %v2063, %v2065
      %v2104 = vsel %vm2102, %v2065, %v2067
      %v2105 = vsel %vm2102, %v2067, %v2069
      %v2106 = vsel %vm2102, %v2069, %v2071
      %v2107 = vsel %vm2102, %v2073, %v2075
      %v2108 = vsel %vm2102, %v2075, %v2077
      %v2109 = vsel %vm2102, %v2077, %v2079
      %v2110 = vsel %vm2102, %v2079, %v2081
      %v2111 = vsel %vm2102, %v2083, %v2085
      %v2112 = vsel %vm2102, %v2085, %v2087
      %v2113 = vsel %vm2102, %v2087, %v2089
      %v2114 = vsel %vm2102, %v2089, %v2091
      %v2115 = vsel %vm2102, %v2093, %v2095
      %v2116 = vsel %vm2102, %v2095, %v2097
      %v2117 = vsel %vm2102, %v2097, %v2099
      %v2118 = vsel %vm2102, %v2099, %v2101
      %v2135 = vadd.f32 %v1990, %v2103
      %v2136 = vadd.f32 %v1991, %v2104
      %v2137 = vadd.f32 %v1992, %v2105
      %v2138 = vadd.f32 %v1993, %v2106
      %v2139 = vadd.f32 %v1994, %v2107
      %v2140 = vadd.f32 %v1995, %v2108
      %v2141 = vadd.f32 %v1996, %v2109
      %v2142 = vadd.f32 %v1997, %v2110
      %v2143 = vadd.f32 %v1998, %v2111
      %v2144 = vadd.f32 %v1999, %v2112
      %v2145 = vadd.f32 %v2000, %v2113
      %v2146 = vadd.f32 %v2001, %v2114
      %v2147 = vadd.f32 %v2002, %v2115
      %v2148 = vadd.f32 %v2003, %v2116
      %v2149 = vadd.f32 %v2004, %v2117
      %v2150 = vadd.f32 %v2005, %v2118
      %2151 = vset.pattern.permute.xlu0 14
      %2152 = vperm.xlu0 %2151, %v192
      %v2153 = vpop.permute.xlu0 %2152
      %2155 = vset.pattern.permute.xlu0 14
      %2156 = vperm.xlu0 %2155, %v193
      %v2157 = vpop.permute.xlu0 %2156
      %2159 = vset.pattern.permute.xlu0 14
      %2160 = vperm.xlu0 %2159, %v194
      %v2161 = vpop.permute.xlu0 %2160
      %2163 = vset.pattern.permute.xlu0 14
      %2164 = vperm.xlu0 %2163, %v195
      %v2165 = vpop.permute.xlu0 %2164
      %v2167 = vmul.f32 %v2153, %v228
      %v2168 = vmul.f32 %v2153, %v232
      %v2169 = vmul.f32 %v2153, %v236
      %v2170 = vmul.f32 %v2153, %v240
      %v2171 = vmul.f32 %v2153, %v280
      %v2172 = vmul.f32 %v2157, %v228
      %v2173 = vmul.f32 %v2157, %v232
      %v2174 = vmul.f32 %v2157, %v236
      %v2175 = vmul.f32 %v2157, %v240
      %v2176 = vmul.f32 %v2157, %v280
      %v2177 = vmul.f32 %v2161, %v228
      %v2178 = vmul.f32 %v2161, %v232
      %v2179 = vmul.f32 %v2161, %v236
      %v2180 = vmul.f32 %v2161, %v240
      %v2181 = vmul.f32 %v2161, %v280
      %v2182 = vmul.f32 %v2165, %v228
      %v2183 = vmul.f32 %v2165, %v232
      %v2184 = vmul.f32 %v2165, %v236
      %v2185 = vmul.f32 %v2165, %v240
      %v2186 = vmul.f32 %v2165, %v280
      %2207 = vrot.lane.b32.xlu0 %v2167, 114
      %v2208 = vpop.permute.xlu0 %2207
      %2209 = vrot.lane.b32.xlu0 %v2168, 114
      %v2210 = vpop.permute.xlu0 %2209
      %2211 = vrot.lane.b32.xlu0 %v2169, 114
      %v2212 = vpop.permute.xlu0 %2211
      %2213 = vrot.lane.b32.xlu0 %v2170, 114
      %v2214 = vpop.permute.xlu0 %2213
      %2215 = vrot.lane.b32.xlu0 %v2171, 114
      %v2216 = vpop.permute.xlu0 %2215
      %2217 = vrot.lane.b32.xlu0 %v2172, 114
      %v2218 = vpop.permute.xlu0 %2217
      %2219 = vrot.lane.b32.xlu0 %v2173, 114
      %v2220 = vpop.permute.xlu0 %2219
      %2221 = vrot.lane.b32.xlu0 %v2174, 114
      %v2222 = vpop.permute.xlu0 %2221
      %2223 = vrot.lane.b32.xlu0 %v2175, 114
      %v2224 = vpop.permute.xlu0 %2223
      %2225 = vrot.lane.b32.xlu0 %v2176, 114
      %v2226 = vpop.permute.xlu0 %2225
      %2227 = vrot.lane.b32.xlu0 %v2177, 114
      %v2228 = vpop.permute.xlu0 %2227
      %2229 = vrot.lane.b32.xlu0 %v2178, 114
      %v2230 = vpop.permute.xlu0 %2229
      %2231 = vrot.lane.b32.xlu0 %v2179, 114
      %v2232 = vpop.permute.xlu0 %2231
      %2233 = vrot.lane.b32.xlu0 %v2180, 114
      %v2234 = vpop.permute.xlu0 %2233
      %2235 = vrot.lane.b32.xlu0 %v2181, 114
      %v2236 = vpop.permute.xlu0 %2235
      %2237 = vrot.lane.b32.xlu0 %v2182, 114
      %v2238 = vpop.permute.xlu0 %2237
      %2239 = vrot.lane.b32.xlu0 %v2183, 114
      %v2240 = vpop.permute.xlu0 %2239
      %2241 = vrot.lane.b32.xlu0 %v2184, 114
      %v2242 = vpop.permute.xlu0 %2241
      %2243 = vrot.lane.b32.xlu0 %v2185, 114
      %v2244 = vpop.permute.xlu0 %2243
      %2245 = vrot.lane.b32.xlu0 %v2186, 114
      %v2246 = vpop.permute.xlu0 %2245
      %vm2247 = vcmask 932864
      %v2248 = vsel %vm2247, %v2208, %v2210
      %v2249 = vsel %vm2247, %v2210, %v2212
      %v2250 = vsel %vm2247, %v2212, %v2214
      %v2251 = vsel %vm2247, %v2214, %v2216
      %v2252 = vsel %vm2247, %v2218, %v2220
      %v2253 = vsel %vm2247, %v2220, %v2222
      %v2254 = vsel %vm2247, %v2222, %v2224
      %v2255 = vsel %vm2247, %v2224, %v2226
      %v2256 = vsel %vm2247, %v2228, %v2230
      %v2257 = vsel %vm2247, %v2230, %v2232
      %v2258 = vsel %vm2247, %v2232, %v2234
      %v2259 = vsel %vm2247, %v2234, %v2236
      %v2260 = vsel %vm2247, %v2238, %v2240
      %v2261 = vsel %vm2247, %v2240, %v2242
      %v2262 = vsel %vm2247, %v2242, %v2244
      %v2263 = vsel %vm2247, %v2244, %v2246
      %v2280 = vadd.f32 %v2135, %v2248
      %v2281 = vadd.f32 %v2136, %v2249
      %v2282 = vadd.f32 %v2137, %v2250
      %v2283 = vadd.f32 %v2138, %v2251
      %v2284 = vadd.f32 %v2139, %v2252
      %v2285 = vadd.f32 %v2140, %v2253
      %v2286 = vadd.f32 %v2141, %v2254
      %v2287 = vadd.f32 %v2142, %v2255
      %v2288 = vadd.f32 %v2143, %v2256
      %v2289 = vadd.f32 %v2144, %v2257
      %v2290 = vadd.f32 %v2145, %v2258
      %v2291 = vadd.f32 %v2146, %v2259
      %v2292 = vadd.f32 %v2147, %v2260
      %v2293 = vadd.f32 %v2148, %v2261
      %v2294 = vadd.f32 %v2149, %v2262
      %v2295 = vadd.f32 %v2150, %v2263
      %2297 = vset.pattern.permute.xlu0 0
      %2298 = vperm.xlu0 %2297, %v196
      %v2299 = vpop.permute.xlu0 %2298
      %2302 = vset.pattern.permute.xlu0 0
      %2303 = vperm.xlu0 %2302, %v197
      %v2304 = vpop.permute.xlu0 %2303
      %2307 = vset.pattern.permute.xlu0 0
      %2308 = vperm.xlu0 %2307, %v198
      %v2309 = vpop.permute.xlu0 %2308
      %2312 = vset.pattern.permute.xlu0 0
      %2313 = vperm.xlu0 %2312, %v199
      %v2314 = vpop.permute.xlu0 %2313
      %v2316 = vadd.f32 %v2280, %v2299
      %v2317 = vadd.f32 %v2281, %v2299
      %v2318 = vadd.f32 %v2282, %v2299
      %v2319 = vadd.f32 %v2283, %v2299
      %v2320 = vadd.f32 %v2284, %v2304
      %v2321 = vadd.f32 %v2285, %v2304
      %v2322 = vadd.f32 %v2286, %v2304
      %v2323 = vadd.f32 %v2287, %v2304
      %v2324 = vadd.f32 %v2288, %v2309
      %v2325 = vadd.f32 %v2289, %v2309
      %v2326 = vadd.f32 %v2290, %v2309
      %v2327 = vadd.f32 %v2291, %v2309
      %v2328 = vadd.f32 %v2292, %v2314
      %v2329 = vadd.f32 %v2293, %v2314
      %v2330 = vadd.f32 %v2294, %v2314
      %v2331 = vadd.f32 %v2295, %v2314
      %v2332 = vmax.f32 %v2316, 0.0
      %v2333 = vmax.f32 %v2317, 0.0
      %v2334 = vmax.f32 %v2318, 0.0
      %v2335 = vmax.f32 %v2319, 0.0
      %v2336 = vmax.f32 %v2320, 0.0
      %v2337 = vmax.f32 %v2321, 0.0
      %v2338 = vmax.f32 %v2322, 0.0
      %v2339 = vmax.f32 %v2323, 0.0
      %v2340 = vmax.f32 %v2324, 0.0
      %v2341 = vmax.f32 %v2325, 0.0
      %v2342 = vmax.f32 %v2326, 0.0
      %v2343 = vmax.f32 %v2327, 0.0
      %v2344 = vmax.f32 %v2328, 0.0
      %v2345 = vmax.f32 %v2329, 0.0
      %v2346 = vmax.f32 %v2330, 0.0
      %v2347 = vmax.f32 %v2331, 0.0
      %2348 = vset.pattern.permute.xlu0 1
      %2349 = vperm.xlu0 %2348, %v196
      %v2350 = vpop.permute.xlu0 %2349
      %2352 = vset.pattern.permute.xlu0 1
      %2353 = vperm.xlu0 %2352, %v197
      %v2354 = vpop.permute.xlu0 %2353
      %2356 = vset.pattern.permute.xlu0 1
      %2357 = vperm.xlu0 %2356, %v198
      %v2358 = vpop.permute.xlu0 %2357
      %2360 = vset.pattern.permute.xlu0 1
      %2361 = vperm.xlu0 %2360, %v199
      %v2362 = vpop.permute.xlu0 %2361
      %v2364 = vmul.f32 %v228, %v2350
      %v2365 = vmul.f32 %v232, %v2350
      %v2366 = vmul.f32 %v236, %v2350
      %v2367 = vmul.f32 %v240, %v2350
      %v2368 = vmul.f32 %v280, %v2350
      %v2369 = vmul.f32 %v228, %v2354
      %v2370 = vmul.f32 %v232, %v2354
      %v2371 = vmul.f32 %v236, %v2354
      %v2372 = vmul.f32 %v240, %v2354
      %v2373 = vmul.f32 %v280, %v2354
      %v2374 = vmul.f32 %v228, %v2358
      %v2375 = vmul.f32 %v232, %v2358
      %v2376 = vmul.f32 %v236, %v2358
      %v2377 = vmul.f32 %v240, %v2358
      %v2378 = vmul.f32 %v280, %v2358
      %v2379 = vmul.f32 %v228, %v2362
      %v2380 = vmul.f32 %v232, %v2362
      %v2381 = vmul.f32 %v236, %v2362
      %v2382 = vmul.f32 %v240, %v2362
      %v2383 = vmul.f32 %v280, %v2362
      %2384 = vset.pattern.permute.xlu0 2
      %2385 = vperm.xlu0 %2384, %v196
      %v2386 = vpop.permute.xlu0 %2385
      %2388 = vset.pattern.permute.xlu0 2
      %2389 = vperm.xlu0 %2388, %v197
      %v2390 = vpop.permute.xlu0 %2389
      %2392 = vset.pattern.permute.xlu0 2
      %2393 = vperm.xlu0 %2392, %v198
      %v2394 = vpop.permute.xlu0 %2393
      %2396 = vset.pattern.permute.xlu0 2
      %2397 = vperm.xlu0 %2396, %v199
      %v2398 = vpop.permute.xlu0 %2397
      %v2400 = vadd.f32 %v2364, %v2386
      %v2401 = vadd.f32 %v2365, %v2386
      %v2402 = vadd.f32 %v2366, %v2386
      %v2403 = vadd.f32 %v2367, %v2386
      %v2404 = vadd.f32 %v2368, %v2386
      %v2405 = vadd.f32 %v2369, %v2390
      %v2406 = vadd.f32 %v2370, %v2390
      %v2407 = vadd.f32 %v2371, %v2390
      %v2408 = vadd.f32 %v2372, %v2390
      %v2409 = vadd.f32 %v2373, %v2390
      %v2410 = vadd.f32 %v2374, %v2394
      %v2411 = vadd.f32 %v2375, %v2394
      %v2412 = vadd.f32 %v2376, %v2394
      %v2413 = vadd.f32 %v2377, %v2394
      %v2414 = vadd.f32 %v2378, %v2394
      %v2415 = vadd.f32 %v2379, %v2398
      %v2416 = vadd.f32 %v2380, %v2398
      %v2417 = vadd.f32 %v2381, %v2398
      %v2418 = vadd.f32 %v2382, %v2398
      %v2419 = vadd.f32 %v2383, %v2398
      %v2420 = vmax.f32 %v2400, 0.0
      %v2421 = vmax.f32 %v2401, 0.0
      %v2422 = vmax.f32 %v2402, 0.0
      %v2423 = vmax.f32 %v2403, 0.0
      %v2424 = vmax.f32 %v2404, 0.0
      %v2425 = vmax.f32 %v2405, 0.0
      %v2426 = vmax.f32 %v2406, 0.0
      %v2427 = vmax.f32 %v2407, 0.0
      %v2428 = vmax.f32 %v2408, 0.0
      %v2429 = vmax.f32 %v2409, 0.0
      %v2430 = vmax.f32 %v2410, 0.0
      %v2431 = vmax.f32 %v2411, 0.0
      %v2432 = vmax.f32 %v2412, 0.0
      %v2433 = vmax.f32 %v2413, 0.0
      %v2434 = vmax.f32 %v2414, 0.0
      %v2435 = vmax.f32 %v2415, 0.0
      %v2436 = vmax.f32 %v2416, 0.0
      %v2437 = vmax.f32 %v2417, 0.0
      %v2438 = vmax.f32 %v2418, 0.0
      %v2439 = vmax.f32 %v2419, 0.0
      %2440 = vset.pattern.permute.xlu0 3
      %2441 = vperm.xlu0 %2440, %v196
      %v2442 = vpop.permute.xlu0 %2441
      %2444 = vset.pattern.permute.xlu0 3
      %2445 = vperm.xlu0 %2444, %v197
      %v2446 = vpop.permute.xlu0 %2445
      %2448 = vset.pattern.permute.xlu0 3
      %2449 = vperm.xlu0 %2448, %v198
      %v2450 = vpop.permute.xlu0 %2449
      %2452 = vset.pattern.permute.xlu0 3
      %2453 = vperm.xlu0 %2452, %v199
      %v2454 = vpop.permute.xlu0 %2453
      %v2456 = vmul.f32 %v2332, %v2442
      %v2457 = vmul.f32 %v2333, %v2442
      %v2458 = vmul.f32 %v2334, %v2442
      %v2459 = vmul.f32 %v2335, %v2442
      %v2460 = vmul.f32 %v2336, %v2446
      %v2461 = vmul.f32 %v2337, %v2446
      %v2462 = vmul.f32 %v2338, %v2446
      %v2463 = vmul.f32 %v2339, %v2446
      %v2464 = vmul.f32 %v2340, %v2450
      %v2465 = vmul.f32 %v2341, %v2450
      %v2466 = vmul.f32 %v2342, %v2450
      %v2467 = vmul.f32 %v2343, %v2450
      %v2468 = vmul.f32 %v2344, %v2454
      %v2469 = vmul.f32 %v2345, %v2454
      %v2470 = vmul.f32 %v2346, %v2454
      %v2471 = vmul.f32 %v2347, %v2454
      %2472 = vset.pattern.permute.xlu0 4
      %2473 = vperm.xlu0 %2472, %v196
      %v2474 = vpop.permute.xlu0 %2473
      %2476 = vset.pattern.permute.xlu0 4
      %2477 = vperm.xlu0 %2476, %v197
      %v2478 = vpop.permute.xlu0 %2477
      %2480 = vset.pattern.permute.xlu0 4
      %2481 = vperm.xlu0 %2480, %v198
      %v2482 = vpop.permute.xlu0 %2481
      %2484 = vset.pattern.permute.xlu0 4
      %2485 = vperm.xlu0 %2484, %v199
      %v2486 = vpop.permute.xlu0 %2485
      %v2488 = vadd.f32 %v2456, %v2474
      %v2489 = vadd.f32 %v2457, %v2474
      %v2490 = vadd.f32 %v2458, %v2474
      %v2491 = vadd.f32 %v2459, %v2474
      %v2492 = vadd.f32 %v2460, %v2478
      %v2493 = vadd.f32 %v2461, %v2478
      %v2494 = vadd.f32 %v2462, %v2478
      %v2495 = vadd.f32 %v2463, %v2478
      %v2496 = vadd.f32 %v2464, %v2482
      %v2497 = vadd.f32 %v2465, %v2482
      %v2498 = vadd.f32 %v2466, %v2482
      %v2499 = vadd.f32 %v2467, %v2482
      %v2500 = vadd.f32 %v2468, %v2486
      %v2501 = vadd.f32 %v2469, %v2486
      %v2502 = vadd.f32 %v2470, %v2486
      %v2503 = vadd.f32 %v2471, %v2486
      %2524 = vrot.lane.b32.xlu0 %v2420, 121
      %v2525 = vpop.permute.xlu0 %2524
      %2526 = vrot.lane.b32.xlu0 %v2421, 121
      %v2527 = vpop.permute.xlu0 %2526
      %2528 = vrot.lane.b32.xlu0 %v2422, 121
      %v2529 = vpop.permute.xlu0 %2528
      %2530 = vrot.lane.b32.xlu0 %v2423, 121
      %v2531 = vpop.permute.xlu0 %2530
      %2532 = vrot.lane.b32.xlu0 %v2424, 121
      %v2533 = vpop.permute.xlu0 %2532
      %2534 = vrot.lane.b32.xlu0 %v2425, 121
      %v2535 = vpop.permute.xlu0 %2534
      %2536 = vrot.lane.b32.xlu0 %v2426, 121
      %v2537 = vpop.permute.xlu0 %2536
      %2538 = vrot.lane.b32.xlu0 %v2427, 121
      %v2539 = vpop.permute.xlu0 %2538
      %2540 = vrot.lane.b32.xlu0 %v2428, 121
      %v2541 = vpop.permute.xlu0 %2540
      %2542 = vrot.lane.b32.xlu0 %v2429, 121
      %v2543 = vpop.permute.xlu0 %2542
      %2544 = vrot.lane.b32.xlu0 %v2430, 121
      %v2545 = vpop.permute.xlu0 %2544
      %2546 = vrot.lane.b32.xlu0 %v2431, 121
      %v2547 = vpop.permute.xlu0 %2546
      %2548 = vrot.lane.b32.xlu0 %v2432, 121
      %v2549 = vpop.permute.xlu0 %2548
      %2550 = vrot.lane.b32.xlu0 %v2433, 121
      %v2551 = vpop.permute.xlu0 %2550
      %2552 = vrot.lane.b32.xlu0 %v2434, 121
      %v2553 = vpop.permute.xlu0 %2552
      %2554 = vrot.lane.b32.xlu0 %v2435, 121
      %v2555 = vpop.permute.xlu0 %2554
      %2556 = vrot.lane.b32.xlu0 %v2436, 121
      %v2557 = vpop.permute.xlu0 %2556
      %2558 = vrot.lane.b32.xlu0 %v2437, 121
      %v2559 = vpop.permute.xlu0 %2558
      %2560 = vrot.lane.b32.xlu0 %v2438, 121
      %v2561 = vpop.permute.xlu0 %2560
      %2562 = vrot.lane.b32.xlu0 %v2439, 121
      %v2563 = vpop.permute.xlu0 %2562
      %v2564 = vsel %vm1232, %v2525, %v2527
      %v2565 = vsel %vm1232, %v2527, %v2529
      %v2566 = vsel %vm1232, %v2529, %v2531
      %v2567 = vsel %vm1232, %v2531, %v2533
      %v2568 = vsel %vm1232, %v2535, %v2537
      %v2569 = vsel %vm1232, %v2537, %v2539
      %v2570 = vsel %vm1232, %v2539, %v2541
      %v2571 = vsel %vm1232, %v2541, %v2543
      %v2572 = vsel %vm1232, %v2545, %v2547
      %v2573 = vsel %vm1232, %v2547, %v2549
      %v2574 = vsel %vm1232, %v2549, %v2551
      %v2575 = vsel %vm1232, %v2551, %v2553
      %v2576 = vsel %vm1232, %v2555, %v2557
      %v2577 = vsel %vm1232, %v2557, %v2559
      %v2578 = vsel %vm1232, %v2559, %v2561
      %v2579 = vsel %vm1232, %v2561, %v2563
      %v2596 = vadd.f32 %v2488, %v2564
      %v2597 = vadd.f32 %v2489, %v2565
      %v2598 = vadd.f32 %v2490, %v2566
      %v2599 = vadd.f32 %v2491, %v2567
      %v2600 = vadd.f32 %v2492, %v2568
      %v2601 = vadd.f32 %v2493, %v2569
      %v2602 = vadd.f32 %v2494, %v2570
      %v2603 = vadd.f32 %v2495, %v2571
      %v2604 = vadd.f32 %v2496, %v2572
      %v2605 = vadd.f32 %v2497, %v2573
      %v2606 = vadd.f32 %v2498, %v2574
      %v2607 = vadd.f32 %v2499, %v2575
      %v2608 = vadd.f32 %v2500, %v2576
      %v2609 = vadd.f32 %v2501, %v2577
      %v2610 = vadd.f32 %v2502, %v2578
      %v2611 = vadd.f32 %v2503, %v2579
      %v2612 = vmax.f32 %v2596, 0.0
      %v2613 = vmax.f32 %v2597, 0.0
      %v2614 = vmax.f32 %v2598, 0.0
      %v2615 = vmax.f32 %v2599, 0.0
      %v2616 = vmax.f32 %v2600, 0.0
      %v2617 = vmax.f32 %v2601, 0.0
      %v2618 = vmax.f32 %v2602, 0.0
      %v2619 = vmax.f32 %v2603, 0.0
      %v2620 = vmax.f32 %v2604, 0.0
      %v2621 = vmax.f32 %v2605, 0.0
      %v2622 = vmax.f32 %v2606, 0.0
      %v2623 = vmax.f32 %v2607, 0.0
      %v2624 = vmax.f32 %v2608, 0.0
      %v2625 = vmax.f32 %v2609, 0.0
      %v2626 = vmax.f32 %v2610, 0.0
      %v2627 = vmax.f32 %v2611, 0.0
      %v2628 = vmul.f32 %v2612, %v2442
      %v2629 = vmul.f32 %v2613, %v2442
      %v2630 = vmul.f32 %v2614, %v2442
      %v2631 = vmul.f32 %v2615, %v2442
      %v2632 = vmul.f32 %v2616, %v2446
      %v2633 = vmul.f32 %v2617, %v2446
      %v2634 = vmul.f32 %v2618, %v2446
      %v2635 = vmul.f32 %v2619, %v2446
      %v2636 = vmul.f32 %v2620, %v2450
      %v2637 = vmul.f32 %v2621, %v2450
      %v2638 = vmul.f32 %v2622, %v2450
      %v2639 = vmul.f32 %v2623, %v2450
      %v2640 = vmul.f32 %v2624, %v2454
      %v2641 = vmul.f32 %v2625, %v2454
      %v2642 = vmul.f32 %v2626, %v2454
      %v2643 = vmul.f32 %v2627, %v2454
      %v2644 = vadd.f32 %v2628, %v2474
      %v2645 = vadd.f32 %v2629, %v2474
      %v2646 = vadd.f32 %v2630, %v2474
      %v2647 = vadd.f32 %v2631, %v2474
      %v2648 = vadd.f32 %v2632, %v2478
      %v2649 = vadd.f32 %v2633, %v2478
      %v2650 = vadd.f32 %v2634, %v2478
      %v2651 = vadd.f32 %v2635, %v2478
      %v2652 = vadd.f32 %v2636, %v2482
      %v2653 = vadd.f32 %v2637, %v2482
      %v2654 = vadd.f32 %v2638, %v2482
      %v2655 = vadd.f32 %v2639, %v2482
      %v2656 = vadd.f32 %v2640, %v2486
      %v2657 = vadd.f32 %v2641, %v2486
      %v2658 = vadd.f32 %v2642, %v2486
      %v2659 = vadd.f32 %v2643, %v2486
      %2660 = vst [vmem:[%s189] sm:$0xff] %v2644
      %2661 = vst [vmem:[%s189 + $0x8] sm:$0xff] %v2645
      %2662 = vst [vmem:[%s189 + $0x10] sm:$0xff] %v2646
      %2663 = vst [vmem:[%s189 + $0x18] sm:$0xff] %v2647
      %2664 = vst [vmem:[%s189 + $0x40] sm:$0xff] %v2648
      %2665 = vst [vmem:[%s189 + $0x48] sm:$0xff] %v2649
      %2666 = vst [vmem:[%s189 + $0x50] sm:$0xff] %v2650
      %2667 = vst [vmem:[%s189 + $0x58] sm:$0xff] %v2651
      %2668 = vst [vmem:[%s189 + $0x80] sm:$0xff] %v2652
      %2669 = vst [vmem:[%s189 + $0x88] sm:$0xff] %v2653
      %2670 = vst [vmem:[%s189 + $0x90] sm:$0xff] %v2654
      %2671 = vst [vmem:[%s189 + $0x98] sm:$0xff] %v2655
      %2672 = vst [vmem:[%s189 + $0xc0] sm:$0xf] %v2656
      %2673 = vst [vmem:[%s189 + $0xc8] sm:$0xf] %v2657
      %2674 = vst [vmem:[%s189 + $0xd0] sm:$0xf] %v2658
      %2675 = vst [vmem:[%s189 + $0xd8] sm:$0xf] %v2659
      %s2676 = sadd.s32 %s191, 512
      %s2677 = sshra.s32 %s2676, 7
      %s2678 = sand.u32 %s2676, 127
      %s2679 = scalar_lea.vmem %s180, %s2677
      %v2680 = vld [vmem:[%s2679] sm:$0x1f]
      %v2682 = vlaneseq
      %v2683 = vshrl.u32 %v2682, 7
      %v2684 = vsub.s32 0, %v2683
      %v2685 = vrot.slane %v2680, %v2684
      %v2686 = vlaneseq
      %v2687 = vshrl.u32 %v2686, 7
      %v2688 = vsub.s32 1, %v2687
      %v2689 = vrot.slane %v2680, %v2688
      %v2690 = vlaneseq
      %v2691 = vshrl.u32 %v2690, 7
      %v2692 = vsub.s32 2, %v2691
      %v2693 = vrot.slane %v2680, %v2692
      %v2694 = vlaneseq
      %v2695 = vshrl.u32 %v2694, 7
      %v2696 = vsub.s32 3, %v2695
      %v2697 = vrot.slane %v2680, %v2696
      %v2702 = vmul.f32 %v207, %v2685
      %v2703 = vmul.f32 %v207, %v2689
      %v2704 = vmul.f32 %v207, %v2693
      %v2705 = vmul.f32 %v207, %v2697
      %v2706 = vmul.f32 %v212, %v2685
      %v2707 = vmul.f32 %v212, %v2689
      %v2708 = vmul.f32 %v212, %v2693
      %v2709 = vmul.f32 %v212, %v2697
      %v2710 = vmul.f32 %v217, %v2685
      %v2711 = vmul.f32 %v217, %v2689
      %v2712 = vmul.f32 %v217, %v2693
      %v2713 = vmul.f32 %v217, %v2697
      %v2714 = vmul.f32 %v222, %v2685
      %v2715 = vmul.f32 %v222, %v2689
      %v2716 = vmul.f32 %v222, %v2693
      %v2717 = vmul.f32 %v222, %v2697
      %v2718 = vlaneseq
      %v2719 = vshrl.u32 %v2718, 7
      %v2720 = vsub.s32 4, %v2719
      %v2721 = vrot.slane %v2680, %v2720
      %v2723 = vmul.f32 %v263, %v2685
      %v2724 = vmul.f32 %v263, %v2689
      %v2725 = vmul.f32 %v263, %v2693
      %v2726 = vmul.f32 %v263, %v2697
      %v2727 = vmul.f32 %v263, %v2721
      %v2728 = vmul.f32 %v267, %v2685
      %v2729 = vmul.f32 %v267, %v2689
      %v2730 = vmul.f32 %v267, %v2693
      %v2731 = vmul.f32 %v267, %v2697
      %v2732 = vmul.f32 %v267, %v2721
      %v2733 = vmul.f32 %v271, %v2685
      %v2734 = vmul.f32 %v271, %v2689
      %v2735 = vmul.f32 %v271, %v2693
      %v2736 = vmul.f32 %v271, %v2697
      %v2737 = vmul.f32 %v271, %v2721
      %v2738 = vmul.f32 %v275, %v2685
      %v2739 = vmul.f32 %v275, %v2689
      %v2740 = vmul.f32 %v275, %v2693
      %v2741 = vmul.f32 %v275, %v2697
      %v2742 = vmul.f32 %v275, %v2721
      %2763 = vrot.lane.b32.xlu0 %v2723, 127
      %v2764 = vpop.permute.xlu0 %2763
      %2765 = vrot.lane.b32.xlu0 %v2724, 127
      %v2766 = vpop.permute.xlu0 %2765
      %2767 = vrot.lane.b32.xlu0 %v2725, 127
      %v2768 = vpop.permute.xlu0 %2767
      %2769 = vrot.lane.b32.xlu0 %v2726, 127
      %v2770 = vpop.permute.xlu0 %2769
      %2771 = vrot.lane.b32.xlu0 %v2727, 127
      %v2772 = vpop.permute.xlu0 %2771
      %2773 = vrot.lane.b32.xlu0 %v2728, 127
      %v2774 = vpop.permute.xlu0 %2773
      %2775 = vrot.lane.b32.xlu0 %v2729, 127
      %v2776 = vpop.permute.xlu0 %2775
      %2777 = vrot.lane.b32.xlu0 %v2730, 127
      %v2778 = vpop.permute.xlu0 %2777
      %2779 = vrot.lane.b32.xlu0 %v2731, 127
      %v2780 = vpop.permute.xlu0 %2779
      %2781 = vrot.lane.b32.xlu0 %v2732, 127
      %v2782 = vpop.permute.xlu0 %2781
      %2783 = vrot.lane.b32.xlu0 %v2733, 127
      %v2784 = vpop.permute.xlu0 %2783
      %2785 = vrot.lane.b32.xlu0 %v2734, 127
      %v2786 = vpop.permute.xlu0 %2785
      %2787 = vrot.lane.b32.xlu0 %v2735, 127
      %v2788 = vpop.permute.xlu0 %2787
      %2789 = vrot.lane.b32.xlu0 %v2736, 127
      %v2790 = vpop.permute.xlu0 %2789
      %2791 = vrot.lane.b32.xlu0 %v2737, 127
      %v2792 = vpop.permute.xlu0 %2791
      %2793 = vrot.lane.b32.xlu0 %v2738, 127
      %v2794 = vpop.permute.xlu0 %2793
      %2795 = vrot.lane.b32.xlu0 %v2739, 127
      %v2796 = vpop.permute.xlu0 %2795
      %2797 = vrot.lane.b32.xlu0 %v2740, 127
      %v2798 = vpop.permute.xlu0 %2797
      %2799 = vrot.lane.b32.xlu0 %v2741, 127
      %v2800 = vpop.permute.xlu0 %2799
      %2801 = vrot.lane.b32.xlu0 %v2742, 127
      %v2802 = vpop.permute.xlu0 %2801
      %v2803 = vsel %vm362, %v2764, %v2766
      %v2804 = vsel %vm362, %v2766, %v2768
      %v2805 = vsel %vm362, %v2768, %v2770
      %v2806 = vsel %vm362, %v2770, %v2772
      %v2807 = vsel %vm362, %v2774, %v2776
      %v2808 = vsel %vm362, %v2776, %v2778
      %v2809 = vsel %vm362, %v2778, %v2780
      %v2810 = vsel %vm362, %v2780, %v2782
      %v2811 = vsel %vm362, %v2784, %v2786
      %v2812 = vsel %vm362, %v2786, %v2788
      %v2813 = vsel %vm362, %v2788, %v2790
      %v2814 = vsel %vm362, %v2790, %v2792
      %v2815 = vsel %vm362, %v2794, %v2796
      %v2816 = vsel %vm362, %v2796, %v2798
      %v2817 = vsel %vm362, %v2798, %v2800
      %v2818 = vsel %vm362, %v2800, %v2802
      %v2835 = vadd.f32 %v2702, %v2803
      %v2836 = vadd.f32 %v2703, %v2804
      %v2837 = vadd.f32 %v2704, %v2805
      %v2838 = vadd.f32 %v2705, %v2806
      %v2839 = vadd.f32 %v2706, %v2807
      %v2840 = vadd.f32 %v2707, %v2808
      %v2841 = vadd.f32 %v2708, %v2809
      %v2842 = vadd.f32 %v2709, %v2810
      %v2843 = vadd.f32 %v2710, %v2811
      %v2844 = vadd.f32 %v2711, %v2812
      %v2845 = vadd.f32 %v2712, %v2813
      %v2846 = vadd.f32 %v2713, %v2814
      %v2847 = vadd.f32 %v2714, %v2815
      %v2848 = vadd.f32 %v2715, %v2816
      %v2849 = vadd.f32 %v2716, %v2817
      %v2850 = vadd.f32 %v2717, %v2818
      %v2851 = vmul.f32 %v413, %v2685
      %v2852 = vmul.f32 %v413, %v2689
      %v2853 = vmul.f32 %v413, %v2693
      %v2854 = vmul.f32 %v413, %v2697
      %v2855 = vmul.f32 %v413, %v2721
      %v2856 = vmul.f32 %v417, %v2685
      %v2857 = vmul.f32 %v417, %v2689
      %v2858 = vmul.f32 %v417, %v2693
      %v2859 = vmul.f32 %v417, %v2697
      %v2860 = vmul.f32 %v417, %v2721
      %v2861 = vmul.f32 %v421, %v2685
      %v2862 = vmul.f32 %v421, %v2689
      %v2863 = vmul.f32 %v421, %v2693
      %v2864 = vmul.f32 %v421, %v2697
      %v2865 = vmul.f32 %v421, %v2721
      %v2866 = vmul.f32 %v425, %v2685
      %v2867 = vmul.f32 %v425, %v2689
      %v2868 = vmul.f32 %v425, %v2693
      %v2869 = vmul.f32 %v425, %v2697
      %v2870 = vmul.f32 %v425, %v2721
      %2891 = vrot.lane.b32.xlu0 %v2851, 126
      %v2892 = vpop.permute.xlu0 %2891
      %2893 = vrot.lane.b32.xlu0 %v2852, 126
      %v2894 = vpop.permute.xlu0 %2893
      %2895 = vrot.lane.b32.xlu0 %v2853, 126
      %v2896 = vpop.permute.xlu0 %2895
      %2897 = vrot.lane.b32.xlu0 %v2854, 126
      %v2898 = vpop.permute.xlu0 %2897
      %2899 = vrot.lane.b32.xlu0 %v2855, 126
      %v2900 = vpop.permute.xlu0 %2899
      %2901 = vrot.lane.b32.xlu0 %v2856, 126
      %v2902 = vpop.permute.xlu0 %2901
      %2903 = vrot.lane.b32.xlu0 %v2857, 126
      %v2904 = vpop.permute.xlu0 %2903
      %2905 = vrot.lane.b32.xlu0 %v2858, 126
      %v2906 = vpop.permute.xlu0 %2905
      %2907 = vrot.lane.b32.xlu0 %v2859, 126
      %v2908 = vpop.permute.xlu0 %2907
      %2909 = vrot.lane.b32.xlu0 %v2860, 126
      %v2910 = vpop.permute.xlu0 %2909
      %2911 = vrot.lane.b32.xlu0 %v2861, 126
      %v2912 = vpop.permute.xlu0 %2911
      %2913 = vrot.lane.b32.xlu0 %v2862, 126
      %v2914 = vpop.permute.xlu0 %2913
      %2915 = vrot.lane.b32.xlu0 %v2863, 126
      %v2916 = vpop.permute.xlu0 %2915
      %2917 = vrot.lane.b32.xlu0 %v2864, 126
      %v2918 = vpop.permute.xlu0 %2917
      %2919 = vrot.lane.b32.xlu0 %v2865, 126
      %v2920 = vpop.permute.xlu0 %2919
      %2921 = vrot.lane.b32.xlu0 %v2866, 126
      %v2922 = vpop.permute.xlu0 %2921
      %2923 = vrot.lane.b32.xlu0 %v2867, 126
      %v2924 = vpop.permute.xlu0 %2923
      %2925 = vrot.lane.b32.xlu0 %v2868, 126
      %v2926 = vpop.permute.xlu0 %2925
      %2927 = vrot.lane.b32.xlu0 %v2869, 126
      %v2928 = vpop.permute.xlu0 %2927
      %2929 = vrot.lane.b32.xlu0 %v2870, 126
      %v2930 = vpop.permute.xlu0 %2929
      %v2931 = vsel %vm507, %v2892, %v2894
      %v2932 = vsel %vm507, %v2894, %v2896
      %v2933 = vsel %vm507, %v2896, %v2898
      %v2934 = vsel %vm507, %v2898, %v2900
      %v2935 = vsel %vm507, %v2902, %v2904
      %v2936 = vsel %vm507, %v2904, %v2906
      %v2937 = vsel %vm507, %v2906, %v2908
      %v2938 = vsel %vm507, %v2908, %v2910
      %v2939 = vsel %vm507, %v2912, %v2914
      %v2940 = vsel %vm507, %v2914, %v2916
      %v2941 = vsel %vm507, %v2916, %v2918
      %v2942 = vsel %vm507, %v2918, %v2920
      %v2943 = vsel %vm507, %v2922, %v2924
      %v2944 = vsel %vm507, %v2924, %v2926
      %v2945 = vsel %vm507, %v2926, %v2928
      %v2946 = vsel %vm507, %v2928, %v2930
      %v2963 = vadd.f32 %v2835, %v2931
      %v2964 = vadd.f32 %v2836, %v2932
      %v2965 = vadd.f32 %v2837, %v2933
      %v2966 = vadd.f32 %v2838, %v2934
      %v2967 = vadd.f32 %v2839, %v2935
      %v2968 = vadd.f32 %v2840, %v2936
      %v2969 = vadd.f32 %v2841, %v2937
      %v2970 = vadd.f32 %v2842, %v2938
      %v2971 = vadd.f32 %v2843, %v2939
      %v2972 = vadd.f32 %v2844, %v2940
      %v2973 = vadd.f32 %v2845, %v2941
      %v2974 = vadd.f32 %v2846, %v2942
      %v2975 = vadd.f32 %v2847, %v2943
      %v2976 = vadd.f32 %v2848, %v2944
      %v2977 = vadd.f32 %v2849, %v2945
      %v2978 = vadd.f32 %v2850, %v2946
      %v2979 = vmul.f32 %v558, %v2685
      %v2980 = vmul.f32 %v558, %v2689
      %v2981 = vmul.f32 %v558, %v2693
      %v2982 = vmul.f32 %v558, %v2697
      %v2983 = vmul.f32 %v558, %v2721
      %v2984 = vmul.f32 %v562, %v2685
      %v2985 = vmul.f32 %v562, %v2689
      %v2986 = vmul.f32 %v562, %v2693
      %v2987 = vmul.f32 %v562, %v2697
      %v2988 = vmul.f32 %v562, %v2721
      %v2989 = vmul.f32 %v566, %v2685
      %v2990 = vmul.f32 %v566, %v2689
      %v2991 = vmul.f32 %v566, %v2693
      %v2992 = vmul.f32 %v566, %v2697
      %v2993 = vmul.f32 %v566, %v2721
      %v2994 = vmul.f32 %v570, %v2685
      %v2995 = vmul.f32 %v570, %v2689
      %v2996 = vmul.f32 %v570, %v2693
      %v2997 = vmul.f32 %v570, %v2697
      %v2998 = vmul.f32 %v570, %v2721
      %3019 = vrot.lane.b32.xlu0 %v2979, 125
      %v3020 = vpop.permute.xlu0 %3019
      %3021 = vrot.lane.b32.xlu0 %v2980, 125
      %v3022 = vpop.permute.xlu0 %3021
      %3023 = vrot.lane.b32.xlu0 %v2981, 125
      %v3024 = vpop.permute.xlu0 %3023
      %3025 = vrot.lane.b32.xlu0 %v2982, 125
      %v3026 = vpop.permute.xlu0 %3025
      %3027 = vrot.lane.b32.xlu0 %v2983, 125
      %v3028 = vpop.permute.xlu0 %3027
      %3029 = vrot.lane.b32.xlu0 %v2984, 125
      %v3030 = vpop.permute.xlu0 %3029
      %3031 = vrot.lane.b32.xlu0 %v2985, 125
      %v3032 = vpop.permute.xlu0 %3031
      %3033 = vrot.lane.b32.xlu0 %v2986, 125
      %v3034 = vpop.permute.xlu0 %3033
      %3035 = vrot.lane.b32.xlu0 %v2987, 125
      %v3036 = vpop.permute.xlu0 %3035
      %3037 = vrot.lane.b32.xlu0 %v2988, 125
      %v3038 = vpop.permute.xlu0 %3037
      %3039 = vrot.lane.b32.xlu0 %v2989, 125
      %v3040 = vpop.permute.xlu0 %3039
      %3041 = vrot.lane.b32.xlu0 %v2990, 125
      %v3042 = vpop.permute.xlu0 %3041
      %3043 = vrot.lane.b32.xlu0 %v2991, 125
      %v3044 = vpop.permute.xlu0 %3043
      %3045 = vrot.lane.b32.xlu0 %v2992, 125
      %v3046 = vpop.permute.xlu0 %3045
      %3047 = vrot.lane.b32.xlu0 %v2993, 125
      %v3048 = vpop.permute.xlu0 %3047
      %3049 = vrot.lane.b32.xlu0 %v2994, 125
      %v3050 = vpop.permute.xlu0 %3049
      %3051 = vrot.lane.b32.xlu0 %v2995, 125
      %v3052 = vpop.permute.xlu0 %3051
      %3053 = vrot.lane.b32.xlu0 %v2996, 125
      %v3054 = vpop.permute.xlu0 %3053
      %3055 = vrot.lane.b32.xlu0 %v2997, 125
      %v3056 = vpop.permute.xlu0 %3055
      %3057 = vrot.lane.b32.xlu0 %v2998, 125
      %v3058 = vpop.permute.xlu0 %3057
      %v3059 = vsel %vm652, %v3020, %v3022
      %v3060 = vsel %vm652, %v3022, %v3024
      %v3061 = vsel %vm652, %v3024, %v3026
      %v3062 = vsel %vm652, %v3026, %v3028
      %v3063 = vsel %vm652, %v3030, %v3032
      %v3064 = vsel %vm652, %v3032, %v3034
      %v3065 = vsel %vm652, %v3034, %v3036
      %v3066 = vsel %vm652, %v3036, %v3038
      %v3067 = vsel %vm652, %v3040, %v3042
      %v3068 = vsel %vm652, %v3042, %v3044
      %v3069 = vsel %vm652, %v3044, %v3046
      %v3070 = vsel %vm652, %v3046, %v3048
      %v3071 = vsel %vm652, %v3050, %v3052
      %v3072 = vsel %vm652, %v3052, %v3054
      %v3073 = vsel %vm652, %v3054, %v3056
      %v3074 = vsel %vm652, %v3056, %v3058
      %v3091 = vadd.f32 %v2963, %v3059
      %v3092 = vadd.f32 %v2964, %v3060
      %v3093 = vadd.f32 %v2965, %v3061
      %v3094 = vadd.f32 %v2966, %v3062
      %v3095 = vadd.f32 %v2967, %v3063
      %v3096 = vadd.f32 %v2968, %v3064
      %v3097 = vadd.f32 %v2969, %v3065
      %v3098 = vadd.f32 %v2970, %v3066
      %v3099 = vadd.f32 %v2971, %v3067
      %v3100 = vadd.f32 %v2972, %v3068
      %v3101 = vadd.f32 %v2973, %v3069
      %v3102 = vadd.f32 %v2974, %v3070
      %v3103 = vadd.f32 %v2975, %v3071
      %v3104 = vadd.f32 %v2976, %v3072
      %v3105 = vadd.f32 %v2977, %v3073
      %v3106 = vadd.f32 %v2978, %v3074
      %v3107 = vmul.f32 %v703, %v2685
      %v3108 = vmul.f32 %v703, %v2689
      %v3109 = vmul.f32 %v703, %v2693
      %v3110 = vmul.f32 %v703, %v2697
      %v3111 = vmul.f32 %v703, %v2721
      %v3112 = vmul.f32 %v707, %v2685
      %v3113 = vmul.f32 %v707, %v2689
      %v3114 = vmul.f32 %v707, %v2693
      %v3115 = vmul.f32 %v707, %v2697
      %v3116 = vmul.f32 %v707, %v2721
      %v3117 = vmul.f32 %v711, %v2685
      %v3118 = vmul.f32 %v711, %v2689
      %v3119 = vmul.f32 %v711, %v2693
      %v3120 = vmul.f32 %v711, %v2697
      %v3121 = vmul.f32 %v711, %v2721
      %v3122 = vmul.f32 %v715, %v2685
      %v3123 = vmul.f32 %v715, %v2689
      %v3124 = vmul.f32 %v715, %v2693
      %v3125 = vmul.f32 %v715, %v2697
      %v3126 = vmul.f32 %v715, %v2721
      %3147 = vrot.lane.b32.xlu0 %v3107, 124
      %v3148 = vpop.permute.xlu0 %3147
      %3149 = vrot.lane.b32.xlu0 %v3108, 124
      %v3150 = vpop.permute.xlu0 %3149
      %3151 = vrot.lane.b32.xlu0 %v3109, 124
      %v3152 = vpop.permute.xlu0 %3151
      %3153 = vrot.lane.b32.xlu0 %v3110, 124
      %v3154 = vpop.permute.xlu0 %3153
      %3155 = vrot.lane.b32.xlu0 %v3111, 124
      %v3156 = vpop.permute.xlu0 %3155
      %3157 = vrot.lane.b32.xlu0 %v3112, 124
      %v3158 = vpop.permute.xlu0 %3157
      %3159 = vrot.lane.b32.xlu0 %v3113, 124
      %v3160 = vpop.permute.xlu0 %3159
      %3161 = vrot.lane.b32.xlu0 %v3114, 124
      %v3162 = vpop.permute.xlu0 %3161
      %3163 = vrot.lane.b32.xlu0 %v3115, 124
      %v3164 = vpop.permute.xlu0 %3163
      %3165 = vrot.lane.b32.xlu0 %v3116, 124
      %v3166 = vpop.permute.xlu0 %3165
      %3167 = vrot.lane.b32.xlu0 %v3117, 124
      %v3168 = vpop.permute.xlu0 %3167
      %3169 = vrot.lane.b32.xlu0 %v3118, 124
      %v3170 = vpop.permute.xlu0 %3169
      %3171 = vrot.lane.b32.xlu0 %v3119, 124
      %v3172 = vpop.permute.xlu0 %3171
      %3173 = vrot.lane.b32.xlu0 %v3120, 124
      %v3174 = vpop.permute.xlu0 %3173
      %3175 = vrot.lane.b32.xlu0 %v3121, 124
      %v3176 = vpop.permute.xlu0 %3175
      %3177 = vrot.lane.b32.xlu0 %v3122, 124
      %v3178 = vpop.permute.xlu0 %3177
      %3179 = vrot.lane.b32.xlu0 %v3123, 124
      %v3180 = vpop.permute.xlu0 %3179
      %3181 = vrot.lane.b32.xlu0 %v3124, 124
      %v3182 = vpop.permute.xlu0 %3181
      %3183 = vrot.lane.b32.xlu0 %v3125, 124
      %v3184 = vpop.permute.xlu0 %3183
      %3185 = vrot.lane.b32.xlu0 %v3126, 124
      %v3186 = vpop.permute.xlu0 %3185
      %v3187 = vsel %vm797, %v3148, %v3150
      %v3188 = vsel %vm797, %v3150, %v3152
      %v3189 = vsel %vm797, %v3152, %v3154
      %v3190 = vsel %vm797, %v3154, %v3156
      %v3191 = vsel %vm797, %v3158, %v3160
      %v3192 = vsel %vm797, %v3160, %v3162
      %v3193 = vsel %vm797, %v3162, %v3164
      %v3194 = vsel %vm797, %v3164, %v3166
      %v3195 = vsel %vm797, %v3168, %v3170
      %v3196 = vsel %vm797, %v3170, %v3172
      %v3197 = vsel %vm797, %v3172, %v3174
      %v3198 = vsel %vm797, %v3174, %v3176
      %v3199 = vsel %vm797, %v3178, %v3180
      %v3200 = vsel %vm797, %v3180, %v3182
      %v3201 = vsel %vm797, %v3182, %v3184
      %v3202 = vsel %vm797, %v3184, %v3186
      %v3219 = vadd.f32 %v3091, %v3187
      %v3220 = vadd.f32 %v3092, %v3188
      %v3221 = vadd.f32 %v3093, %v3189
      %v3222 = vadd.f32 %v3094, %v3190
      %v3223 = vadd.f32 %v3095, %v3191
      %v3224 = vadd.f32 %v3096, %v3192
      %v3225 = vadd.f32 %v3097, %v3193
      %v3226 = vadd.f32 %v3098, %v3194
      %v3227 = vadd.f32 %v3099, %v3195
      %v3228 = vadd.f32 %v3100, %v3196
      %v3229 = vadd.f32 %v3101, %v3197
      %v3230 = vadd.f32 %v3102, %v3198
      %v3231 = vadd.f32 %v3103, %v3199
      %v3232 = vadd.f32 %v3104, %v3200
      %v3233 = vadd.f32 %v3105, %v3201
      %v3234 = vadd.f32 %v3106, %v3202
      %v3235 = vmul.f32 %v848, %v2685
      %v3236 = vmul.f32 %v848, %v2689
      %v3237 = vmul.f32 %v848, %v2693
      %v3238 = vmul.f32 %v848, %v2697
      %v3239 = vmul.f32 %v848, %v2721
      %v3240 = vmul.f32 %v852, %v2685
      %v3241 = vmul.f32 %v852, %v2689
      %v3242 = vmul.f32 %v852, %v2693
      %v3243 = vmul.f32 %v852, %v2697
      %v3244 = vmul.f32 %v852, %v2721
      %v3245 = vmul.f32 %v856, %v2685
      %v3246 = vmul.f32 %v856, %v2689
      %v3247 = vmul.f32 %v856, %v2693
      %v3248 = vmul.f32 %v856, %v2697
      %v3249 = vmul.f32 %v856, %v2721
      %v3250 = vmul.f32 %v860, %v2685
      %v3251 = vmul.f32 %v860, %v2689
      %v3252 = vmul.f32 %v860, %v2693
      %v3253 = vmul.f32 %v860, %v2697
      %v3254 = vmul.f32 %v860, %v2721
      %3275 = vrot.lane.b32.xlu0 %v3235, 123
      %v3276 = vpop.permute.xlu0 %3275
      %3277 = vrot.lane.b32.xlu0 %v3236, 123
      %v3278 = vpop.permute.xlu0 %3277
      %3279 = vrot.lane.b32.xlu0 %v3237, 123
      %v3280 = vpop.permute.xlu0 %3279
      %3281 = vrot.lane.b32.xlu0 %v3238, 123
      %v3282 = vpop.permute.xlu0 %3281
      %3283 = vrot.lane.b32.xlu0 %v3239, 123
      %v3284 = vpop.permute.xlu0 %3283
      %3285 = vrot.lane.b32.xlu0 %v3240, 123
      %v3286 = vpop.permute.xlu0 %3285
      %3287 = vrot.lane.b32.xlu0 %v3241, 123
      %v3288 = vpop.permute.xlu0 %3287
      %3289 = vrot.lane.b32.xlu0 %v3242, 123
      %v3290 = vpop.permute.xlu0 %3289
      %3291 = vrot.lane.b32.xlu0 %v3243, 123
      %v3292 = vpop.permute.xlu0 %3291
      %3293 = vrot.lane.b32.xlu0 %v3244, 123
      %v3294 = vpop.permute.xlu0 %3293
      %3295 = vrot.lane.b32.xlu0 %v3245, 123
      %v3296 = vpop.permute.xlu0 %3295
      %3297 = vrot.lane.b32.xlu0 %v3246, 123
      %v3298 = vpop.permute.xlu0 %3297
      %3299 = vrot.lane.b32.xlu0 %v3247, 123
      %v3300 = vpop.permute.xlu0 %3299
      %3301 = vrot.lane.b32.xlu0 %v3248, 123
      %v3302 = vpop.permute.xlu0 %3301
      %3303 = vrot.lane.b32.xlu0 %v3249, 123
      %v3304 = vpop.permute.xlu0 %3303
      %3305 = vrot.lane.b32.xlu0 %v3250, 123
      %v3306 = vpop.permute.xlu0 %3305
      %3307 = vrot.lane.b32.xlu0 %v3251, 123
      %v3308 = vpop.permute.xlu0 %3307
      %3309 = vrot.lane.b32.xlu0 %v3252, 123
      %v3310 = vpop.permute.xlu0 %3309
      %3311 = vrot.lane.b32.xlu0 %v3253, 123
      %v3312 = vpop.permute.xlu0 %3311
      %3313 = vrot.lane.b32.xlu0 %v3254, 123
      %v3314 = vpop.permute.xlu0 %3313
      %v3315 = vsel %vm942, %v3276, %v3278
      %v3316 = vsel %vm942, %v3278, %v3280
      %v3317 = vsel %vm942, %v3280, %v3282
      %v3318 = vsel %vm942, %v3282, %v3284
      %v3319 = vsel %vm942, %v3286, %v3288
      %v3320 = vsel %vm942, %v3288, %v3290
      %v3321 = vsel %vm942, %v3290, %v3292
      %v3322 = vsel %vm942, %v3292, %v3294
      %v3323 = vsel %vm942, %v3296, %v3298
      %v3324 = vsel %vm942, %v3298, %v3300
      %v3325 = vsel %vm942, %v3300, %v3302
      %v3326 = vsel %vm942, %v3302, %v3304
      %v3327 = vsel %vm942, %v3306, %v3308
      %v3328 = vsel %vm942, %v3308, %v3310
      %v3329 = vsel %vm942, %v3310, %v3312
      %v3330 = vsel %vm942, %v3312, %v3314
      %v3347 = vadd.f32 %v3219, %v3315
      %v3348 = vadd.f32 %v3220, %v3316
      %v3349 = vadd.f32 %v3221, %v3317
      %v3350 = vadd.f32 %v3222, %v3318
      %v3351 = vadd.f32 %v3223, %v3319
      %v3352 = vadd.f32 %v3224, %v3320
      %v3353 = vadd.f32 %v3225, %v3321
      %v3354 = vadd.f32 %v3226, %v3322
      %v3355 = vadd.f32 %v3227, %v3323
      %v3356 = vadd.f32 %v3228, %v3324
      %v3357 = vadd.f32 %v3229, %v3325
      %v3358 = vadd.f32 %v3230, %v3326
      %v3359 = vadd.f32 %v3231, %v3327
      %v3360 = vadd.f32 %v3232, %v3328
      %v3361 = vadd.f32 %v3233, %v3329
      %v3362 = vadd.f32 %v3234, %v3330
      %v3363 = vmul.f32 %v993, %v2685
      %v3364 = vmul.f32 %v993, %v2689
      %v3365 = vmul.f32 %v993, %v2693
      %v3366 = vmul.f32 %v993, %v2697
      %v3367 = vmul.f32 %v993, %v2721
      %v3368 = vmul.f32 %v997, %v2685
      %v3369 = vmul.f32 %v997, %v2689
      %v3370 = vmul.f32 %v997, %v2693
      %v3371 = vmul.f32 %v997, %v2697
      %v3372 = vmul.f32 %v997, %v2721
      %v3373 = vmul.f32 %v1001, %v2685
      %v3374 = vmul.f32 %v1001, %v2689
      %v3375 = vmul.f32 %v1001, %v2693
      %v3376 = vmul.f32 %v1001, %v2697
      %v3377 = vmul.f32 %v1001, %v2721
      %v3378 = vmul.f32 %v1005, %v2685
      %v3379 = vmul.f32 %v1005, %v2689
      %v3380 = vmul.f32 %v1005, %v2693
      %v3381 = vmul.f32 %v1005, %v2697
      %v3382 = vmul.f32 %v1005, %v2721
      %3403 = vrot.lane.b32.xlu0 %v3363, 122
      %v3404 = vpop.permute.xlu0 %3403
      %3405 = vrot.lane.b32.xlu0 %v3364, 122
      %v3406 = vpop.permute.xlu0 %3405
      %3407 = vrot.lane.b32.xlu0 %v3365, 122
      %v3408 = vpop.permute.xlu0 %3407
      %3409 = vrot.lane.b32.xlu0 %v3366, 122
      %v3410 = vpop.permute.xlu0 %3409
      %3411 = vrot.lane.b32.xlu0 %v3367, 122
      %v3412 = vpop.permute.xlu0 %3411
      %3413 = vrot.lane.b32.xlu0 %v3368, 122
      %v3414 = vpop.permute.xlu0 %3413
      %3415 = vrot.lane.b32.xlu0 %v3369, 122
      %v3416 = vpop.permute.xlu0 %3415
      %3417 = vrot.lane.b32.xlu0 %v3370, 122
      %v3418 = vpop.permute.xlu0 %3417
      %3419 = vrot.lane.b32.xlu0 %v3371, 122
      %v3420 = vpop.permute.xlu0 %3419
      %3421 = vrot.lane.b32.xlu0 %v3372, 122
      %v3422 = vpop.permute.xlu0 %3421
      %3423 = vrot.lane.b32.xlu0 %v3373, 122
      %v3424 = vpop.permute.xlu0 %3423
      %3425 = vrot.lane.b32.xlu0 %v3374, 122
      %v3426 = vpop.permute.xlu0 %3425
      %3427 = vrot.lane.b32.xlu0 %v3375, 122
      %v3428 = vpop.permute.xlu0 %3427
      %3429 = vrot.lane.b32.xlu0 %v3376, 122
      %v3430 = vpop.permute.xlu0 %3429
      %3431 = vrot.lane.b32.xlu0 %v3377, 122
      %v3432 = vpop.permute.xlu0 %3431
      %3433 = vrot.lane.b32.xlu0 %v3378, 122
      %v3434 = vpop.permute.xlu0 %3433
      %3435 = vrot.lane.b32.xlu0 %v3379, 122
      %v3436 = vpop.permute.xlu0 %3435
      %3437 = vrot.lane.b32.xlu0 %v3380, 122
      %v3438 = vpop.permute.xlu0 %3437
      %3439 = vrot.lane.b32.xlu0 %v3381, 122
      %v3440 = vpop.permute.xlu0 %3439
      %3441 = vrot.lane.b32.xlu0 %v3382, 122
      %v3442 = vpop.permute.xlu0 %3441
      %v3443 = vsel %vm1087, %v3404, %v3406
      %v3444 = vsel %vm1087, %v3406, %v3408
      %v3445 = vsel %vm1087, %v3408, %v3410
      %v3446 = vsel %vm1087, %v3410, %v3412
      %v3447 = vsel %vm1087, %v3414, %v3416
      %v3448 = vsel %vm1087, %v3416, %v3418
      %v3449 = vsel %vm1087, %v3418, %v3420
      %v3450 = vsel %vm1087, %v3420, %v3422
      %v3451 = vsel %vm1087, %v3424, %v3426
      %v3452 = vsel %vm1087, %v3426, %v3428
      %v3453 = vsel %vm1087, %v3428, %v3430
      %v3454 = vsel %vm1087, %v3430, %v3432
      %v3455 = vsel %vm1087, %v3434, %v3436
      %v3456 = vsel %vm1087, %v3436, %v3438
      %v3457 = vsel %vm1087, %v3438, %v3440
      %v3458 = vsel %vm1087, %v3440, %v3442
      %v3475 = vadd.f32 %v3347, %v3443
      %v3476 = vadd.f32 %v3348, %v3444
      %v3477 = vadd.f32 %v3349, %v3445
      %v3478 = vadd.f32 %v3350, %v3446
      %v3479 = vadd.f32 %v3351, %v3447
      %v3480 = vadd.f32 %v3352, %v3448
      %v3481 = vadd.f32 %v3353, %v3449
      %v3482 = vadd.f32 %v3354, %v3450
      %v3483 = vadd.f32 %v3355, %v3451
      %v3484 = vadd.f32 %v3356, %v3452
      %v3485 = vadd.f32 %v3357, %v3453
      %v3486 = vadd.f32 %v3358, %v3454
      %v3487 = vadd.f32 %v3359, %v3455
      %v3488 = vadd.f32 %v3360, %v3456
      %v3489 = vadd.f32 %v3361, %v3457
      %v3490 = vadd.f32 %v3362, %v3458
      %v3491 = vmul.f32 %v1138, %v2685
      %v3492 = vmul.f32 %v1138, %v2689
      %v3493 = vmul.f32 %v1138, %v2693
      %v3494 = vmul.f32 %v1138, %v2697
      %v3495 = vmul.f32 %v1138, %v2721
      %v3496 = vmul.f32 %v1142, %v2685
      %v3497 = vmul.f32 %v1142, %v2689
      %v3498 = vmul.f32 %v1142, %v2693
      %v3499 = vmul.f32 %v1142, %v2697
      %v3500 = vmul.f32 %v1142, %v2721
      %v3501 = vmul.f32 %v1146, %v2685
      %v3502 = vmul.f32 %v1146, %v2689
      %v3503 = vmul.f32 %v1146, %v2693
      %v3504 = vmul.f32 %v1146, %v2697
      %v3505 = vmul.f32 %v1146, %v2721
      %v3506 = vmul.f32 %v1150, %v2685
      %v3507 = vmul.f32 %v1150, %v2689
      %v3508 = vmul.f32 %v1150, %v2693
      %v3509 = vmul.f32 %v1150, %v2697
      %v3510 = vmul.f32 %v1150, %v2721
      %3531 = vrot.lane.b32.xlu0 %v3491, 121
      %v3532 = vpop.permute.xlu0 %3531
      %3533 = vrot.lane.b32.xlu0 %v3492, 121
      %v3534 = vpop.permute.xlu0 %3533
      %3535 = vrot.lane.b32.xlu0 %v3493, 121
      %v3536 = vpop.permute.xlu0 %3535
      %3537 = vrot.lane.b32.xlu0 %v3494, 121
      %v3538 = vpop.permute.xlu0 %3537
      %3539 = vrot.lane.b32.xlu0 %v3495, 121
      %v3540 = vpop.permute.xlu0 %3539
      %3541 = vrot.lane.b32.xlu0 %v3496, 121
      %v3542 = vpop.permute.xlu0 %3541
      %3543 = vrot.lane.b32.xlu0 %v3497, 121
      %v3544 = vpop.permute.xlu0 %3543
      %3545 = vrot.lane.b32.xlu0 %v3498, 121
      %v3546 = vpop.permute.xlu0 %3545
      %3547 = vrot.lane.b32.xlu0 %v3499, 121
      %v3548 = vpop.permute.xlu0 %3547
      %3549 = vrot.lane.b32.xlu0 %v3500, 121
      %v3550 = vpop.permute.xlu0 %3549
      %3551 = vrot.lane.b32.xlu0 %v3501, 121
      %v3552 = vpop.permute.xlu0 %3551
      %3553 = vrot.lane.b32.xlu0 %v3502, 121
      %v3554 = vpop.permute.xlu0 %3553
      %3555 = vrot.lane.b32.xlu0 %v3503, 121
      %v3556 = vpop.permute.xlu0 %3555
      %3557 = vrot.lane.b32.xlu0 %v3504, 121
      %v3558 = vpop.permute.xlu0 %3557
      %3559 = vrot.lane.b32.xlu0 %v3505, 121
      %v3560 = vpop.permute.xlu0 %3559
      %3561 = vrot.lane.b32.xlu0 %v3506, 121
      %v3562 = vpop.permute.xlu0 %3561
      %3563 = vrot.lane.b32.xlu0 %v3507, 121
      %v3564 = vpop.permute.xlu0 %3563
      %3565 = vrot.lane.b32.xlu0 %v3508, 121
      %v3566 = vpop.permute.xlu0 %3565
      %3567 = vrot.lane.b32.xlu0 %v3509, 121
      %v3568 = vpop.permute.xlu0 %3567
      %3569 = vrot.lane.b32.xlu0 %v3510, 121
      %v3570 = vpop.permute.xlu0 %3569
      %v3571 = vsel %vm1232, %v3532, %v3534
      %v3572 = vsel %vm1232, %v3534, %v3536
      %v3573 = vsel %vm1232, %v3536, %v3538
      %v3574 = vsel %vm1232, %v3538, %v3540
      %v3575 = vsel %vm1232, %v3542, %v3544
      %v3576 = vsel %vm1232, %v3544, %v3546
      %v3577 = vsel %vm1232, %v3546, %v3548
      %v3578 = vsel %vm1232, %v3548, %v3550
      %v3579 = vsel %vm1232, %v3552, %v3554
      %v3580 = vsel %vm1232, %v3554, %v3556
      %v3581 = vsel %vm1232, %v3556, %v3558
      %v3582 = vsel %vm1232, %v3558, %v3560
      %v3583 = vsel %vm1232, %v3562, %v3564
      %v3584 = vsel %vm1232, %v3564, %v3566
      %v3585 = vsel %vm1232, %v3566, %v3568
      %v3586 = vsel %vm1232, %v3568, %v3570
      %v3603 = vadd.f32 %v3475, %v3571
      %v3604 = vadd.f32 %v3476, %v3572
      %v3605 = vadd.f32 %v3477, %v3573
      %v3606 = vadd.f32 %v3478, %v3574
      %v3607 = vadd.f32 %v3479, %v3575
      %v3608 = vadd.f32 %v3480, %v3576
      %v3609 = vadd.f32 %v3481, %v3577
      %v3610 = vadd.f32 %v3482, %v3578
      %v3611 = vadd.f32 %v3483, %v3579
      %v3612 = vadd.f32 %v3484, %v3580
      %v3613 = vadd.f32 %v3485, %v3581
      %v3614 = vadd.f32 %v3486, %v3582
      %v3615 = vadd.f32 %v3487, %v3583
      %v3616 = vadd.f32 %v3488, %v3584
      %v3617 = vadd.f32 %v3489, %v3585
      %v3618 = vadd.f32 %v3490, %v3586
      %v3619 = vmul.f32 %v1283, %v2685
      %v3620 = vmul.f32 %v1283, %v2689
      %v3621 = vmul.f32 %v1283, %v2693
      %v3622 = vmul.f32 %v1283, %v2697
      %v3623 = vmul.f32 %v1283, %v2721
      %v3624 = vmul.f32 %v1287, %v2685
      %v3625 = vmul.f32 %v1287, %v2689
      %v3626 = vmul.f32 %v1287, %v2693
      %v3627 = vmul.f32 %v1287, %v2697
      %v3628 = vmul.f32 %v1287, %v2721
      %v3629 = vmul.f32 %v1291, %v2685
      %v3630 = vmul.f32 %v1291, %v2689
      %v3631 = vmul.f32 %v1291, %v2693
      %v3632 = vmul.f32 %v1291, %v2697
      %v3633 = vmul.f32 %v1291, %v2721
      %v3634 = vmul.f32 %v1295, %v2685
      %v3635 = vmul.f32 %v1295, %v2689
      %v3636 = vmul.f32 %v1295, %v2693
      %v3637 = vmul.f32 %v1295, %v2697
      %v3638 = vmul.f32 %v1295, %v2721
      %3659 = vrot.lane.b32.xlu0 %v3619, 120
      %v3660 = vpop.permute.xlu0 %3659
      %3661 = vrot.lane.b32.xlu0 %v3620, 120
      %v3662 = vpop.permute.xlu0 %3661
      %3663 = vrot.lane.b32.xlu0 %v3621, 120
      %v3664 = vpop.permute.xlu0 %3663
      %3665 = vrot.lane.b32.xlu0 %v3622, 120
      %v3666 = vpop.permute.xlu0 %3665
      %3667 = vrot.lane.b32.xlu0 %v3623, 120
      %v3668 = vpop.permute.xlu0 %3667
      %3669 = vrot.lane.b32.xlu0 %v3624, 120
      %v3670 = vpop.permute.xlu0 %3669
      %3671 = vrot.lane.b32.xlu0 %v3625, 120
      %v3672 = vpop.permute.xlu0 %3671
      %3673 = vrot.lane.b32.xlu0 %v3626, 120
      %v3674 = vpop.permute.xlu0 %3673
      %3675 = vrot.lane.b32.xlu0 %v3627, 120
      %v3676 = vpop.permute.xlu0 %3675
      %3677 = vrot.lane.b32.xlu0 %v3628, 120
      %v3678 = vpop.permute.xlu0 %3677
      %3679 = vrot.lane.b32.xlu0 %v3629, 120
      %v3680 = vpop.permute.xlu0 %3679
      %3681 = vrot.lane.b32.xlu0 %v3630, 120
      %v3682 = vpop.permute.xlu0 %3681
      %3683 = vrot.lane.b32.xlu0 %v3631, 120
      %v3684 = vpop.permute.xlu0 %3683
      %3685 = vrot.lane.b32.xlu0 %v3632, 120
      %v3686 = vpop.permute.xlu0 %3685
      %3687 = vrot.lane.b32.xlu0 %v3633, 120
      %v3688 = vpop.permute.xlu0 %3687
      %3689 = vrot.lane.b32.xlu0 %v3634, 120
      %v3690 = vpop.permute.xlu0 %3689
      %3691 = vrot.lane.b32.xlu0 %v3635, 120
      %v3692 = vpop.permute.xlu0 %3691
      %3693 = vrot.lane.b32.xlu0 %v3636, 120
      %v3694 = vpop.permute.xlu0 %3693
      %3695 = vrot.lane.b32.xlu0 %v3637, 120
      %v3696 = vpop.permute.xlu0 %3695
      %3697 = vrot.lane.b32.xlu0 %v3638, 120
      %v3698 = vpop.permute.xlu0 %3697
      %v3699 = vsel %vm1377, %v3660, %v3662
      %v3700 = vsel %vm1377, %v3662, %v3664
      %v3701 = vsel %vm1377, %v3664, %v3666
      %v3702 = vsel %vm1377, %v3666, %v3668
      %v3703 = vsel %vm1377, %v3670, %v3672
      %v3704 = vsel %vm1377, %v3672, %v3674
      %v3705 = vsel %vm1377, %v3674, %v3676
      %v3706 = vsel %vm1377, %v3676, %v3678
      %v3707 = vsel %vm1377, %v3680, %v3682
      %v3708 = vsel %vm1377, %v3682, %v3684
      %v3709 = vsel %vm1377, %v3684, %v3686
      %v3710 = vsel %vm1377, %v3686, %v3688
      %v3711 = vsel %vm1377, %v3690, %v3692
      %v3712 = vsel %vm1377, %v3692, %v3694
      %v3713 = vsel %vm1377, %v3694, %v3696
      %v3714 = vsel %vm1377, %v3696, %v3698
      %v3731 = vadd.f32 %v3603, %v3699
      %v3732 = vadd.f32 %v3604, %v3700
      %v3733 = vadd.f32 %v3605, %v3701
      %v3734 = vadd.f32 %v3606, %v3702
      %v3735 = vadd.f32 %v3607, %v3703
      %v3736 = vadd.f32 %v3608, %v3704
      %v3737 = vadd.f32 %v3609, %v3705
      %v3738 = vadd.f32 %v3610, %v3706
      %v3739 = vadd.f32 %v3611, %v3707
      %v3740 = vadd.f32 %v3612, %v3708
      %v3741 = vadd.f32 %v3613, %v3709
      %v3742 = vadd.f32 %v3614, %v3710
      %v3743 = vadd.f32 %v3615, %v3711
      %v3744 = vadd.f32 %v3616, %v3712
      %v3745 = vadd.f32 %v3617, %v3713
      %v3746 = vadd.f32 %v3618, %v3714
      %v3747 = vmul.f32 %v1428, %v2685
      %v3748 = vmul.f32 %v1428, %v2689
      %v3749 = vmul.f32 %v1428, %v2693
      %v3750 = vmul.f32 %v1428, %v2697
      %v3751 = vmul.f32 %v1428, %v2721
      %v3752 = vmul.f32 %v1432, %v2685
      %v3753 = vmul.f32 %v1432, %v2689
      %v3754 = vmul.f32 %v1432, %v2693
      %v3755 = vmul.f32 %v1432, %v2697
      %v3756 = vmul.f32 %v1432, %v2721
      %v3757 = vmul.f32 %v1436, %v2685
      %v3758 = vmul.f32 %v1436, %v2689
      %v3759 = vmul.f32 %v1436, %v2693
      %v3760 = vmul.f32 %v1436, %v2697
      %v3761 = vmul.f32 %v1436, %v2721
      %v3762 = vmul.f32 %v1440, %v2685
      %v3763 = vmul.f32 %v1440, %v2689
      %v3764 = vmul.f32 %v1440, %v2693
      %v3765 = vmul.f32 %v1440, %v2697
      %v3766 = vmul.f32 %v1440, %v2721
      %3787 = vrot.lane.b32.xlu0 %v3747, 119
      %v3788 = vpop.permute.xlu0 %3787
      %3789 = vrot.lane.b32.xlu0 %v3748, 119
      %v3790 = vpop.permute.xlu0 %3789
      %3791 = vrot.lane.b32.xlu0 %v3749, 119
      %v3792 = vpop.permute.xlu0 %3791
      %3793 = vrot.lane.b32.xlu0 %v3750, 119
      %v3794 = vpop.permute.xlu0 %3793
      %3795 = vrot.lane.b32.xlu0 %v3751, 119
      %v3796 = vpop.permute.xlu0 %3795
      %3797 = vrot.lane.b32.xlu0 %v3752, 119
      %v3798 = vpop.permute.xlu0 %3797
      %3799 = vrot.lane.b32.xlu0 %v3753, 119
      %v3800 = vpop.permute.xlu0 %3799
      %3801 = vrot.lane.b32.xlu0 %v3754, 119
      %v3802 = vpop.permute.xlu0 %3801
      %3803 = vrot.lane.b32.xlu0 %v3755, 119
      %v3804 = vpop.permute.xlu0 %3803
      %3805 = vrot.lane.b32.xlu0 %v3756, 119
      %v3806 = vpop.permute.xlu0 %3805
      %3807 = vrot.lane.b32.xlu0 %v3757, 119
      %v3808 = vpop.permute.xlu0 %3807
      %3809 = vrot.lane.b32.xlu0 %v3758, 119
      %v3810 = vpop.permute.xlu0 %3809
      %3811 = vrot.lane.b32.xlu0 %v3759, 119
      %v3812 = vpop.permute.xlu0 %3811
      %3813 = vrot.lane.b32.xlu0 %v3760, 119
      %v3814 = vpop.permute.xlu0 %3813
      %3815 = vrot.lane.b32.xlu0 %v3761, 119
      %v3816 = vpop.permute.xlu0 %3815
      %3817 = vrot.lane.b32.xlu0 %v3762, 119
      %v3818 = vpop.permute.xlu0 %3817
      %3819 = vrot.lane.b32.xlu0 %v3763, 119
      %v3820 = vpop.permute.xlu0 %3819
      %3821 = vrot.lane.b32.xlu0 %v3764, 119
      %v3822 = vpop.permute.xlu0 %3821
      %3823 = vrot.lane.b32.xlu0 %v3765, 119
      %v3824 = vpop.permute.xlu0 %3823
      %3825 = vrot.lane.b32.xlu0 %v3766, 119
      %v3826 = vpop.permute.xlu0 %3825
      %v3827 = vsel %vm1522, %v3788, %v3790
      %v3828 = vsel %vm1522, %v3790, %v3792
      %v3829 = vsel %vm1522, %v3792, %v3794
      %v3830 = vsel %vm1522, %v3794, %v3796
      %v3831 = vsel %vm1522, %v3798, %v3800
      %v3832 = vsel %vm1522, %v3800, %v3802
      %v3833 = vsel %vm1522, %v3802, %v3804
      %v3834 = vsel %vm1522, %v3804, %v3806
      %v3835 = vsel %vm1522, %v3808, %v3810
      %v3836 = vsel %vm1522, %v3810, %v3812
      %v3837 = vsel %vm1522, %v3812, %v3814
      %v3838 = vsel %vm1522, %v3814, %v3816
      %v3839 = vsel %vm1522, %v3818, %v3820
      %v3840 = vsel %vm1522, %v3820, %v3822
      %v3841 = vsel %vm1522, %v3822, %v3824
      %v3842 = vsel %vm1522, %v3824, %v3826
      %v3859 = vadd.f32 %v3731, %v3827
      %v3860 = vadd.f32 %v3732, %v3828
      %v3861 = vadd.f32 %v3733, %v3829
      %v3862 = vadd.f32 %v3734, %v3830
      %v3863 = vadd.f32 %v3735, %v3831
      %v3864 = vadd.f32 %v3736, %v3832
      %v3865 = vadd.f32 %v3737, %v3833
      %v3866 = vadd.f32 %v3738, %v3834
      %v3867 = vadd.f32 %v3739, %v3835
      %v3868 = vadd.f32 %v3740, %v3836
      %v3869 = vadd.f32 %v3741, %v3837
      %v3870 = vadd.f32 %v3742, %v3838
      %v3871 = vadd.f32 %v3743, %v3839
      %v3872 = vadd.f32 %v3744, %v3840
      %v3873 = vadd.f32 %v3745, %v3841
      %v3874 = vadd.f32 %v3746, %v3842
      %v3875 = vmul.f32 %v1573, %v2685
      %v3876 = vmul.f32 %v1573, %v2689
      %v3877 = vmul.f32 %v1573, %v2693
      %v3878 = vmul.f32 %v1573, %v2697
      %v3879 = vmul.f32 %v1573, %v2721
      %v3880 = vmul.f32 %v1577, %v2685
      %v3881 = vmul.f32 %v1577, %v2689
      %v3882 = vmul.f32 %v1577, %v2693
      %v3883 = vmul.f32 %v1577, %v2697
      %v3884 = vmul.f32 %v1577, %v2721
      %v3885 = vmul.f32 %v1581, %v2685
      %v3886 = vmul.f32 %v1581, %v2689
      %v3887 = vmul.f32 %v1581, %v2693
      %v3888 = vmul.f32 %v1581, %v2697
      %v3889 = vmul.f32 %v1581, %v2721
      %v3890 = vmul.f32 %v1585, %v2685
      %v3891 = vmul.f32 %v1585, %v2689
      %v3892 = vmul.f32 %v1585, %v2693
      %v3893 = vmul.f32 %v1585, %v2697
      %v3894 = vmul.f32 %v1585, %v2721
      %3915 = vrot.lane.b32.xlu0 %v3875, 118
      %v3916 = vpop.permute.xlu0 %3915
      %3917 = vrot.lane.b32.xlu0 %v3876, 118
      %v3918 = vpop.permute.xlu0 %3917
      %3919 = vrot.lane.b32.xlu0 %v3877, 118
      %v3920 = vpop.permute.xlu0 %3919
      %3921 = vrot.lane.b32.xlu0 %v3878, 118
      %v3922 = vpop.permute.xlu0 %3921
      %3923 = vrot.lane.b32.xlu0 %v3879, 118
      %v3924 = vpop.permute.xlu0 %3923
      %3925 = vrot.lane.b32.xlu0 %v3880, 118
      %v3926 = vpop.permute.xlu0 %3925
      %3927 = vrot.lane.b32.xlu0 %v3881, 118
      %v3928 = vpop.permute.xlu0 %3927
      %3929 = vrot.lane.b32.xlu0 %v3882, 118
      %v3930 = vpop.permute.xlu0 %3929
      %3931 = vrot.lane.b32.xlu0 %v3883, 118
      %v3932 = vpop.permute.xlu0 %3931
      %3933 = vrot.lane.b32.xlu0 %v3884, 118
      %v3934 = vpop.permute.xlu0 %3933
      %3935 = vrot.lane.b32.xlu0 %v3885, 118
      %v3936 = vpop.permute.xlu0 %3935
      %3937 = vrot.lane.b32.xlu0 %v3886, 118
      %v3938 = vpop.permute.xlu0 %3937
      %3939 = vrot.lane.b32.xlu0 %v3887, 118
      %v3940 = vpop.permute.xlu0 %3939
      %3941 = vrot.lane.b32.xlu0 %v3888, 118
      %v3942 = vpop.permute.xlu0 %3941
      %3943 = vrot.lane.b32.xlu0 %v3889, 118
      %v3944 = vpop.permute.xlu0 %3943
      %3945 = vrot.lane.b32.xlu0 %v3890, 118
      %v3946 = vpop.permute.xlu0 %3945
      %3947 = vrot.lane.b32.xlu0 %v3891, 118
      %v3948 = vpop.permute.xlu0 %3947
      %3949 = vrot.lane.b32.xlu0 %v3892, 118
      %v3950 = vpop.permute.xlu0 %3949
      %3951 = vrot.lane.b32.xlu0 %v3893, 118
      %v3952 = vpop.permute.xlu0 %3951
      %3953 = vrot.lane.b32.xlu0 %v3894, 118
      %v3954 = vpop.permute.xlu0 %3953
      %v3955 = vsel %vm1667, %v3916, %v3918
      %v3956 = vsel %vm1667, %v3918, %v3920
      %v3957 = vsel %vm1667, %v3920, %v3922
      %v3958 = vsel %vm1667, %v3922, %v3924
      %v3959 = vsel %vm1667, %v3926, %v3928
      %v3960 = vsel %vm1667, %v3928, %v3930
      %v3961 = vsel %vm1667, %v3930, %v3932
      %v3962 = vsel %vm1667, %v3932, %v3934
      %v3963 = vsel %vm1667, %v3936, %v3938
      %v3964 = vsel %vm1667, %v3938, %v3940
      %v3965 = vsel %vm1667, %v3940, %v3942
      %v3966 = vsel %vm1667, %v3942, %v3944
      %v3967 = vsel %vm1667, %v3946, %v3948
      %v3968 = vsel %vm1667, %v3948, %v3950
      %v3969 = vsel %vm1667, %v3950, %v3952
      %v3970 = vsel %vm1667, %v3952, %v3954
      %v3987 = vadd.f32 %v3859, %v3955
      %v3988 = vadd.f32 %v3860, %v3956
      %v3989 = vadd.f32 %v3861, %v3957
      %v3990 = vadd.f32 %v3862, %v3958
      %v3991 = vadd.f32 %v3863, %v3959
      %v3992 = vadd.f32 %v3864, %v3960
      %v3993 = vadd.f32 %v3865, %v3961
      %v3994 = vadd.f32 %v3866, %v3962
      %v3995 = vadd.f32 %v3867, %v3963
      %v3996 = vadd.f32 %v3868, %v3964
      %v3997 = vadd.f32 %v3869, %v3965
      %v3998 = vadd.f32 %v3870, %v3966
      %v3999 = vadd.f32 %v3871, %v3967
      %v4000 = vadd.f32 %v3872, %v3968
      %v4001 = vadd.f32 %v3873, %v3969
      %v4002 = vadd.f32 %v3874, %v3970
      %v4003 = vmul.f32 %v1718, %v2685
      %v4004 = vmul.f32 %v1718, %v2689
      %v4005 = vmul.f32 %v1718, %v2693
      %v4006 = vmul.f32 %v1718, %v2697
      %v4007 = vmul.f32 %v1718, %v2721
      %v4008 = vmul.f32 %v1722, %v2685
      %v4009 = vmul.f32 %v1722, %v2689
      %v4010 = vmul.f32 %v1722, %v2693
      %v4011 = vmul.f32 %v1722, %v2697
      %v4012 = vmul.f32 %v1722, %v2721
      %v4013 = vmul.f32 %v1726, %v2685
      %v4014 = vmul.f32 %v1726, %v2689
      %v4015 = vmul.f32 %v1726, %v2693
      %v4016 = vmul.f32 %v1726, %v2697
      %v4017 = vmul.f32 %v1726, %v2721
      %v4018 = vmul.f32 %v1730, %v2685
      %v4019 = vmul.f32 %v1730, %v2689
      %v4020 = vmul.f32 %v1730, %v2693
      %v4021 = vmul.f32 %v1730, %v2697
      %v4022 = vmul.f32 %v1730, %v2721
      %4043 = vrot.lane.b32.xlu0 %v4003, 117
      %v4044 = vpop.permute.xlu0 %4043
      %4045 = vrot.lane.b32.xlu0 %v4004, 117
      %v4046 = vpop.permute.xlu0 %4045
      %4047 = vrot.lane.b32.xlu0 %v4005, 117
      %v4048 = vpop.permute.xlu0 %4047
      %4049 = vrot.lane.b32.xlu0 %v4006, 117
      %v4050 = vpop.permute.xlu0 %4049
      %4051 = vrot.lane.b32.xlu0 %v4007, 117
      %v4052 = vpop.permute.xlu0 %4051
      %4053 = vrot.lane.b32.xlu0 %v4008, 117
      %v4054 = vpop.permute.xlu0 %4053
      %4055 = vrot.lane.b32.xlu0 %v4009, 117
      %v4056 = vpop.permute.xlu0 %4055
      %4057 = vrot.lane.b32.xlu0 %v4010, 117
      %v4058 = vpop.permute.xlu0 %4057
      %4059 = vrot.lane.b32.xlu0 %v4011, 117
      %v4060 = vpop.permute.xlu0 %4059
      %4061 = vrot.lane.b32.xlu0 %v4012, 117
      %v4062 = vpop.permute.xlu0 %4061
      %4063 = vrot.lane.b32.xlu0 %v4013, 117
      %v4064 = vpop.permute.xlu0 %4063
      %4065 = vrot.lane.b32.xlu0 %v4014, 117
      %v4066 = vpop.permute.xlu0 %4065
      %4067 = vrot.lane.b32.xlu0 %v4015, 117
      %v4068 = vpop.permute.xlu0 %4067
      %4069 = vrot.lane.b32.xlu0 %v4016, 117
      %v4070 = vpop.permute.xlu0 %4069
      %4071 = vrot.lane.b32.xlu0 %v4017, 117
      %v4072 = vpop.permute.xlu0 %4071
      %4073 = vrot.lane.b32.xlu0 %v4018, 117
      %v4074 = vpop.permute.xlu0 %4073
      %4075 = vrot.lane.b32.xlu0 %v4019, 117
      %v4076 = vpop.permute.xlu0 %4075
      %4077 = vrot.lane.b32.xlu0 %v4020, 117
      %v4078 = vpop.permute.xlu0 %4077
      %4079 = vrot.lane.b32.xlu0 %v4021, 117
      %v4080 = vpop.permute.xlu0 %4079
      %4081 = vrot.lane.b32.xlu0 %v4022, 117
      %v4082 = vpop.permute.xlu0 %4081
      %v4083 = vsel %vm1812, %v4044, %v4046
      %v4084 = vsel %vm1812, %v4046, %v4048
      %v4085 = vsel %vm1812, %v4048, %v4050
      %v4086 = vsel %vm1812, %v4050, %v4052
      %v4087 = vsel %vm1812, %v4054, %v4056
      %v4088 = vsel %vm1812, %v4056, %v4058
      %v4089 = vsel %vm1812, %v4058, %v4060
      %v4090 = vsel %vm1812, %v4060, %v4062
      %v4091 = vsel %vm1812, %v4064, %v4066
      %v4092 = vsel %vm1812, %v4066, %v4068
      %v4093 = vsel %vm1812, %v4068, %v4070
      %v4094 = vsel %vm1812, %v4070, %v4072
      %v4095 = vsel %vm1812, %v4074, %v4076
      %v4096 = vsel %vm1812, %v4076, %v4078
      %v4097 = vsel %vm1812, %v4078, %v4080
      %v4098 = vsel %vm1812, %v4080, %v4082
      %v4115 = vadd.f32 %v3987, %v4083
      %v4116 = vadd.f32 %v3988, %v4084
      %v4117 = vadd.f32 %v3989, %v4085
      %v4118 = vadd.f32 %v3990, %v4086
      %v4119 = vadd.f32 %v3991, %v4087
      %v4120 = vadd.f32 %v3992, %v4088
      %v4121 = vadd.f32 %v3993, %v4089
      %v4122 = vadd.f32 %v3994, %v4090
      %v4123 = vadd.f32 %v3995, %v4091
      %v4124 = vadd.f32 %v3996, %v4092
      %v4125 = vadd.f32 %v3997, %v4093
      %v4126 = vadd.f32 %v3998, %v4094
      %v4127 = vadd.f32 %v3999, %v4095
      %v4128 = vadd.f32 %v4000, %v4096
      %v4129 = vadd.f32 %v4001, %v4097
      %v4130 = vadd.f32 %v4002, %v4098
      %v4131 = vmul.f32 %v1863, %v2685
      %v4132 = vmul.f32 %v1863, %v2689
      %v4133 = vmul.f32 %v1863, %v2693
      %v4134 = vmul.f32 %v1863, %v2697
      %v4135 = vmul.f32 %v1863, %v2721
      %v4136 = vmul.f32 %v1867, %v2685
      %v4137 = vmul.f32 %v1867, %v2689
      %v4138 = vmul.f32 %v1867, %v2693
      %v4139 = vmul.f32 %v1867, %v2697
      %v4140 = vmul.f32 %v1867, %v2721
      %v4141 = vmul.f32 %v1871, %v2685
      %v4142 = vmul.f32 %v1871, %v2689
      %v4143 = vmul.f32 %v1871, %v2693
      %v4144 = vmul.f32 %v1871, %v2697
      %v4145 = vmul.f32 %v1871, %v2721
      %v4146 = vmul.f32 %v1875, %v2685
      %v4147 = vmul.f32 %v1875, %v2689
      %v4148 = vmul.f32 %v1875, %v2693
      %v4149 = vmul.f32 %v1875, %v2697
      %v4150 = vmul.f32 %v1875, %v2721
      %4171 = vrot.lane.b32.xlu0 %v4131, 116
      %v4172 = vpop.permute.xlu0 %4171
      %4173 = vrot.lane.b32.xlu0 %v4132, 116
      %v4174 = vpop.permute.xlu0 %4173
      %4175 = vrot.lane.b32.xlu0 %v4133, 116
      %v4176 = vpop.permute.xlu0 %4175
      %4177 = vrot.lane.b32.xlu0 %v4134, 116
      %v4178 = vpop.permute.xlu0 %4177
      %4179 = vrot.lane.b32.xlu0 %v4135, 116
      %v4180 = vpop.permute.xlu0 %4179
      %4181 = vrot.lane.b32.xlu0 %v4136, 116
      %v4182 = vpop.permute.xlu0 %4181
      %4183 = vrot.lane.b32.xlu0 %v4137, 116
      %v4184 = vpop.permute.xlu0 %4183
      %4185 = vrot.lane.b32.xlu0 %v4138, 116
      %v4186 = vpop.permute.xlu0 %4185
      %4187 = vrot.lane.b32.xlu0 %v4139, 116
      %v4188 = vpop.permute.xlu0 %4187
      %4189 = vrot.lane.b32.xlu0 %v4140, 116
      %v4190 = vpop.permute.xlu0 %4189
      %4191 = vrot.lane.b32.xlu0 %v4141, 116
      %v4192 = vpop.permute.xlu0 %4191
      %4193 = vrot.lane.b32.xlu0 %v4142, 116
      %v4194 = vpop.permute.xlu0 %4193
      %4195 = vrot.lane.b32.xlu0 %v4143, 116
      %v4196 = vpop.permute.xlu0 %4195
      %4197 = vrot.lane.b32.xlu0 %v4144, 116
      %v4198 = vpop.permute.xlu0 %4197
      %4199 = vrot.lane.b32.xlu0 %v4145, 116
      %v4200 = vpop.permute.xlu0 %4199
      %4201 = vrot.lane.b32.xlu0 %v4146, 116
      %v4202 = vpop.permute.xlu0 %4201
      %4203 = vrot.lane.b32.xlu0 %v4147, 116
      %v4204 = vpop.permute.xlu0 %4203
      %4205 = vrot.lane.b32.xlu0 %v4148, 116
      %v4206 = vpop.permute.xlu0 %4205
      %4207 = vrot.lane.b32.xlu0 %v4149, 116
      %v4208 = vpop.permute.xlu0 %4207
      %4209 = vrot.lane.b32.xlu0 %v4150, 116
      %v4210 = vpop.permute.xlu0 %4209
      %v4211 = vsel %vm1957, %v4172, %v4174
      %v4212 = vsel %vm1957, %v4174, %v4176
      %v4213 = vsel %vm1957, %v4176, %v4178
      %v4214 = vsel %vm1957, %v4178, %v4180
      %v4215 = vsel %vm1957, %v4182, %v4184
      %v4216 = vsel %vm1957, %v4184, %v4186
      %v4217 = vsel %vm1957, %v4186, %v4188
      %v4218 = vsel %vm1957, %v4188, %v4190
      %v4219 = vsel %vm1957, %v4192, %v4194
      %v4220 = vsel %vm1957, %v4194, %v4196
      %v4221 = vsel %vm1957, %v4196, %v4198
      %v4222 = vsel %vm1957, %v4198, %v4200
      %v4223 = vsel %vm1957, %v4202, %v4204
      %v4224 = vsel %vm1957, %v4204, %v4206
      %v4225 = vsel %vm1957, %v4206, %v4208
      %v4226 = vsel %vm1957, %v4208, %v4210
      %v4243 = vadd.f32 %v4115, %v4211
      %v4244 = vadd.f32 %v4116, %v4212
      %v4245 = vadd.f32 %v4117, %v4213
      %v4246 = vadd.f32 %v4118, %v4214
      %v4247 = vadd.f32 %v4119, %v4215
      %v4248 = vadd.f32 %v4120, %v4216
      %v4249 = vadd.f32 %v4121, %v4217
      %v4250 = vadd.f32 %v4122, %v4218
      %v4251 = vadd.f32 %v4123, %v4219
      %v4252 = vadd.f32 %v4124, %v4220
      %v4253 = vadd.f32 %v4125, %v4221
      %v4254 = vadd.f32 %v4126, %v4222
      %v4255 = vadd.f32 %v4127, %v4223
      %v4256 = vadd.f32 %v4128, %v4224
      %v4257 = vadd.f32 %v4129, %v4225
      %v4258 = vadd.f32 %v4130, %v4226
      %v4259 = vmul.f32 %v2008, %v2685
      %v4260 = vmul.f32 %v2008, %v2689
      %v4261 = vmul.f32 %v2008, %v2693
      %v4262 = vmul.f32 %v2008, %v2697
      %v4263 = vmul.f32 %v2008, %v2721
      %v4264 = vmul.f32 %v2012, %v2685
      %v4265 = vmul.f32 %v2012, %v2689
      %v4266 = vmul.f32 %v2012, %v2693
      %v4267 = vmul.f32 %v2012, %v2697
      %v4268 = vmul.f32 %v2012, %v2721
      %v4269 = vmul.f32 %v2016, %v2685
      %v4270 = vmul.f32 %v2016, %v2689
      %v4271 = vmul.f32 %v2016, %v2693
      %v4272 = vmul.f32 %v2016, %v2697
      %v4273 = vmul.f32 %v2016, %v2721
      %v4274 = vmul.f32 %v2020, %v2685
      %v4275 = vmul.f32 %v2020, %v2689
      %v4276 = vmul.f32 %v2020, %v2693
      %v4277 = vmul.f32 %v2020, %v2697
      %v4278 = vmul.f32 %v2020, %v2721
      %4299 = vrot.lane.b32.xlu0 %v4259, 115
      %v4300 = vpop.permute.xlu0 %4299
      %4301 = vrot.lane.b32.xlu0 %v4260, 115
      %v4302 = vpop.permute.xlu0 %4301
      %4303 = vrot.lane.b32.xlu0 %v4261, 115
      %v4304 = vpop.permute.xlu0 %4303
      %4305 = vrot.lane.b32.xlu0 %v4262, 115
      %v4306 = vpop.permute.xlu0 %4305
      %4307 = vrot.lane.b32.xlu0 %v4263, 115
      %v4308 = vpop.permute.xlu0 %4307
      %4309 = vrot.lane.b32.xlu0 %v4264, 115
      %v4310 = vpop.permute.xlu0 %4309
      %4311 = vrot.lane.b32.xlu0 %v4265, 115
      %v4312 = vpop.permute.xlu0 %4311
      %4313 = vrot.lane.b32.xlu0 %v4266, 115
      %v4314 = vpop.permute.xlu0 %4313
      %4315 = vrot.lane.b32.xlu0 %v4267, 115
      %v4316 = vpop.permute.xlu0 %4315
      %4317 = vrot.lane.b32.xlu0 %v4268, 115
      %v4318 = vpop.permute.xlu0 %4317
      %4319 = vrot.lane.b32.xlu0 %v4269, 115
      %v4320 = vpop.permute.xlu0 %4319
      %4321 = vrot.lane.b32.xlu0 %v4270, 115
      %v4322 = vpop.permute.xlu0 %4321
      %4323 = vrot.lane.b32.xlu0 %v4271, 115
      %v4324 = vpop.permute.xlu0 %4323
      %4325 = vrot.lane.b32.xlu0 %v4272, 115
      %v4326 = vpop.permute.xlu0 %4325
      %4327 = vrot.lane.b32.xlu0 %v4273, 115
      %v4328 = vpop.permute.xlu0 %4327
      %4329 = vrot.lane.b32.xlu0 %v4274, 115
      %v4330 = vpop.permute.xlu0 %4329
      %4331 = vrot.lane.b32.xlu0 %v4275, 115
      %v4332 = vpop.permute.xlu0 %4331
      %4333 = vrot.lane.b32.xlu0 %v4276, 115
      %v4334 = vpop.permute.xlu0 %4333
      %4335 = vrot.lane.b32.xlu0 %v4277, 115
      %v4336 = vpop.permute.xlu0 %4335
      %4337 = vrot.lane.b32.xlu0 %v4278, 115
      %v4338 = vpop.permute.xlu0 %4337
      %v4339 = vsel %vm2102, %v4300, %v4302
      %v4340 = vsel %vm2102, %v4302, %v4304
      %v4341 = vsel %vm2102, %v4304, %v4306
      %v4342 = vsel %vm2102, %v4306, %v4308
      %v4343 = vsel %vm2102, %v4310, %v4312
      %v4344 = vsel %vm2102, %v4312, %v4314
      %v4345 = vsel %vm2102, %v4314, %v4316
      %v4346 = vsel %vm2102, %v4316, %v4318
      %v4347 = vsel %vm2102, %v4320, %v4322
      %v4348 = vsel %vm2102, %v4322, %v4324
      %v4349 = vsel %vm2102, %v4324, %v4326
      %v4350 = vsel %vm2102, %v4326, %v4328
      %v4351 = vsel %vm2102, %v4330, %v4332
      %v4352 = vsel %vm2102, %v4332, %v4334
      %v4353 = vsel %vm2102, %v4334, %v4336
      %v4354 = vsel %vm2102, %v4336, %v4338
      %v4371 = vadd.f32 %v4243, %v4339
      %v4372 = vadd.f32 %v4244, %v4340
      %v4373 = vadd.f32 %v4245, %v4341
      %v4374 = vadd.f32 %v4246, %v4342
      %v4375 = vadd.f32 %v4247, %v4343
      %v4376 = vadd.f32 %v4248, %v4344
      %v4377 = vadd.f32 %v4249, %v4345
      %v4378 = vadd.f32 %v4250, %v4346
      %v4379 = vadd.f32 %v4251, %v4347
      %v4380 = vadd.f32 %v4252, %v4348
      %v4381 = vadd.f32 %v4253, %v4349
      %v4382 = vadd.f32 %v4254, %v4350
      %v4383 = vadd.f32 %v4255, %v4351
      %v4384 = vadd.f32 %v4256, %v4352
      %v4385 = vadd.f32 %v4257, %v4353
      %v4386 = vadd.f32 %v4258, %v4354
      %v4387 = vmul.f32 %v2153, %v2685
      %v4388 = vmul.f32 %v2153, %v2689
      %v4389 = vmul.f32 %v2153, %v2693
      %v4390 = vmul.f32 %v2153, %v2697
      %v4391 = vmul.f32 %v2153, %v2721
      %v4392 = vmul.f32 %v2157, %v2685
      %v4393 = vmul.f32 %v2157, %v2689
      %v4394 = vmul.f32 %v2157, %v2693
      %v4395 = vmul.f32 %v2157, %v2697
      %v4396 = vmul.f32 %v2157, %v2721
      %v4397 = vmul.f32 %v2161, %v2685
      %v4398 = vmul.f32 %v2161, %v2689
      %v4399 = vmul.f32 %v2161, %v2693
      %v4400 = vmul.f32 %v2161, %v2697
      %v4401 = vmul.f32 %v2161, %v2721
      %v4402 = vmul.f32 %v2165, %v2685
      %v4403 = vmul.f32 %v2165, %v2689
      %v4404 = vmul.f32 %v2165, %v2693
      %v4405 = vmul.f32 %v2165, %v2697
      %v4406 = vmul.f32 %v2165, %v2721
      %4427 = vrot.lane.b32.xlu0 %v4387, 114
      %v4428 = vpop.permute.xlu0 %4427
      %4429 = vrot.lane.b32.xlu0 %v4388, 114
      %v4430 = vpop.permute.xlu0 %4429
      %4431 = vrot.lane.b32.xlu0 %v4389, 114
      %v4432 = vpop.permute.xlu0 %4431
      %4433 = vrot.lane.b32.xlu0 %v4390, 114
      %v4434 = vpop.permute.xlu0 %4433
      %4435 = vrot.lane.b32.xlu0 %v4391, 114
      %v4436 = vpop.permute.xlu0 %4435
      %4437 = vrot.lane.b32.xlu0 %v4392, 114
      %v4438 = vpop.permute.xlu0 %4437
      %4439 = vrot.lane.b32.xlu0 %v4393, 114
      %v4440 = vpop.permute.xlu0 %4439
      %4441 = vrot.lane.b32.xlu0 %v4394, 114
      %v4442 = vpop.permute.xlu0 %4441
      %4443 = vrot.lane.b32.xlu0 %v4395, 114
      %v4444 = vpop.permute.xlu0 %4443
      %4445 = vrot.lane.b32.xlu0 %v4396, 114
      %v4446 = vpop.permute.xlu0 %4445
      %4447 = vrot.lane.b32.xlu0 %v4397, 114
      %v4448 = vpop.permute.xlu0 %4447
      %4449 = vrot.lane.b32.xlu0 %v4398, 114
      %v4450 = vpop.permute.xlu0 %4449
      %4451 = vrot.lane.b32.xlu0 %v4399, 114
      %v4452 = vpop.permute.xlu0 %4451
      %4453 = vrot.lane.b32.xlu0 %v4400, 114
      %v4454 = vpop.permute.xlu0 %4453
      %4455 = vrot.lane.b32.xlu0 %v4401, 114
      %v4456 = vpop.permute.xlu0 %4455
      %4457 = vrot.lane.b32.xlu0 %v4402, 114
      %v4458 = vpop.permute.xlu0 %4457
      %4459 = vrot.lane.b32.xlu0 %v4403, 114
      %v4460 = vpop.permute.xlu0 %4459
      %4461 = vrot.lane.b32.xlu0 %v4404, 114
      %v4462 = vpop.permute.xlu0 %4461
      %4463 = vrot.lane.b32.xlu0 %v4405, 114
      %v4464 = vpop.permute.xlu0 %4463
      %4465 = vrot.lane.b32.xlu0 %v4406, 114
      %v4466 = vpop.permute.xlu0 %4465
      %v4467 = vsel %vm2247, %v4428, %v4430
      %v4468 = vsel %vm2247, %v4430, %v4432
      %v4469 = vsel %vm2247, %v4432, %v4434
      %v4470 = vsel %vm2247, %v4434, %v4436
      %v4471 = vsel %vm2247, %v4438, %v4440
      %v4472 = vsel %vm2247, %v4440, %v4442
      %v4473 = vsel %vm2247, %v4442, %v4444
      %v4474 = vsel %vm2247, %v4444, %v4446
      %v4475 = vsel %vm2247, %v4448, %v4450
      %v4476 = vsel %vm2247, %v4450, %v4452
      %v4477 = vsel %vm2247, %v4452, %v4454
      %v4478 = vsel %vm2247, %v4454, %v4456
      %v4479 = vsel %vm2247, %v4458, %v4460
      %v4480 = vsel %vm2247, %v4460, %v4462
      %v4481 = vsel %vm2247, %v4462, %v4464
      %v4482 = vsel %vm2247, %v4464, %v4466
      %v4499 = vadd.f32 %v4371, %v4467
      %v4500 = vadd.f32 %v4372, %v4468
      %v4501 = vadd.f32 %v4373, %v4469
      %v4502 = vadd.f32 %v4374, %v4470
      %v4503 = vadd.f32 %v4375, %v4471
      %v4504 = vadd.f32 %v4376, %v4472
      %v4505 = vadd.f32 %v4377, %v4473
      %v4506 = vadd.f32 %v4378, %v4474
      %v4507 = vadd.f32 %v4379, %v4475
      %v4508 = vadd.f32 %v4380, %v4476
      %v4509 = vadd.f32 %v4381, %v4477
      %v4510 = vadd.f32 %v4382, %v4478
      %v4511 = vadd.f32 %v4383, %v4479
      %v4512 = vadd.f32 %v4384, %v4480
      %v4513 = vadd.f32 %v4385, %v4481
      %v4514 = vadd.f32 %v4386, %v4482
      %v4515 = vadd.f32 %v4499, %v2299
      %v4516 = vadd.f32 %v4500, %v2299
      %v4517 = vadd.f32 %v4501, %v2299
      %v4518 = vadd.f32 %v4502, %v2299
      %v4519 = vadd.f32 %v4503, %v2304
      %v4520 = vadd.f32 %v4504, %v2304
      %v4521 = vadd.f32 %v4505, %v2304
      %v4522 = vadd.f32 %v4506, %v2304
      %v4523 = vadd.f32 %v4507, %v2309
      %v4524 = vadd.f32 %v4508, %v2309
      %v4525 = vadd.f32 %v4509, %v2309
      %v4526 = vadd.f32 %v4510, %v2309
      %v4527 = vadd.f32 %v4511, %v2314
      %v4528 = vadd.f32 %v4512, %v2314
      %v4529 = vadd.f32 %v4513, %v2314
      %v4530 = vadd.f32 %v4514, %v2314
      %v4531 = vmax.f32 %v4515, 0.0
      %v4532 = vmax.f32 %v4516, 0.0
      %v4533 = vmax.f32 %v4517, 0.0
      %v4534 = vmax.f32 %v4518, 0.0
      %v4535 = vmax.f32 %v4519, 0.0
      %v4536 = vmax.f32 %v4520, 0.0
      %v4537 = vmax.f32 %v4521, 0.0
      %v4538 = vmax.f32 %v4522, 0.0
      %v4539 = vmax.f32 %v4523, 0.0
      %v4540 = vmax.f32 %v4524, 0.0
      %v4541 = vmax.f32 %v4525, 0.0
      %v4542 = vmax.f32 %v4526, 0.0
      %v4543 = vmax.f32 %v4527, 0.0
      %v4544 = vmax.f32 %v4528, 0.0
      %v4545 = vmax.f32 %v4529, 0.0
      %v4546 = vmax.f32 %v4530, 0.0
      %v4547 = vmul.f32 %v2685, %v2350
      %v4548 = vmul.f32 %v2689, %v2350
      %v4549 = vmul.f32 %v2693, %v2350
      %v4550 = vmul.f32 %v2697, %v2350
      %v4551 = vmul.f32 %v2721, %v2350
      %v4552 = vmul.f32 %v2685, %v2354
      %v4553 = vmul.f32 %v2689, %v2354
      %v4554 = vmul.f32 %v2693, %v2354
      %v4555 = vmul.f32 %v2697, %v2354
      %v4556 = vmul.f32 %v2721, %v2354
      %v4557 = vmul.f32 %v2685, %v2358
      %v4558 = vmul.f32 %v2689, %v2358
      %v4559 = vmul.f32 %v2693, %v2358
      %v4560 = vmul.f32 %v2697, %v2358
      %v4561 = vmul.f32 %v2721, %v2358
      %v4562 = vmul.f32 %v2685, %v2362
      %v4563 = vmul.f32 %v2689, %v2362
      %v4564 = vmul.f32 %v2693, %v2362
      %v4565 = vmul.f32 %v2697, %v2362
      %v4566 = vmul.f32 %v2721, %v2362
      %v4567 = vadd.f32 %v4547, %v2386
      %v4568 = vadd.f32 %v4548, %v2386
      %v4569 = vadd.f32 %v4549, %v2386
      %v4570 = vadd.f32 %v4550, %v2386
      %v4571 = vadd.f32 %v4551, %v2386
      %v4572 = vadd.f32 %v4552, %v2390
      %v4573 = vadd.f32 %v4553, %v2390
      %v4574 = vadd.f32 %v4554, %v2390
      %v4575 = vadd.f32 %v4555, %v2390
      %v4576 = vadd.f32 %v4556, %v2390
      %v4577 = vadd.f32 %v4557, %v2394
      %v4578 = vadd.f32 %v4558, %v2394
      %v4579 = vadd.f32 %v4559, %v2394
      %v4580 = vadd.f32 %v4560, %v2394
      %v4581 = vadd.f32 %v4561, %v2394
      %v4582 = vadd.f32 %v4562, %v2398
      %v4583 = vadd.f32 %v4563, %v2398
      %v4584 = vadd.f32 %v4564, %v2398
      %v4585 = vadd.f32 %v4565, %v2398
      %v4586 = vadd.f32 %v4566, %v2398
      %v4587 = vmax.f32 %v4567, 0.0
      %v4588 = vmax.f32 %v4568, 0.0
      %v4589 = vmax.f32 %v4569, 0.0
      %v4590 = vmax.f32 %v4570, 0.0
      %v4591 = vmax.f32 %v4571, 0.0
      %v4592 = vmax.f32 %v4572, 0.0
      %v4593 = vmax.f32 %v4573, 0.0
      %v4594 = vmax.f32 %v4574, 0.0
      %v4595 = vmax.f32 %v4575, 0.0
      %v4596 = vmax.f32 %v4576, 0.0
      %v4597 = vmax.f32 %v4577, 0.0
      %v4598 = vmax.f32 %v4578, 0.0
      %v4599 = vmax.f32 %v4579, 0.0
      %v4600 = vmax.f32 %v4580, 0.0
      %v4601 = vmax.f32 %v4581, 0.0
      %v4602 = vmax.f32 %v4582, 0.0
      %v4603 = vmax.f32 %v4583, 0.0
      %v4604 = vmax.f32 %v4584, 0.0
      %v4605 = vmax.f32 %v4585, 0.0
      %v4606 = vmax.f32 %v4586, 0.0
      %v4607 = vmul.f32 %v4531, %v2442
      %v4608 = vmul.f32 %v4532, %v2442
      %v4609 = vmul.f32 %v4533, %v2442
      %v4610 = vmul.f32 %v4534, %v2442
      %v4611 = vmul.f32 %v4535, %v2446
      %v4612 = vmul.f32 %v4536, %v2446
      %v4613 = vmul.f32 %v4537, %v2446
      %v4614 = vmul.f32 %v4538, %v2446
      %v4615 = vmul.f32 %v4539, %v2450
      %v4616 = vmul.f32 %v4540, %v2450
      %v4617 = vmul.f32 %v4541, %v2450
      %v4618 = vmul.f32 %v4542, %v2450
      %v4619 = vmul.f32 %v4543, %v2454
      %v4620 = vmul.f32 %v4544, %v2454
      %v4621 = vmul.f32 %v4545, %v2454
      %v4622 = vmul.f32 %v4546, %v2454
      %v4623 = vadd.f32 %v4607, %v2474
      %v4624 = vadd.f32 %v4608, %v2474
      %v4625 = vadd.f32 %v4609, %v2474
      %v4626 = vadd.f32 %v4610, %v2474
      %v4627 = vadd.f32 %v4611, %v2478
      %v4628 = vadd.f32 %v4612, %v2478
      %v4629 = vadd.f32 %v4613, %v2478
      %v4630 = vadd.f32 %v4614, %v2478
      %v4631 = vadd.f32 %v4615, %v2482
      %v4632 = vadd.f32 %v4616, %v2482
      %v4633 = vadd.f32 %v4617, %v2482
      %v4634 = vadd.f32 %v4618, %v2482
      %v4635 = vadd.f32 %v4619, %v2486
      %v4636 = vadd.f32 %v4620, %v2486
      %v4637 = vadd.f32 %v4621, %v2486
      %v4638 = vadd.f32 %v4622, %v2486
      %4659 = vrot.lane.b32.xlu0 %v4587, 121
      %v4660 = vpop.permute.xlu0 %4659
      %4661 = vrot.lane.b32.xlu0 %v4588, 121
      %v4662 = vpop.permute.xlu0 %4661
      %4663 = vrot.lane.b32.xlu0 %v4589, 121
      %v4664 = vpop.permute.xlu0 %4663
      %4665 = vrot.lane.b32.xlu0 %v4590, 121
      %v4666 = vpop.permute.xlu0 %4665
      %4667 = vrot.lane.b32.xlu0 %v4591, 121
      %v4668 = vpop.permute.xlu0 %4667
      %4669 = vrot.lane.b32.xlu0 %v4592, 121
      %v4670 = vpop.permute.xlu0 %4669
      %4671 = vrot.lane.b32.xlu0 %v4593, 121
      %v4672 = vpop.permute.xlu0 %4671
      %4673 = vrot.lane.b32.xlu0 %v4594, 121
      %v4674 = vpop.permute.xlu0 %4673
      %4675 = vrot.lane.b32.xlu0 %v4595, 121
      %v4676 = vpop.permute.xlu0 %4675
      %4677 = vrot.lane.b32.xlu0 %v4596, 121
      %v4678 = vpop.permute.xlu0 %4677
      %4679 = vrot.lane.b32.xlu0 %v4597, 121
      %v4680 = vpop.permute.xlu0 %4679
      %4681 = vrot.lane.b32.xlu0 %v4598, 121
      %v4682 = vpop.permute.xlu0 %4681
      %4683 = vrot.lane.b32.xlu0 %v4599, 121
      %v4684 = vpop.permute.xlu0 %4683
      %4685 = vrot.lane.b32.xlu0 %v4600, 121
      %v4686 = vpop.permute.xlu0 %4685
      %4687 = vrot.lane.b32.xlu0 %v4601, 121
      %v4688 = vpop.permute.xlu0 %4687
      %4689 = vrot.lane.b32.xlu0 %v4602, 121
      %v4690 = vpop.permute.xlu0 %4689
      %4691 = vrot.lane.b32.xlu0 %v4603, 121
      %v4692 = vpop.permute.xlu0 %4691
      %4693 = vrot.lane.b32.xlu0 %v4604, 121
      %v4694 = vpop.permute.xlu0 %4693
      %4695 = vrot.lane.b32.xlu0 %v4605, 121
      %v4696 = vpop.permute.xlu0 %4695
      %4697 = vrot.lane.b32.xlu0 %v4606, 121
      %v4698 = vpop.permute.xlu0 %4697
      %v4699 = vsel %vm1232, %v4660, %v4662
      %v4700 = vsel %vm1232, %v4662, %v4664
      %v4701 = vsel %vm1232, %v4664, %v4666
      %v4702 = vsel %vm1232, %v4666, %v4668
      %v4703 = vsel %vm1232, %v4670, %v4672
      %v4704 = vsel %vm1232, %v4672, %v4674
      %v4705 = vsel %vm1232, %v4674, %v4676
      %v4706 = vsel %vm1232, %v4676, %v4678
      %v4707 = vsel %vm1232, %v4680, %v4682
      %v4708 = vsel %vm1232, %v4682, %v4684
      %v4709 = vsel %vm1232, %v4684, %v4686
      %v4710 = vsel %vm1232, %v4686, %v4688
      %v4711 = vsel %vm1232, %v4690, %v4692
      %v4712 = vsel %vm1232, %v4692, %v4694
      %v4713 = vsel %vm1232, %v4694, %v4696
      %v4714 = vsel %vm1232, %v4696, %v4698
      %v4731 = vadd.f32 %v4623, %v4699
      %v4732 = vadd.f32 %v4624, %v4700
      %v4733 = vadd.f32 %v4625, %v4701
      %v4734 = vadd.f32 %v4626, %v4702
      %v4735 = vadd.f32 %v4627, %v4703
      %v4736 = vadd.f32 %v4628, %v4704
      %v4737 = vadd.f32 %v4629, %v4705
      %v4738 = vadd.f32 %v4630, %v4706
      %v4739 = vadd.f32 %v4631, %v4707
      %v4740 = vadd.f32 %v4632, %v4708
      %v4741 = vadd.f32 %v4633, %v4709
      %v4742 = vadd.f32 %v4634, %v4710
      %v4743 = vadd.f32 %v4635, %v4711
      %v4744 = vadd.f32 %v4636, %v4712
      %v4745 = vadd.f32 %v4637, %v4713
      %v4746 = vadd.f32 %v4638, %v4714
      %v4747 = vmax.f32 %v4731, 0.0
      %v4748 = vmax.f32 %v4732, 0.0
      %v4749 = vmax.f32 %v4733, 0.0
      %v4750 = vmax.f32 %v4734, 0.0
      %v4751 = vmax.f32 %v4735, 0.0
      %v4752 = vmax.f32 %v4736, 0.0
      %v4753 = vmax.f32 %v4737, 0.0
      %v4754 = vmax.f32 %v4738, 0.0
      %v4755 = vmax.f32 %v4739, 0.0
      %v4756 = vmax.f32 %v4740, 0.0
      %v4757 = vmax.f32 %v4741, 0.0
      %v4758 = vmax.f32 %v4742, 0.0
      %v4759 = vmax.f32 %v4743, 0.0
      %v4760 = vmax.f32 %v4744, 0.0
      %v4761 = vmax.f32 %v4745, 0.0
      %v4762 = vmax.f32 %v4746, 0.0
      %v4763 = vmul.f32 %v4747, %v2442
      %v4764 = vmul.f32 %v4748, %v2442
      %v4765 = vmul.f32 %v4749, %v2442
      %v4766 = vmul.f32 %v4750, %v2442
      %v4767 = vmul.f32 %v4751, %v2446
      %v4768 = vmul.f32 %v4752, %v2446
      %v4769 = vmul.f32 %v4753, %v2446
      %v4770 = vmul.f32 %v4754, %v2446
      %v4771 = vmul.f32 %v4755, %v2450
      %v4772 = vmul.f32 %v4756, %v2450
      %v4773 = vmul.f32 %v4757, %v2450
      %v4774 = vmul.f32 %v4758, %v2450
      %v4775 = vmul.f32 %v4759, %v2454
      %v4776 = vmul.f32 %v4760, %v2454
      %v4777 = vmul.f32 %v4761, %v2454
      %v4778 = vmul.f32 %v4762, %v2454
      %v4779 = vadd.f32 %v4763, %v2474
      %v4780 = vadd.f32 %v4764, %v2474
      %v4781 = vadd.f32 %v4765, %v2474
      %v4782 = vadd.f32 %v4766, %v2474
      %v4783 = vadd.f32 %v4767, %v2478
      %v4784 = vadd.f32 %v4768, %v2478
      %v4785 = vadd.f32 %v4769, %v2478
      %v4786 = vadd.f32 %v4770, %v2478
      %v4787 = vadd.f32 %v4771, %v2482
      %v4788 = vadd.f32 %v4772, %v2482
      %v4789 = vadd.f32 %v4773, %v2482
      %v4790 = vadd.f32 %v4774, %v2482
      %v4791 = vadd.f32 %v4775, %v2486
      %v4792 = vadd.f32 %v4776, %v2486
      %v4793 = vadd.f32 %v4777, %v2486
      %v4794 = vadd.f32 %v4778, %v2486
      %4795 = vst [vmem:[%s189 + $0x20] sm:$0xff] %v4779
      %4796 = vst [vmem:[%s189 + $0x28] sm:$0xff] %v4780
      %4797 = vst [vmem:[%s189 + $0x30] sm:$0xff] %v4781
      %4798 = vst [vmem:[%s189 + $0x38] sm:$0xff] %v4782
      %4799 = vst [vmem:[%s189 + $0x60] sm:$0xff] %v4783
      %4800 = vst [vmem:[%s189 + $0x68] sm:$0xff] %v4784
      %4801 = vst [vmem:[%s189 + $0x70] sm:$0xff] %v4785
      %4802 = vst [vmem:[%s189 + $0x78] sm:$0xff] %v4786
      %4803 = vst [vmem:[%s189 + $0xa0] sm:$0xff] %v4787
      %4804 = vst [vmem:[%s189 + $0xa8] sm:$0xff] %v4788
      %4805 = vst [vmem:[%s189 + $0xb0] sm:$0xff] %v4789
      %4806 = vst [vmem:[%s189 + $0xb8] sm:$0xff] %v4790
      %4807 = vst [vmem:[%s189 + $0xe0] sm:$0xf] %v4791
      %4808 = vst [vmem:[%s189 + $0xe8] sm:$0xf] %v4792
      %4809 = vst [vmem:[%s189 + $0xf0] sm:$0xf] %v4793
      %4810 = vst [vmem:[%s189 + $0xf8] sm:$0xf] %v4794
      %s4811 = smul.u32 8, %s19
      %p4812 = scmp.lt.s32.totalorder %s18, 1
      %s4813 = scalar_select %p4812, %s18, 1
      %p4814 = scmp.lt.s32.totalorder %s4811, 7
      %s4815 = scalar_select %p4814, %s4811, 7
      %s4816 = smul.addr %s4813, 32
      %s4817 = sadd.s32 %s4815, %s4816
      %s4818 = smul.addr %s4817, 8
      %s4819 = scalar_lea.vmem %s3, %s4818
      // Predicated region
      $region33: #{tpu_custom_call.1} parent=31 // pred_check
        %p4820 = pneg %p114
      $region34: #{tpu_custom_call.1} parent=31 // pred_check_branch
        %4822 = sbr.rel (%p4820) target = $region36
      $region35: #{tpu_custom_call.1} parent=31 // pred_region
        %s4823 = smul.u32 8, %s19
      $region36: #{tpu_custom_call.1} parent=31 // pred_fallthru
        _
    $region32: #{tpu_custom_call.1} parent=5 // pred_fallthru
      _
    %p4824 = scmp.le.s32.totalorder 2, %s9
    // Predicated region
    $region37: #{tpu_custom_call.1} parent=5 // pred_check
      %p4825 = pneg %p4824
    $region38: #{tpu_custom_call.1} parent=5 // pred_check_branch
      %4827 = sbr.rel (%p4825) target = $region40
    $region39: #{tpu_custom_call.1} parent=5 // pred_region
      %s4828 = ssub.s32 %s9, 2
      // Predicated region
      $region41: #{tpu_custom_call.1} parent=39 // pred_check
        %p4829 = pneg %p120
      $region42: #{tpu_custom_call.1} parent=39 // pred_check_branch
        %4831 = sbr.rel (%p4829) target = $region44
      $region43: #{tpu_custom_call.1} parent=39 // pred_region
        %s4832 = smul.u32 8, %s21
        %p4833 = scmp.lt.s32.totalorder %s20, 1
        %s4834 = scalar_select %p4833, %s20, 1
        %p4835 = scmp.lt.s32.totalorder %s4832, 7
        %s4836 = scalar_select %p4835, %s4832, 7
        %s4837 = smul.addr %s4834, 32
        %s4838 = sadd.s32 %s4836, %s4837
        %s4839 = smul.addr %s4838, 8
        %s4840 = scalar_lea.vmem %s3, %s4839
      $region44: #{tpu_custom_call.1} parent=39 // pred_fallthru
        _
    $region40: #{tpu_custom_call.1} parent=5 // pred_fallthru
      _
  $region6: #{tpu_custom_call.1} parent=0 // loop_footer
    %s13 = sadd.s32 1, %s9
  $region7: #{tpu_custom_call.1} parent=0 // loop_footer_branch
    %8 = sbr.rel target = $region3
  $region8: #{tpu_custom_call.1} parent=0 // loop_exit
    _

</llo_original>
